<compile_context>
chip_gen: v5e
topology: v5e:2x2
jax: 0.10.0
libtpu: 0.0.40
codegen_flags: <defaults>
</compile_context>

<pallas_src>
import functools

import jax
import jax.numpy as jnp
from jax.experimental import pallas as pl
from jax.experimental.pallas import tpu as pltpu

F32 = jnp.float32
CN_EPS = 1e-3   # ContextNormalization eps
IN_EPS = 1e-3   # InstanceNorm1d eps
BN_EPS = 1e-5   # BatchNorm1d eps (PyTorch default, folded into scale/shift)


# --------------------------------------------------------------------------
# In-kernel helpers
# --------------------------------------------------------------------------
def _cn_bn_relu(y, s, t, n_points):
    """ContextNorm (unbiased var over points) + folded BN affine + ReLU.

    The BN scale is fused with the rsqrt normalizer so the (C, N) tile sees a
    single broadcast multiply-add instead of two multiplies.
    """
    mean = jnp.mean(y, axis=1, keepdims=True)
    d = y - mean
    var = jnp.sum(d * d, axis=1, keepdims=True) * (1.0 / (n_points - 1))
    scale = s * jax.lax.rsqrt(var + CN_EPS)              # (C, 1)
    return jnp.maximum(d * scale + t, 0.0)


def _in_stats(x):
    """InstanceNorm1d stats over the last axis (biased var, eps=1e-3).

    Returns (centered data, rsqrt(var + eps)) so callers can fold the
    normalizer into their BN scale.
    """
    mean = jnp.mean(x, axis=1, keepdims=True)
    d = x - mean
    var = jnp.mean(d * d, axis=1, keepdims=True)
    return d, jax.lax.rsqrt(var + IN_EPS)


# --------------------------------------------------------------------------
# Single fused kernel for the whole OANet forward (one batch element)
# --------------------------------------------------------------------------
def _oanet_kernel(
        x_ref,
        # l1_1: Conv(in_dim->C, bias) ; n_l1_1 x [Conv(C->C), CN, BN, ReLU]
        w0_ref, b0_ref, wA_ref, sA_ref, tA_ref,
        # diff_pool: IN + BN + ReLU + Conv(C->K), softmax over points
        wp_ref, bp_ref, sp_ref, tp_ref,
        # OAFilter stack (n_filters x), all in the (C, K) layout
        w1_ref, b1_ref, s1_ref, t1_ref,
        w2t_ref, b2_ref, s2_ref, t2_ref,
        w3_ref, b3_ref, s3_ref, t3_ref,
        # diff_unpool: IN + BN + ReLU + Conv(C->K), softmax over clusters
        wu_ref, bu_ref, su_ref, tu_ref,
        # l1_2: Conv(2C->C, bias) split into (a|b) ; n_l1_2 x [Conv, CN, BN, ReLU]
        wca_ref, wcb_ref, bc_ref, wB_ref, sB_ref, tB_ref,
        o_ref,
        *, n_l1_1, n_filters, n_l1_2, n_points):
    x = x_ref[0]                                                  # (in_dim, N)

    # ---- l1_1 stack (activation stays in VMEM across layers) ----
    h = jnp.dot(w0_ref[...], x, preferred_element_type=F32) + b0_ref[...]
    for l in range(n_l1_1):                                       # static unroll
        y = jnp.dot(wA_ref[l], h, preferred_element_type=F32)
        h = _cn_bn_relu(y, sA_ref[l], tA_ref[l], n_points)
    x1_1 = h                                                      # (C, N)

    # Shared InstanceNorm of x1_1 (used by both pool and unpool branches).
    d, r = _in_stats(x1_1)

    # ---- diff_pool: BN+ReLU+Conv(C->K), softmax over points, x1_1 @ S^T ----
    hp = jnp.maximum(d * (sp_ref[...] * r) + tp_ref[...], 0.0)
    ep = jnp.dot(wp_ref[...], hp, preferred_element_type=F32) + bp_ref[...]   # (K, N)
    ep = jnp.exp(ep - jnp.max(ep, axis=1, keepdims=True))
    S = ep * pl.reciprocal(jnp.sum(ep, axis=1, keepdims=True), approx=True)
    # xk[c, k] = sum_n x1_1[c, n] * S[k, n]
    xk = jax.lax.dot_general(x1_1, S, (((1,), (1,)), ((), ())),
                             preferred_element_type=F32)          # (C, K)

    # ---- OAFilter stack (Transpose(1,2) kept implicit: work on out^T) ----
    for l in range(n_filters):                                    # static unroll
        # conv1: IN(C) over K, BN(C), ReLU, Conv(C->C)
        dk, rk = _in_stats(xk)
        h1 = jnp.maximum(dk * (s1_ref[l] * rk) + t1_ref[l], 0.0)
        out_ck = jnp.dot(w1_ref[l], h1, preferred_element_type=F32) + b1_ref[l]
        # conv2: BN(K), ReLU, Conv(K->K) (right-multiply by W2^T), residual
        h2 = jnp.maximum(out_ck * s2_ref[l] + t2_ref[l], 0.0)
        out_ck = out_ck + jnp.dot(h2, w2t_ref[l],
                                  preferred_element_type=F32) + b2_ref[l]
        # conv3: IN(C) over K, BN(C), ReLU, Conv(C->C), residual with input
        d3, r3 = _in_stats(out_ck)
        h3 = jnp.maximum(d3 * (s3_ref[l] * r3) + t3_ref[l], 0.0)
        xk = xk + jnp.dot(w3_ref[l], h3, preferred_element_type=F32) + b3_ref[l]

    # ---- diff_unpool: BN+ReLU+Conv(C->K), softmax over clusters, x2 @ S ----
    hu = jnp.maximum(d * (su_ref[...] * r) + tu_ref[...], 0.0)
    eu = jnp.dot(wu_ref[...], hu, preferred_element_type=F32) + bu_ref[...]   # (K, N)
    eu = jnp.exp(eu - jnp.max(eu, axis=0, keepdims=True))
    Su = eu * pl.reciprocal(jnp.sum(eu, axis=0, keepdims=True), approx=True)
    x_up = jnp.dot(xk, Su, preferred_element_type=F32)            # (C, N)

    # ---- l1_2 stack (concat-free: W @ [x1_1; x_up] == Wa @ x1_1 + Wb @ x_up)
    h = (jnp.dot(wca_ref[...], x1_1, preferred_element_type=F32)
         + jnp.dot(wcb_ref[...], x_up, preferred_element_type=F32)
         + bc_ref[...])
    for l in range(n_l1_2):                                       # static unroll
        y = jnp.dot(wB_ref[l], h, preferred_element_type=F32)
        h = _cn_bn_relu(y, sB_ref[l], tB_ref[l], n_points)
    o_ref[0] = h


def oanet_forward(params, corr_pos):
    """Full OANet forward: one pallas_call, grid over batch."""
    # corr_pos: (B, N, in_dim) -> permute(0, 2, 1) -> (B, in_dim, N)
    x = jnp.transpose(corr_pos, (0, 2, 1)).astype(F32)
    B, cin, N = x.shape

    p11, pp, fp, up, p12 = (params['l1_1'], params['pool'], params['l2'],
                            params['unpool'], params['l1_2'])
    C = p11['w0'].shape[0]
    K = pp['w'].shape[0]
    nA = p11['ws'].shape[0]
    nf = fp['w1'].shape[0]
    nB = p12['ws'].shape[0]

    kern = functools.partial(_oanet_kernel, n_l1_1=nA, n_filters=nf,
                             n_l1_2=nB, n_points=N)

    return pl.pallas_call(
        kern,
        out_shape=jax.ShapeDtypeStruct((B, C, N), F32),
        grid=(B,),
        in_specs=[
            pl.BlockSpec((1, cin, N), lambda i: (i, 0, 0)),     # x
            # l1_1
            pl.BlockSpec((C, cin), lambda i: (0, 0)),           # w0
            pl.BlockSpec((C, 1), lambda i: (0, 0)),             # b0
            pl.BlockSpec((nA, C, C), lambda i: (0, 0, 0)),      # wA
            pl.BlockSpec((nA, C, 1), lambda i: (0, 0, 0)),      # sA
            pl.BlockSpec((nA, C, 1), lambda i: (0, 0, 0)),      # tA
            # diff_pool
            pl.BlockSpec((K, C), lambda i: (0, 0)),             # wp
            pl.BlockSpec((K, 1), lambda i: (0, 0)),             # bp
            pl.BlockSpec((C, 1), lambda i: (0, 0)),             # sp
            pl.BlockSpec((C, 1), lambda i: (0, 0)),             # tp
            # OAFilter stack
            pl.BlockSpec((nf, C, C), lambda i: (0, 0, 0)),      # w1
            pl.BlockSpec((nf, C, 1), lambda i: (0, 0, 0)),      # b1
            pl.BlockSpec((nf, C, 1), lambda i: (0, 0, 0)),      # s1
            pl.BlockSpec((nf, C, 1), lambda i: (0, 0, 0)),      # t1
            pl.BlockSpec((nf, K, K), lambda i: (0, 0, 0)),      # w2^T
            pl.BlockSpec((nf, 1, K), lambda i: (0, 0, 0)),      # b2
            pl.BlockSpec((nf, 1, K), lambda i: (0, 0, 0)),      # s2
            pl.BlockSpec((nf, 1, K), lambda i: (0, 0, 0)),      # t2
            pl.BlockSpec((nf, C, C), lambda i: (0, 0, 0)),      # w3
            pl.BlockSpec((nf, C, 1), lambda i: (0, 0, 0)),      # b3
            pl.BlockSpec((nf, C, 1), lambda i: (0, 0, 0)),      # s3
            pl.BlockSpec((nf, C, 1), lambda i: (0, 0, 0)),      # t3
            # diff_unpool
            pl.BlockSpec((K, C), lambda i: (0, 0)),             # wu
            pl.BlockSpec((K, 1), lambda i: (0, 0)),             # bu
            pl.BlockSpec((C, 1), lambda i: (0, 0)),             # su
            pl.BlockSpec((C, 1), lambda i: (0, 0)),             # tu
            # l1_2
            pl.BlockSpec((C, C), lambda i: (0, 0)),             # w0a
            pl.BlockSpec((C, C), lambda i: (0, 0)),             # w0b
            pl.BlockSpec((C, 1), lambda i: (0, 0)),             # bc
            pl.BlockSpec((nB, C, C), lambda i: (0, 0, 0)),      # wB
            pl.BlockSpec((nB, C, 1), lambda i: (0, 0, 0)),      # sB
            pl.BlockSpec((nB, C, 1), lambda i: (0, 0, 0)),      # tB
        ],
        out_specs=pl.BlockSpec((1, C, N), lambda i: (i, 0, 0)),
        compiler_params=pltpu.CompilerParams(dimension_semantics=("parallel",)),
    )(x,
      p11['w0'], p11['b0'], p11['ws'], p11['s'], p11['t'],
      pp['w'], pp['b'], pp['s'], pp['t'],
      fp['w1'], fp['b1'], fp['s1'], fp['t1'],
      fp['w2t'], fp['b2'], fp['s2'], fp['t2'],
      fp['w3'], fp['b3'], fp['s3'], fp['t3'],
      up['w'], up['b'], up['s'], up['t'],
      p12['w0a'], p12['w0b'], p12['b0'], p12['ws'], p12['s'], p12['t'])


# --------------------------------------------------------------------------
# Deterministic parameter initialization (synthetic weights, no checkpoint)
# --------------------------------------------------------------------------
def init_params(key, in_dim=6, C=32, K=8, num_layers=6):
    assert num_layers >= 4 and num_layers % 2 == 0
    half = num_layers // 2
    keys = iter(jax.random.split(key, 512))
    nk = lambda: next(keys)

    def conv_w(cout, cin):
        return 0.1 * jax.random.normal(nk(), (cout, cin), F32)

    def conv_b(cout):
        return 0.05 * jax.random.normal(nk(), (cout, 1), F32)

    def bn_affine(c, col=True):
        g = 1.0 + 0.1 * jax.random.normal(nk(), (c,), F32)
        beta = 0.1 * jax.random.normal(nk(), (c,), F32)
        rm = 0.1 * jax.random.normal(nk(), (c,), F32)
        rv = 1.0 + 0.1 * jnp.abs(jax.random.normal(nk(), (c,), F32))
        s = g * jax.lax.rsqrt(rv + BN_EPS)
        t = beta - rm * s
        shape = (c, 1) if col else (1, c)
        return s.reshape(shape), t.reshape(shape)

    params = {}

    # l1_1: Conv(in_dim->C, bias) + half x [Conv(C->C), CN, BN, ReLU]
    # (conv biases of the norm-followed layers are omitted: exactly cancelled
    #  by the ContextNormalization mean subtraction)
    ws, ss, ts = [], [], []
    for _ in range(half):
        s, t = bn_affine(C)
        ws.append(conv_w(C, C)); ss.append(s); ts.append(t)
    params['l1_1'] = {'w0': conv_w(C, in_dim), 'b0': conv_b(C),
                      'ws': jnp.stack(ws), 's': jnp.stack(ss), 't': jnp.stack(ts)}

    # down1 (diff_pool) / up1 (diff_unpool)
    for name in ('pool', 'unpool'):
        s, t = bn_affine(C)
        params[name] = {'w': conv_w(K, C), 'b': conv_b(K), 's': s, 't': t}

    # l2: half x OAFilter(C, K)
    l2 = {k: [] for k in ('w1', 'b1', 's1', 't1', 'w2t', 'b2', 's2', 't2',
                          'w3', 'b3', 's3', 't3')}
    for _ in range(half):
        s1, t1 = bn_affine(C)
        s2, t2 = bn_affine(K, col=False)
        s3, t3 = bn_affine(C)
        l2['w1'].append(conv_w(C, C)); l2['b1'].append(conv_b(C))
        l2['s1'].append(s1); l2['t1'].append(t1)
        l2['w2t'].append(conv_w(K, K).T)
        l2['b2'].append(0.05 * jax.random.normal(nk(), (1, K), F32))
        l2['s2'].append(s2); l2['t2'].append(t2)
        l2['w3'].append(conv_w(C, C)); l2['b3'].append(conv_b(C))
        l2['s3'].append(s3); l2['t3'].append(t3)
    params['l2'] = {k: jnp.stack(v) for k, v in l2.items()}

    # l1_2: Conv(2C->C, bias) + (half-1) x [Conv(C->C), CN, BN, ReLU]
    w0 = conv_w(C, 2 * C)
    ws, ss, ts = [], [], []
    for _ in range(half - 1):
        s, t = bn_affine(C)
        ws.append(conv_w(C, C)); ss.append(s); ts.append(t)
    params['l1_2'] = {'w0a': w0[:, :C], 'w0b': w0[:, C:], 'b0': conv_b(C),
                      'ws': jnp.stack(ws), 's': jnp.stack(ss), 't': jnp.stack(ts)}

    return params


if __name__ == "__main__":
    # N chosen as a multiple of 128 so every tile is full lane width.
    B, N, IN_DIM, C, K = 2, 128, 6, 32, 8
    key = jax.random.PRNGKey(0)
    k_param, k_data = jax.random.split(key)
    params = init_params(k_param, in_dim=IN_DIM, C=C, K=K, num_layers=6)
    corr_pos = jax.random.normal(k_data, (B, N, IN_DIM), F32)

    out = jax.jit(oanet_forward)(params, corr_pos)
    out = jax.block_until_ready(out)
    assert out.shape == (B, C, N) and out.dtype == F32
    assert bool(jnp.all(jnp.isfinite(out)))
    print("KERNEL_OK")
</pallas_src>

<mosaic_0001>
module attributes {stable_mosaic.version = 11 : i64} {
  func.func @_oanet_kernel(%arg0: i32, %arg1: memref<1x6x128xf32, #tpu.memory_space<vmem>>, %arg2: memref<32x6xf32, #tpu.memory_space<vmem>>, %arg3: memref<32x1xf32, #tpu.memory_space<vmem>>, %arg4: memref<3x32x32xf32, #tpu.memory_space<vmem>>, %arg5: memref<3x32x1xf32, #tpu.memory_space<vmem>>, %arg6: memref<3x32x1xf32, #tpu.memory_space<vmem>>, %arg7: memref<8x32xf32, #tpu.memory_space<vmem>>, %arg8: memref<8x1xf32, #tpu.memory_space<vmem>>, %arg9: memref<32x1xf32, #tpu.memory_space<vmem>>, %arg10: memref<32x1xf32, #tpu.memory_space<vmem>>, %arg11: memref<3x32x32xf32, #tpu.memory_space<vmem>>, %arg12: memref<3x32x1xf32, #tpu.memory_space<vmem>>, %arg13: memref<3x32x1xf32, #tpu.memory_space<vmem>>, %arg14: memref<3x32x1xf32, #tpu.memory_space<vmem>>, %arg15: memref<3x8x8xf32, #tpu.memory_space<vmem>>, %arg16: memref<3x1x8xf32, #tpu.memory_space<vmem>>, %arg17: memref<3x1x8xf32, #tpu.memory_space<vmem>>, %arg18: memref<3x1x8xf32, #tpu.memory_space<vmem>>, %arg19: memref<3x32x32xf32, #tpu.memory_space<vmem>>, %arg20: memref<3x32x1xf32, #tpu.memory_space<vmem>>, %arg21: memref<3x32x1xf32, #tpu.memory_space<vmem>>, %arg22: memref<3x32x1xf32, #tpu.memory_space<vmem>>, %arg23: memref<8x32xf32, #tpu.memory_space<vmem>>, %arg24: memref<8x1xf32, #tpu.memory_space<vmem>>, %arg25: memref<32x1xf32, #tpu.memory_space<vmem>>, %arg26: memref<32x1xf32, #tpu.memory_space<vmem>>, %arg27: memref<32x32xf32, #tpu.memory_space<vmem>>, %arg28: memref<32x32xf32, #tpu.memory_space<vmem>>, %arg29: memref<32x1xf32, #tpu.memory_space<vmem>>, %arg30: memref<2x32x32xf32, #tpu.memory_space<vmem>>, %arg31: memref<2x32x1xf32, #tpu.memory_space<vmem>>, %arg32: memref<2x32x1xf32, #tpu.memory_space<vmem>>, %arg33: memref<1x32x128xf32, #tpu.memory_space<vmem>>) attributes {dimension_semantics = [#tpu.dimension_semantics<parallel>], iteration_bounds = array<i64: 2>, scalar_prefetch = 0 : i64, scratch_operands = 0 : i64, tpu.core_type = #tpu.core_type<tc>, window_params = [{transform_indices = @transform_0, window_bounds = array<i64: 1, 6, 128>}, {pipeline_mode = #tpu.pipeline_mode<synchronous>, transform_indices = @transform_1, window_bounds = array<i64: 32, 6>}, {pipeline_mode = #tpu.pipeline_mode<synchronous>, transform_indices = @transform_2, window_bounds = array<i64: 32, 1>}, {pipeline_mode = #tpu.pipeline_mode<synchronous>, transform_indices = @transform_3, window_bounds = array<i64: 3, 32, 32>}, {pipeline_mode = #tpu.pipeline_mode<synchronous>, transform_indices = @transform_4, window_bounds = array<i64: 3, 32, 1>}, {pipeline_mode = #tpu.pipeline_mode<synchronous>, transform_indices = @transform_5, window_bounds = array<i64: 3, 32, 1>}, {pipeline_mode = #tpu.pipeline_mode<synchronous>, transform_indices = @transform_6, window_bounds = array<i64: 8, 32>}, {pipeline_mode = #tpu.pipeline_mode<synchronous>, transform_indices = @transform_7, window_bounds = array<i64: 8, 1>}, {pipeline_mode = #tpu.pipeline_mode<synchronous>, transform_indices = @transform_8, window_bounds = array<i64: 32, 1>}, {pipeline_mode = #tpu.pipeline_mode<synchronous>, transform_indices = @transform_9, window_bounds = array<i64: 32, 1>}, {pipeline_mode = #tpu.pipeline_mode<synchronous>, transform_indices = @transform_10, window_bounds = array<i64: 3, 32, 32>}, {pipeline_mode = #tpu.pipeline_mode<synchronous>, transform_indices = @transform_11, window_bounds = array<i64: 3, 32, 1>}, {pipeline_mode = #tpu.pipeline_mode<synchronous>, transform_indices = @transform_12, window_bounds = array<i64: 3, 32, 1>}, {pipeline_mode = #tpu.pipeline_mode<synchronous>, transform_indices = @transform_13, window_bounds = array<i64: 3, 32, 1>}, {pipeline_mode = #tpu.pipeline_mode<synchronous>, transform_indices = @transform_14, window_bounds = array<i64: 3, 8, 8>}, {pipeline_mode = #tpu.pipeline_mode<synchronous>, transform_indices = @transform_15, window_bounds = array<i64: 3, 1, 8>}, {pipeline_mode = #tpu.pipeline_mode<synchronous>, transform_indices = @transform_16, window_bounds = array<i64: 3, 1, 8>}, {pipeline_mode = #tpu.pipeline_mode<synchronous>, transform_indices = @transform_17, window_bounds = array<i64: 3, 1, 8>}, {pipeline_mode = #tpu.pipeline_mode<synchronous>, transform_indices = @transform_18, window_bounds = array<i64: 3, 32, 32>}, {pipeline_mode = #tpu.pipeline_mode<synchronous>, transform_indices = @transform_19, window_bounds = array<i64: 3, 32, 1>}, {pipeline_mode = #tpu.pipeline_mode<synchronous>, transform_indices = @transform_20, window_bounds = array<i64: 3, 32, 1>}, {pipeline_mode = #tpu.pipeline_mode<synchronous>, transform_indices = @transform_21, window_bounds = array<i64: 3, 32, 1>}, {pipeline_mode = #tpu.pipeline_mode<synchronous>, transform_indices = @transform_22, window_bounds = array<i64: 8, 32>}, {pipeline_mode = #tpu.pipeline_mode<synchronous>, transform_indices = @transform_23, window_bounds = array<i64: 8, 1>}, {pipeline_mode = #tpu.pipeline_mode<synchronous>, transform_indices = @transform_24, window_bounds = array<i64: 32, 1>}, {pipeline_mode = #tpu.pipeline_mode<synchronous>, transform_indices = @transform_25, window_bounds = array<i64: 32, 1>}, {pipeline_mode = #tpu.pipeline_mode<synchronous>, transform_indices = @transform_26, window_bounds = array<i64: 32, 32>}, {pipeline_mode = #tpu.pipeline_mode<synchronous>, transform_indices = @transform_27, window_bounds = array<i64: 32, 32>}, {pipeline_mode = #tpu.pipeline_mode<synchronous>, transform_indices = @transform_28, window_bounds = array<i64: 32, 1>}, {pipeline_mode = #tpu.pipeline_mode<synchronous>, transform_indices = @transform_29, window_bounds = array<i64: 2, 32, 32>}, {pipeline_mode = #tpu.pipeline_mode<synchronous>, transform_indices = @transform_30, window_bounds = array<i64: 2, 32, 1>}, {pipeline_mode = #tpu.pipeline_mode<synchronous>, transform_indices = @transform_31, window_bounds = array<i64: 2, 32, 1>}, {transform_indices = @transform_32, window_bounds = array<i64: 1, 32, 128>}]} {
    %c0 = arith.constant 0 : index
    %c0_0 = arith.constant 0 : index
    %c0_1 = arith.constant 0 : index
    %0 = vector.load %arg1[%c0, %c0_0, %c0_1] : memref<1x6x128xf32, #tpu.memory_space<vmem>>, vector<1x6x128xf32>
    %1 = vector.shape_cast %0 : vector<1x6x128xf32> to vector<6x128xf32>
    %c0_2 = arith.constant 0 : index
    %c0_3 = arith.constant 0 : index
    %2 = vector.load %arg2[%c0_2, %c0_3] : memref<32x6xf32, #tpu.memory_space<vmem>>, vector<32x6xf32>
    %cst = arith.constant dense<0.000000e+00> : vector<32x128xf32>
    %3 = tpu.matmul %2, %1, %cst {dimension_numbers = #tpu.dot_dimension_numbers<[1], [0], [0], [1], [0, 0, 1, 1], [], []>} : vector<32x6xf32>, vector<6x128xf32>, vector<32x128xf32> -> vector<32x128xf32>
    %c0_4 = arith.constant 0 : index
    %c0_5 = arith.constant 0 : index
    %4 = vector.load %arg3[%c0_4, %c0_5] : memref<32x1xf32, #tpu.memory_space<vmem>>, vector<32x1xf32>
    %5 = vector.broadcast %4 : vector<32x1xf32> to vector<32x128xf32>
    %6 = arith.addf %3, %5 : vector<32x128xf32>
    %c0_6 = arith.constant 0 : index
    %c0_7 = arith.constant 0 : index
    %c0_8 = arith.constant 0 : index
    %7 = vector.load %arg4[%c0_6, %c0_7, %c0_8] : memref<3x32x32xf32, #tpu.memory_space<vmem>>, vector<1x32x32xf32>
    %8 = vector.shape_cast %7 : vector<1x32x32xf32> to vector<32x32xf32>
    %cst_9 = arith.constant dense<0.000000e+00> : vector<32x128xf32>
    %9 = tpu.matmul %8, %6, %cst_9 {dimension_numbers = #tpu.dot_dimension_numbers<[1], [0], [0], [1], [0, 0, 1, 1], [], []>} : vector<32x32xf32>, vector<32x128xf32>, vector<32x128xf32> -> vector<32x128xf32>
    %c0_10 = arith.constant 0 : index
    %c0_11 = arith.constant 0 : index
    %c0_12 = arith.constant 0 : index
    %10 = vector.load %arg5[%c0_10, %c0_11, %c0_12] : memref<3x32x1xf32, #tpu.memory_space<vmem>>, vector<1x32x1xf32>
    %11 = vector.shape_cast %10 : vector<1x32x1xf32> to vector<32x1xf32>
    %c0_13 = arith.constant 0 : index
    %c0_14 = arith.constant 0 : index
    %c0_15 = arith.constant 0 : index
    %12 = vector.load %arg6[%c0_13, %c0_14, %c0_15] : memref<3x32x1xf32, #tpu.memory_space<vmem>>, vector<1x32x1xf32>
    %13 = vector.shape_cast %12 : vector<1x32x1xf32> to vector<32x1xf32>
    %cst_16 = arith.constant dense<0.000000e+00> : vector<32xf32>
    %14 = vector.multi_reduction <add>, %9, %cst_16 [1] : vector<32x128xf32> to vector<32xf32>
    %15 = vector.shape_cast %14 : vector<32xf32> to vector<32x1xf32>
    %cst_17 = arith.constant 1.280000e+02 : f32
    %16 = vector.broadcast %cst_17 : f32 to vector<32x1xf32>
    %17 = arith.divf %15, %16 : vector<32x1xf32>
    %18 = vector.broadcast %17 : vector<32x1xf32> to vector<32x128xf32>
    %19 = arith.subf %9, %18 : vector<32x128xf32>
    %20 = arith.mulf %19, %19 : vector<32x128xf32>
    %cst_18 = arith.constant dense<0.000000e+00> : vector<32xf32>
    %21 = vector.multi_reduction <add>, %20, %cst_18 [1] : vector<32x128xf32> to vector<32xf32>
    %22 = vector.shape_cast %21 : vector<32xf32> to vector<32x1xf32>
    %cst_19 = arith.constant 0.00787401571 : f32
    %23 = vector.broadcast %cst_19 : f32 to vector<32x1xf32>
    %24 = arith.mulf %22, %23 : vector<32x1xf32>
    %cst_20 = arith.constant 1.000000e-03 : f32
    %25 = vector.broadcast %cst_20 : f32 to vector<32x1xf32>
    %26 = arith.addf %24, %25 : vector<32x1xf32>
    %27 = math.rsqrt %26 : vector<32x1xf32>
    %28 = arith.mulf %11, %27 : vector<32x1xf32>
    %29 = vector.broadcast %28 : vector<32x1xf32> to vector<32x128xf32>
    %30 = arith.mulf %19, %29 : vector<32x128xf32>
    %31 = vector.broadcast %13 : vector<32x1xf32> to vector<32x128xf32>
    %32 = arith.addf %30, %31 : vector<32x128xf32>
    %cst_21 = arith.constant 0.000000e+00 : f32
    %33 = vector.broadcast %cst_21 : f32 to vector<32x128xf32>
    %34 = arith.maximumf %32, %33 : vector<32x128xf32>
    %c1 = arith.constant 1 : index
    %c0_22 = arith.constant 0 : index
    %c0_23 = arith.constant 0 : index
    %35 = vector.load %arg4[%c1, %c0_22, %c0_23] : memref<3x32x32xf32, #tpu.memory_space<vmem>>, vector<1x32x32xf32>
    %36 = vector.shape_cast %35 : vector<1x32x32xf32> to vector<32x32xf32>
    %cst_24 = arith.constant dense<0.000000e+00> : vector<32x128xf32>
    %37 = tpu.matmul %36, %34, %cst_24 {dimension_numbers = #tpu.dot_dimension_numbers<[1], [0], [0], [1], [0, 0, 1, 1], [], []>} : vector<32x32xf32>, vector<32x128xf32>, vector<32x128xf32> -> vector<32x128xf32>
    %c1_25 = arith.constant 1 : index
    %c0_26 = arith.constant 0 : index
    %c0_27 = arith.constant 0 : index
    %38 = vector.load %arg5[%c1_25, %c0_26, %c0_27] : memref<3x32x1xf32, #tpu.memory_space<vmem>>, vector<1x32x1xf32>
    %39 = vector.shape_cast %38 : vector<1x32x1xf32> to vector<32x1xf32>
    %c1_28 = arith.constant 1 : index
    %c0_29 = arith.constant 0 : index
    %c0_30 = arith.constant 0 : index
    %40 = vector.load %arg6[%c1_28, %c0_29, %c0_30] : memref<3x32x1xf32, #tpu.memory_space<vmem>>, vector<1x32x1xf32>
    %41 = vector.shape_cast %40 : vector<1x32x1xf32> to vector<32x1xf32>
    %cst_31 = arith.constant dense<0.000000e+00> : vector<32xf32>
    %42 = vector.multi_reduction <add>, %37, %cst_31 [1] : vector<32x128xf32> to vector<32xf32>
    %43 = vector.shape_cast %42 : vector<32xf32> to vector<32x1xf32>
    %cst_32 = arith.constant 1.280000e+02 : f32
    %44 = vector.broadcast %cst_32 : f32 to vector<32x1xf32>
    %45 = arith.divf %43, %44 : vector<32x1xf32>
    %46 = vector.broadcast %45 : vector<32x1xf32> to vector<32x128xf32>
    %47 = arith.subf %37, %46 : vector<32x128xf32>
    %48 = arith.mulf %47, %47 : vector<32x128xf32>
    %cst_33 = arith.constant dense<0.000000e+00> : vector<32xf32>
    %49 = vector.multi_reduction <add>, %48, %cst_33 [1] : vector<32x128xf32> to vector<32xf32>
    %50 = vector.shape_cast %49 : vector<32xf32> to vector<32x1xf32>
    %cst_34 = arith.constant 0.00787401571 : f32
    %51 = vector.broadcast %cst_34 : f32 to vector<32x1xf32>
    %52 = arith.mulf %50, %51 : vector<32x1xf32>
    %cst_35 = arith.constant 1.000000e-03 : f32
    %53 = vector.broadcast %cst_35 : f32 to vector<32x1xf32>
    %54 = arith.addf %52, %53 : vector<32x1xf32>
    %55 = math.rsqrt %54 : vector<32x1xf32>
    %56 = arith.mulf %39, %55 : vector<32x1xf32>
    %57 = vector.broadcast %56 : vector<32x1xf32> to vector<32x128xf32>
    %58 = arith.mulf %47, %57 : vector<32x128xf32>
    %59 = vector.broadcast %41 : vector<32x1xf32> to vector<32x128xf32>
    %60 = arith.addf %58, %59 : vector<32x128xf32>
    %cst_36 = arith.constant 0.000000e+00 : f32
    %61 = vector.broadcast %cst_36 : f32 to vector<32x128xf32>
    %62 = arith.maximumf %60, %61 : vector<32x128xf32>
    %c2 = arith.constant 2 : index
    %c0_37 = arith.constant 0 : index
    %c0_38 = arith.constant 0 : index
    %63 = vector.load %arg4[%c2, %c0_37, %c0_38] : memref<3x32x32xf32, #tpu.memory_space<vmem>>, vector<1x32x32xf32>
    %64 = vector.shape_cast %63 : vector<1x32x32xf32> to vector<32x32xf32>
    %cst_39 = arith.constant dense<0.000000e+00> : vector<32x128xf32>
    %65 = tpu.matmul %64, %62, %cst_39 {dimension_numbers = #tpu.dot_dimension_numbers<[1], [0], [0], [1], [0, 0, 1, 1], [], []>} : vector<32x32xf32>, vector<32x128xf32>, vector<32x128xf32> -> vector<32x128xf32>
    %c2_40 = arith.constant 2 : index
    %c0_41 = arith.constant 0 : index
    %c0_42 = arith.constant 0 : index
    %66 = vector.load %arg5[%c2_40, %c0_41, %c0_42] : memref<3x32x1xf32, #tpu.memory_space<vmem>>, vector<1x32x1xf32>
    %67 = vector.shape_cast %66 : vector<1x32x1xf32> to vector<32x1xf32>
    %c2_43 = arith.constant 2 : index
    %c0_44 = arith.constant 0 : index
    %c0_45 = arith.constant 0 : index
    %68 = vector.load %arg6[%c2_43, %c0_44, %c0_45] : memref<3x32x1xf32, #tpu.memory_space<vmem>>, vector<1x32x1xf32>
    %69 = vector.shape_cast %68 : vector<1x32x1xf32> to vector<32x1xf32>
    %cst_46 = arith.constant dense<0.000000e+00> : vector<32xf32>
    %70 = vector.multi_reduction <add>, %65, %cst_46 [1] : vector<32x128xf32> to vector<32xf32>
    %71 = vector.shape_cast %70 : vector<32xf32> to vector<32x1xf32>
    %cst_47 = arith.constant 1.280000e+02 : f32
    %72 = vector.broadcast %cst_47 : f32 to vector<32x1xf32>
    %73 = arith.divf %71, %72 : vector<32x1xf32>
    %74 = vector.broadcast %73 : vector<32x1xf32> to vector<32x128xf32>
    %75 = arith.subf %65, %74 : vector<32x128xf32>
    %76 = arith.mulf %75, %75 : vector<32x128xf32>
    %cst_48 = arith.constant dense<0.000000e+00> : vector<32xf32>
    %77 = vector.multi_reduction <add>, %76, %cst_48 [1] : vector<32x128xf32> to vector<32xf32>
    %78 = vector.shape_cast %77 : vector<32xf32> to vector<32x1xf32>
    %cst_49 = arith.constant 0.00787401571 : f32
    %79 = vector.broadcast %cst_49 : f32 to vector<32x1xf32>
    %80 = arith.mulf %78, %79 : vector<32x1xf32>
    %cst_50 = arith.constant 1.000000e-03 : f32
    %81 = vector.broadcast %cst_50 : f32 to vector<32x1xf32>
    %82 = arith.addf %80, %81 : vector<32x1xf32>
    %83 = math.rsqrt %82 : vector<32x1xf32>
    %84 = arith.mulf %67, %83 : vector<32x1xf32>
    %85 = vector.broadcast %84 : vector<32x1xf32> to vector<32x128xf32>
    %86 = arith.mulf %75, %85 : vector<32x128xf32>
    %87 = vector.broadcast %69 : vector<32x1xf32> to vector<32x128xf32>
    %88 = arith.addf %86, %87 : vector<32x128xf32>
    %cst_51 = arith.constant 0.000000e+00 : f32
    %89 = vector.broadcast %cst_51 : f32 to vector<32x128xf32>
    %90 = arith.maximumf %88, %89 : vector<32x128xf32>
    %cst_52 = arith.constant dense<0.000000e+00> : vector<32xf32>
    %91 = vector.multi_reduction <add>, %90, %cst_52 [1] : vector<32x128xf32> to vector<32xf32>
    %92 = vector.shape_cast %91 : vector<32xf32> to vector<32x1xf32>
    %cst_53 = arith.constant 1.280000e+02 : f32
    %93 = vector.broadcast %cst_53 : f32 to vector<32x1xf32>
    %94 = arith.divf %92, %93 : vector<32x1xf32>
    %95 = vector.broadcast %94 : vector<32x1xf32> to vector<32x128xf32>
    %96 = arith.subf %90, %95 : vector<32x128xf32>
    %97 = arith.mulf %96, %96 : vector<32x128xf32>
    %cst_54 = arith.constant dense<0.000000e+00> : vector<32xf32>
    %98 = vector.multi_reduction <add>, %97, %cst_54 [1] : vector<32x128xf32> to vector<32xf32>
    %99 = vector.shape_cast %98 : vector<32xf32> to vector<32x1xf32>
    %cst_55 = arith.constant 1.280000e+02 : f32
    %100 = vector.broadcast %cst_55 : f32 to vector<32x1xf32>
    %101 = arith.divf %99, %100 : vector<32x1xf32>
    %cst_56 = arith.constant 1.000000e-03 : f32
    %102 = vector.broadcast %cst_56 : f32 to vector<32x1xf32>
    %103 = arith.addf %101, %102 : vector<32x1xf32>
    %104 = math.rsqrt %103 : vector<32x1xf32>
    %c0_57 = arith.constant 0 : index
    %c0_58 = arith.constant 0 : index
    %105 = vector.load %arg9[%c0_57, %c0_58] : memref<32x1xf32, #tpu.memory_space<vmem>>, vector<32x1xf32>
    %106 = arith.mulf %105, %104 : vector<32x1xf32>
    %107 = vector.broadcast %106 : vector<32x1xf32> to vector<32x128xf32>
    %108 = arith.mulf %96, %107 : vector<32x128xf32>
    %c0_59 = arith.constant 0 : index
    %c0_60 = arith.constant 0 : index
    %109 = vector.load %arg10[%c0_59, %c0_60] : memref<32x1xf32, #tpu.memory_space<vmem>>, vector<32x1xf32>
    %110 = vector.broadcast %109 : vector<32x1xf32> to vector<32x128xf32>
    %111 = arith.addf %108, %110 : vector<32x128xf32>
    %cst_61 = arith.constant 0.000000e+00 : f32
    %112 = vector.broadcast %cst_61 : f32 to vector<32x128xf32>
    %113 = arith.maximumf %111, %112 : vector<32x128xf32>
    %c0_62 = arith.constant 0 : index
    %c0_63 = arith.constant 0 : index
    %114 = vector.load %arg7[%c0_62, %c0_63] : memref<8x32xf32, #tpu.memory_space<vmem>>, vector<8x32xf32>
    %cst_64 = arith.constant dense<0.000000e+00> : vector<8x128xf32>
    %115 = tpu.matmul %114, %113, %cst_64 {dimension_numbers = #tpu.dot_dimension_numbers<[1], [0], [0], [1], [0, 0, 1, 1], [], []>} : vector<8x32xf32>, vector<32x128xf32>, vector<8x128xf32> -> vector<8x128xf32>
    %c0_65 = arith.constant 0 : index
    %c0_66 = arith.constant 0 : index
    %116 = vector.load %arg8[%c0_65, %c0_66] : memref<8x1xf32, #tpu.memory_space<vmem>>, vector<8x1xf32>
    %117 = vector.broadcast %116 : vector<8x1xf32> to vector<8x128xf32>
    %118 = arith.addf %115, %117 : vector<8x128xf32>
    %cst_67 = arith.constant dense<0xFF800000> : vector<8xf32>
    %119 = vector.multi_reduction <maximumf>, %118, %cst_67 [1] : vector<8x128xf32> to vector<8xf32>
    %120 = vector.shape_cast %119 : vector<8xf32> to vector<8x1xf32>
    %121 = vector.broadcast %120 : vector<8x1xf32> to vector<8x128xf32>
    %122 = arith.subf %118, %121 : vector<8x128xf32>
    %123 = math.exp %122 : vector<8x128xf32>
    %cst_68 = arith.constant dense<0.000000e+00> : vector<8xf32>
    %124 = vector.multi_reduction <add>, %123, %cst_68 [1] : vector<8x128xf32> to vector<8xf32>
    %125 = vector.shape_cast %124 : vector<8xf32> to vector<8x1xf32>
    %126 = tpu.reciprocal %125 {approx = true} : vector<8x1xf32> -> vector<8x1xf32>
    %127 = vector.broadcast %126 : vector<8x1xf32> to vector<8x128xf32>
    %128 = arith.mulf %123, %127 : vector<8x128xf32>
    %cst_69 = arith.constant dense<0.000000e+00> : vector<32x8xf32>
    %129 = tpu.matmul %90, %128, %cst_69 {dimension_numbers = #tpu.dot_dimension_numbers<[1], [1], [0], [0], [0, 0, 1, 0], [], []>} : vector<32x128xf32>, vector<8x128xf32>, vector<32x8xf32> -> vector<32x8xf32>
    %cst_70 = arith.constant dense<0.000000e+00> : vector<32xf32>
    %130 = vector.multi_reduction <add>, %129, %cst_70 [1] : vector<32x8xf32> to vector<32xf32>
    %131 = vector.shape_cast %130 : vector<32xf32> to vector<32x1xf32>
    %cst_71 = arith.constant 8.000000e+00 : f32
    %132 = vector.broadcast %cst_71 : f32 to vector<32x1xf32>
    %133 = arith.divf %131, %132 : vector<32x1xf32>
    %134 = vector.broadcast %133 : vector<32x1xf32> to vector<32x8xf32>
    %135 = arith.subf %129, %134 : vector<32x8xf32>
    %136 = arith.mulf %135, %135 : vector<32x8xf32>
    %cst_72 = arith.constant dense<0.000000e+00> : vector<32xf32>
    %137 = vector.multi_reduction <add>, %136, %cst_72 [1] : vector<32x8xf32> to vector<32xf32>
    %138 = vector.shape_cast %137 : vector<32xf32> to vector<32x1xf32>
    %cst_73 = arith.constant 8.000000e+00 : f32
    %139 = vector.broadcast %cst_73 : f32 to vector<32x1xf32>
    %140 = arith.divf %138, %139 : vector<32x1xf32>
    %cst_74 = arith.constant 1.000000e-03 : f32
    %141 = vector.broadcast %cst_74 : f32 to vector<32x1xf32>
    %142 = arith.addf %140, %141 : vector<32x1xf32>
    %143 = math.rsqrt %142 : vector<32x1xf32>
    %c0_75 = arith.constant 0 : index
    %c0_76 = arith.constant 0 : index
    %c0_77 = arith.constant 0 : index
    %144 = vector.load %arg13[%c0_75, %c0_76, %c0_77] : memref<3x32x1xf32, #tpu.memory_space<vmem>>, vector<1x32x1xf32>
    %145 = vector.shape_cast %144 : vector<1x32x1xf32> to vector<32x1xf32>
    %146 = arith.mulf %145, %143 : vector<32x1xf32>
    %147 = vector.broadcast %146 : vector<32x1xf32> to vector<32x8xf32>
    %148 = arith.mulf %135, %147 : vector<32x8xf32>
    %c0_78 = arith.constant 0 : index
    %c0_79 = arith.constant 0 : index
    %c0_80 = arith.constant 0 : index
    %149 = vector.load %arg14[%c0_78, %c0_79, %c0_80] : memref<3x32x1xf32, #tpu.memory_space<vmem>>, vector<1x32x1xf32>
    %150 = vector.shape_cast %149 : vector<1x32x1xf32> to vector<32x1xf32>
    %151 = vector.broadcast %150 : vector<32x1xf32> to vector<32x8xf32>
    %152 = arith.addf %148, %151 : vector<32x8xf32>
    %cst_81 = arith.constant 0.000000e+00 : f32
    %153 = vector.broadcast %cst_81 : f32 to vector<32x8xf32>
    %154 = arith.maximumf %152, %153 : vector<32x8xf32>
    %c0_82 = arith.constant 0 : index
    %c0_83 = arith.constant 0 : index
    %c0_84 = arith.constant 0 : index
    %155 = vector.load %arg11[%c0_82, %c0_83, %c0_84] : memref<3x32x32xf32, #tpu.memory_space<vmem>>, vector<1x32x32xf32>
    %156 = vector.shape_cast %155 : vector<1x32x32xf32> to vector<32x32xf32>
    %cst_85 = arith.constant dense<0.000000e+00> : vector<32x8xf32>
    %157 = tpu.matmul %156, %154, %cst_85 {dimension_numbers = #tpu.dot_dimension_numbers<[1], [0], [0], [1], [0, 0, 1, 1], [], []>} : vector<32x32xf32>, vector<32x8xf32>, vector<32x8xf32> -> vector<32x8xf32>
    %c0_86 = arith.constant 0 : index
    %c0_87 = arith.constant 0 : index
    %c0_88 = arith.constant 0 : index
    %158 = vector.load %arg12[%c0_86, %c0_87, %c0_88] : memref<3x32x1xf32, #tpu.memory_space<vmem>>, vector<1x32x1xf32>
    %159 = vector.shape_cast %158 : vector<1x32x1xf32> to vector<32x1xf32>
    %160 = vector.broadcast %159 : vector<32x1xf32> to vector<32x8xf32>
    %161 = arith.addf %157, %160 : vector<32x8xf32>
    %c0_89 = arith.constant 0 : index
    %c0_90 = arith.constant 0 : index
    %c0_91 = arith.constant 0 : index
    %162 = vector.load %arg17[%c0_89, %c0_90, %c0_91] : memref<3x1x8xf32, #tpu.memory_space<vmem>>, vector<1x1x8xf32>
    %163 = vector.shape_cast %162 : vector<1x1x8xf32> to vector<1x8xf32>
    %164 = vector.broadcast %163 : vector<1x8xf32> to vector<32x8xf32>
    %165 = arith.mulf %161, %164 : vector<32x8xf32>
    %c0_92 = arith.constant 0 : index
    %c0_93 = arith.constant 0 : index
    %c0_94 = arith.constant 0 : index
    %166 = vector.load %arg18[%c0_92, %c0_93, %c0_94] : memref<3x1x8xf32, #tpu.memory_space<vmem>>, vector<1x1x8xf32>
    %167 = vector.shape_cast %166 : vector<1x1x8xf32> to vector<1x8xf32>
    %168 = vector.broadcast %167 : vector<1x8xf32> to vector<32x8xf32>
    %169 = arith.addf %165, %168 : vector<32x8xf32>
    %cst_95 = arith.constant 0.000000e+00 : f32
    %170 = vector.broadcast %cst_95 : f32 to vector<32x8xf32>
    %171 = arith.maximumf %169, %170 : vector<32x8xf32>
    %c0_96 = arith.constant 0 : index
    %c0_97 = arith.constant 0 : index
    %c0_98 = arith.constant 0 : index
    %172 = vector.load %arg15[%c0_96, %c0_97, %c0_98] : memref<3x8x8xf32, #tpu.memory_space<vmem>>, vector<1x8x8xf32>
    %173 = vector.shape_cast %172 : vector<1x8x8xf32> to vector<8x8xf32>
    %cst_99 = arith.constant dense<0.000000e+00> : vector<32x8xf32>
    %174 = tpu.matmul %171, %173, %cst_99 {dimension_numbers = #tpu.dot_dimension_numbers<[1], [0], [0], [1], [0, 0, 1, 1], [], []>} : vector<32x8xf32>, vector<8x8xf32>, vector<32x8xf32> -> vector<32x8xf32>
    %175 = arith.addf %161, %174 : vector<32x8xf32>
    %c0_100 = arith.constant 0 : index
    %c0_101 = arith.constant 0 : index
    %c0_102 = arith.constant 0 : index
    %176 = vector.load %arg16[%c0_100, %c0_101, %c0_102] : memref<3x1x8xf32, #tpu.memory_space<vmem>>, vector<1x1x8xf32>
    %177 = vector.shape_cast %176 : vector<1x1x8xf32> to vector<1x8xf32>
    %178 = vector.broadcast %177 : vector<1x8xf32> to vector<32x8xf32>
    %179 = arith.addf %175, %178 : vector<32x8xf32>
    %cst_103 = arith.constant dense<0.000000e+00> : vector<32xf32>
    %180 = vector.multi_reduction <add>, %179, %cst_103 [1] : vector<32x8xf32> to vector<32xf32>
    %181 = vector.shape_cast %180 : vector<32xf32> to vector<32x1xf32>
    %cst_104 = arith.constant 8.000000e+00 : f32
    %182 = vector.broadcast %cst_104 : f32 to vector<32x1xf32>
    %183 = arith.divf %181, %182 : vector<32x1xf32>
    %184 = vector.broadcast %183 : vector<32x1xf32> to vector<32x8xf32>
    %185 = arith.subf %179, %184 : vector<32x8xf32>
    %186 = arith.mulf %185, %185 : vector<32x8xf32>
    %cst_105 = arith.constant dense<0.000000e+00> : vector<32xf32>
    %187 = vector.multi_reduction <add>, %186, %cst_105 [1] : vector<32x8xf32> to vector<32xf32>
    %188 = vector.shape_cast %187 : vector<32xf32> to vector<32x1xf32>
    %cst_106 = arith.constant 8.000000e+00 : f32
    %189 = vector.broadcast %cst_106 : f32 to vector<32x1xf32>
    %190 = arith.divf %188, %189 : vector<32x1xf32>
    %cst_107 = arith.constant 1.000000e-03 : f32
    %191 = vector.broadcast %cst_107 : f32 to vector<32x1xf32>
    %192 = arith.addf %190, %191 : vector<32x1xf32>
    %193 = math.rsqrt %192 : vector<32x1xf32>
    %c0_108 = arith.constant 0 : index
    %c0_109 = arith.constant 0 : index
    %c0_110 = arith.constant 0 : index
    %194 = vector.load %arg21[%c0_108, %c0_109, %c0_110] : memref<3x32x1xf32, #tpu.memory_space<vmem>>, vector<1x32x1xf32>
    %195 = vector.shape_cast %194 : vector<1x32x1xf32> to vector<32x1xf32>
    %196 = arith.mulf %195, %193 : vector<32x1xf32>
    %197 = vector.broadcast %196 : vector<32x1xf32> to vector<32x8xf32>
    %198 = arith.mulf %185, %197 : vector<32x8xf32>
    %c0_111 = arith.constant 0 : index
    %c0_112 = arith.constant 0 : index
    %c0_113 = arith.constant 0 : index
    %199 = vector.load %arg22[%c0_111, %c0_112, %c0_113] : memref<3x32x1xf32, #tpu.memory_space<vmem>>, vector<1x32x1xf32>
    %200 = vector.shape_cast %199 : vector<1x32x1xf32> to vector<32x1xf32>
    %201 = vector.broadcast %200 : vector<32x1xf32> to vector<32x8xf32>
    %202 = arith.addf %198, %201 : vector<32x8xf32>
    %cst_114 = arith.constant 0.000000e+00 : f32
    %203 = vector.broadcast %cst_114 : f32 to vector<32x8xf32>
    %204 = arith.maximumf %202, %203 : vector<32x8xf32>
    %c0_115 = arith.constant 0 : index
    %c0_116 = arith.constant 0 : index
    %c0_117 = arith.constant 0 : index
    %205 = vector.load %arg19[%c0_115, %c0_116, %c0_117] : memref<3x32x32xf32, #tpu.memory_space<vmem>>, vector<1x32x32xf32>
    %206 = vector.shape_cast %205 : vector<1x32x32xf32> to vector<32x32xf32>
    %cst_118 = arith.constant dense<0.000000e+00> : vector<32x8xf32>
    %207 = tpu.matmul %206, %204, %cst_118 {dimension_numbers = #tpu.dot_dimension_numbers<[1], [0], [0], [1], [0, 0, 1, 1], [], []>} : vector<32x32xf32>, vector<32x8xf32>, vector<32x8xf32> -> vector<32x8xf32>
    %208 = arith.addf %129, %207 : vector<32x8xf32>
    %c0_119 = arith.constant 0 : index
    %c0_120 = arith.constant 0 : index
    %c0_121 = arith.constant 0 : index
    %209 = vector.load %arg20[%c0_119, %c0_120, %c0_121] : memref<3x32x1xf32, #tpu.memory_space<vmem>>, vector<1x32x1xf32>
    %210 = vector.shape_cast %209 : vector<1x32x1xf32> to vector<32x1xf32>
    %211 = vector.broadcast %210 : vector<32x1xf32> to vector<32x8xf32>
    %212 = arith.addf %208, %211 : vector<32x8xf32>
    %cst_122 = arith.constant dense<0.000000e+00> : vector<32xf32>
    %213 = vector.multi_reduction <add>, %212, %cst_122 [1] : vector<32x8xf32> to vector<32xf32>
    %214 = vector.shape_cast %213 : vector<32xf32> to vector<32x1xf32>
    %cst_123 = arith.constant 8.000000e+00 : f32
    %215 = vector.broadcast %cst_123 : f32 to vector<32x1xf32>
    %216 = arith.divf %214, %215 : vector<32x1xf32>
    %217 = vector.broadcast %216 : vector<32x1xf32> to vector<32x8xf32>
    %218 = arith.subf %212, %217 : vector<32x8xf32>
    %219 = arith.mulf %218, %218 : vector<32x8xf32>
    %cst_124 = arith.constant dense<0.000000e+00> : vector<32xf32>
    %220 = vector.multi_reduction <add>, %219, %cst_124 [1] : vector<32x8xf32> to vector<32xf32>
    %221 = vector.shape_cast %220 : vector<32xf32> to vector<32x1xf32>
    %cst_125 = arith.constant 8.000000e+00 : f32
    %222 = vector.broadcast %cst_125 : f32 to vector<32x1xf32>
    %223 = arith.divf %221, %222 : vector<32x1xf32>
    %cst_126 = arith.constant 1.000000e-03 : f32
    %224 = vector.broadcast %cst_126 : f32 to vector<32x1xf32>
    %225 = arith.addf %223, %224 : vector<32x1xf32>
    %226 = math.rsqrt %225 : vector<32x1xf32>
    %c1_127 = arith.constant 1 : index
    %c0_128 = arith.constant 0 : index
    %c0_129 = arith.constant 0 : index
    %227 = vector.load %arg13[%c1_127, %c0_128, %c0_129] : memref<3x32x1xf32, #tpu.memory_space<vmem>>, vector<1x32x1xf32>
    %228 = vector.shape_cast %227 : vector<1x32x1xf32> to vector<32x1xf32>
    %229 = arith.mulf %228, %226 : vector<32x1xf32>
    %230 = vector.broadcast %229 : vector<32x1xf32> to vector<32x8xf32>
    %231 = arith.mulf %218, %230 : vector<32x8xf32>
    %c1_130 = arith.constant 1 : index
    %c0_131 = arith.constant 0 : index
    %c0_132 = arith.constant 0 : index
    %232 = vector.load %arg14[%c1_130, %c0_131, %c0_132] : memref<3x32x1xf32, #tpu.memory_space<vmem>>, vector<1x32x1xf32>
    %233 = vector.shape_cast %232 : vector<1x32x1xf32> to vector<32x1xf32>
    %234 = vector.broadcast %233 : vector<32x1xf32> to vector<32x8xf32>
    %235 = arith.addf %231, %234 : vector<32x8xf32>
    %cst_133 = arith.constant 0.000000e+00 : f32
    %236 = vector.broadcast %cst_133 : f32 to vector<32x8xf32>
    %237 = arith.maximumf %235, %236 : vector<32x8xf32>
    %c1_134 = arith.constant 1 : index
    %c0_135 = arith.constant 0 : index
    %c0_136 = arith.constant 0 : index
    %238 = vector.load %arg11[%c1_134, %c0_135, %c0_136] : memref<3x32x32xf32, #tpu.memory_space<vmem>>, vector<1x32x32xf32>
    %239 = vector.shape_cast %238 : vector<1x32x32xf32> to vector<32x32xf32>
    %cst_137 = arith.constant dense<0.000000e+00> : vector<32x8xf32>
    %240 = tpu.matmul %239, %237, %cst_137 {dimension_numbers = #tpu.dot_dimension_numbers<[1], [0], [0], [1], [0, 0, 1, 1], [], []>} : vector<32x32xf32>, vector<32x8xf32>, vector<32x8xf32> -> vector<32x8xf32>
    %c1_138 = arith.constant 1 : index
    %c0_139 = arith.constant 0 : index
    %c0_140 = arith.constant 0 : index
    %241 = vector.load %arg12[%c1_138, %c0_139, %c0_140] : memref<3x32x1xf32, #tpu.memory_space<vmem>>, vector<1x32x1xf32>
    %242 = vector.shape_cast %241 : vector<1x32x1xf32> to vector<32x1xf32>
    %243 = vector.broadcast %242 : vector<32x1xf32> to vector<32x8xf32>
    %244 = arith.addf %240, %243 : vector<32x8xf32>
    %c1_141 = arith.constant 1 : index
    %c0_142 = arith.constant 0 : index
    %c0_143 = arith.constant 0 : index
    %245 = vector.load %arg17[%c1_141, %c0_142, %c0_143] : memref<3x1x8xf32, #tpu.memory_space<vmem>>, vector<1x1x8xf32>
    %246 = vector.shape_cast %245 : vector<1x1x8xf32> to vector<1x8xf32>
    %247 = vector.broadcast %246 : vector<1x8xf32> to vector<32x8xf32>
    %248 = arith.mulf %244, %247 : vector<32x8xf32>
    %c1_144 = arith.constant 1 : index
    %c0_145 = arith.constant 0 : index
    %c0_146 = arith.constant 0 : index
    %249 = vector.load %arg18[%c1_144, %c0_145, %c0_146] : memref<3x1x8xf32, #tpu.memory_space<vmem>>, vector<1x1x8xf32>
    %250 = vector.shape_cast %249 : vector<1x1x8xf32> to vector<1x8xf32>
    %251 = vector.broadcast %250 : vector<1x8xf32> to vector<32x8xf32>
    %252 = arith.addf %248, %251 : vector<32x8xf32>
    %cst_147 = arith.constant 0.000000e+00 : f32
    %253 = vector.broadcast %cst_147 : f32 to vector<32x8xf32>
    %254 = arith.maximumf %252, %253 : vector<32x8xf32>
    %c1_148 = arith.constant 1 : index
    %c0_149 = arith.constant 0 : index
    %c0_150 = arith.constant 0 : index
    %255 = vector.load %arg15[%c1_148, %c0_149, %c0_150] : memref<3x8x8xf32, #tpu.memory_space<vmem>>, vector<1x8x8xf32>
    %256 = vector.shape_cast %255 : vector<1x8x8xf32> to vector<8x8xf32>
    %cst_151 = arith.constant dense<0.000000e+00> : vector<32x8xf32>
    %257 = tpu.matmul %254, %256, %cst_151 {dimension_numbers = #tpu.dot_dimension_numbers<[1], [0], [0], [1], [0, 0, 1, 1], [], []>} : vector<32x8xf32>, vector<8x8xf32>, vector<32x8xf32> -> vector<32x8xf32>
    %258 = arith.addf %244, %257 : vector<32x8xf32>
    %c1_152 = arith.constant 1 : index
    %c0_153 = arith.constant 0 : index
    %c0_154 = arith.constant 0 : index
    %259 = vector.load %arg16[%c1_152, %c0_153, %c0_154] : memref<3x1x8xf32, #tpu.memory_space<vmem>>, vector<1x1x8xf32>
    %260 = vector.shape_cast %259 : vector<1x1x8xf32> to vector<1x8xf32>
    %261 = vector.broadcast %260 : vector<1x8xf32> to vector<32x8xf32>
    %262 = arith.addf %258, %261 : vector<32x8xf32>
    %cst_155 = arith.constant dense<0.000000e+00> : vector<32xf32>
    %263 = vector.multi_reduction <add>, %262, %cst_155 [1] : vector<32x8xf32> to vector<32xf32>
    %264 = vector.shape_cast %263 : vector<32xf32> to vector<32x1xf32>
    %cst_156 = arith.constant 8.000000e+00 : f32
    %265 = vector.broadcast %cst_156 : f32 to vector<32x1xf32>
    %266 = arith.divf %264, %265 : vector<32x1xf32>
    %267 = vector.broadcast %266 : vector<32x1xf32> to vector<32x8xf32>
    %268 = arith.subf %262, %267 : vector<32x8xf32>
    %269 = arith.mulf %268, %268 : vector<32x8xf32>
    %cst_157 = arith.constant dense<0.000000e+00> : vector<32xf32>
    %270 = vector.multi_reduction <add>, %269, %cst_157 [1] : vector<32x8xf32> to vector<32xf32>
    %271 = vector.shape_cast %270 : vector<32xf32> to vector<32x1xf32>
    %cst_158 = arith.constant 8.000000e+00 : f32
    %272 = vector.broadcast %cst_158 : f32 to vector<32x1xf32>
    %273 = arith.divf %271, %272 : vector<32x1xf32>
    %cst_159 = arith.constant 1.000000e-03 : f32
    %274 = vector.broadcast %cst_159 : f32 to vector<32x1xf32>
    %275 = arith.addf %273, %274 : vector<32x1xf32>
    %276 = math.rsqrt %275 : vector<32x1xf32>
    %c1_160 = arith.constant 1 : index
    %c0_161 = arith.constant 0 : index
    %c0_162 = arith.constant 0 : index
    %277 = vector.load %arg21[%c1_160, %c0_161, %c0_162] : memref<3x32x1xf32, #tpu.memory_space<vmem>>, vector<1x32x1xf32>
    %278 = vector.shape_cast %277 : vector<1x32x1xf32> to vector<32x1xf32>
    %279 = arith.mulf %278, %276 : vector<32x1xf32>
    %280 = vector.broadcast %279 : vector<32x1xf32> to vector<32x8xf32>
    %281 = arith.mulf %268, %280 : vector<32x8xf32>
    %c1_163 = arith.constant 1 : index
    %c0_164 = arith.constant 0 : index
    %c0_165 = arith.constant 0 : index
    %282 = vector.load %arg22[%c1_163, %c0_164, %c0_165] : memref<3x32x1xf32, #tpu.memory_space<vmem>>, vector<1x32x1xf32>
    %283 = vector.shape_cast %282 : vector<1x32x1xf32> to vector<32x1xf32>
    %284 = vector.broadcast %283 : vector<32x1xf32> to vector<32x8xf32>
    %285 = arith.addf %281, %284 : vector<32x8xf32>
    %cst_166 = arith.constant 0.000000e+00 : f32
    %286 = vector.broadcast %cst_166 : f32 to vector<32x8xf32>
    %287 = arith.maximumf %285, %286 : vector<32x8xf32>
    %c1_167 = arith.constant 1 : index
    %c0_168 = arith.constant 0 : index
    %c0_169 = arith.constant 0 : index
    %288 = vector.load %arg19[%c1_167, %c0_168, %c0_169] : memref<3x32x32xf32, #tpu.memory_space<vmem>>, vector<1x32x32xf32>
    %289 = vector.shape_cast %288 : vector<1x32x32xf32> to vector<32x32xf32>
    %cst_170 = arith.constant dense<0.000000e+00> : vector<32x8xf32>
    %290 = tpu.matmul %289, %287, %cst_170 {dimension_numbers = #tpu.dot_dimension_numbers<[1], [0], [0], [1], [0, 0, 1, 1], [], []>} : vector<32x32xf32>, vector<32x8xf32>, vector<32x8xf32> -> vector<32x8xf32>
    %291 = arith.addf %212, %290 : vector<32x8xf32>
    %c1_171 = arith.constant 1 : index
    %c0_172 = arith.constant 0 : index
    %c0_173 = arith.constant 0 : index
    %292 = vector.load %arg20[%c1_171, %c0_172, %c0_173] : memref<3x32x1xf32, #tpu.memory_space<vmem>>, vector<1x32x1xf32>
    %293 = vector.shape_cast %292 : vector<1x32x1xf32> to vector<32x1xf32>
    %294 = vector.broadcast %293 : vector<32x1xf32> to vector<32x8xf32>
    %295 = arith.addf %291, %294 : vector<32x8xf32>
    %cst_174 = arith.constant dense<0.000000e+00> : vector<32xf32>
    %296 = vector.multi_reduction <add>, %295, %cst_174 [1] : vector<32x8xf32> to vector<32xf32>
    %297 = vector.shape_cast %296 : vector<32xf32> to vector<32x1xf32>
    %cst_175 = arith.constant 8.000000e+00 : f32
    %298 = vector.broadcast %cst_175 : f32 to vector<32x1xf32>
    %299 = arith.divf %297, %298 : vector<32x1xf32>
    %300 = vector.broadcast %299 : vector<32x1xf32> to vector<32x8xf32>
    %301 = arith.subf %295, %300 : vector<32x8xf32>
    %302 = arith.mulf %301, %301 : vector<32x8xf32>
    %cst_176 = arith.constant dense<0.000000e+00> : vector<32xf32>
    %303 = vector.multi_reduction <add>, %302, %cst_176 [1] : vector<32x8xf32> to vector<32xf32>
    %304 = vector.shape_cast %303 : vector<32xf32> to vector<32x1xf32>
    %cst_177 = arith.constant 8.000000e+00 : f32
    %305 = vector.broadcast %cst_177 : f32 to vector<32x1xf32>
    %306 = arith.divf %304, %305 : vector<32x1xf32>
    %cst_178 = arith.constant 1.000000e-03 : f32
    %307 = vector.broadcast %cst_178 : f32 to vector<32x1xf32>
    %308 = arith.addf %306, %307 : vector<32x1xf32>
    %309 = math.rsqrt %308 : vector<32x1xf32>
    %c2_179 = arith.constant 2 : index
    %c0_180 = arith.constant 0 : index
    %c0_181 = arith.constant 0 : index
    %310 = vector.load %arg13[%c2_179, %c0_180, %c0_181] : memref<3x32x1xf32, #tpu.memory_space<vmem>>, vector<1x32x1xf32>
    %311 = vector.shape_cast %310 : vector<1x32x1xf32> to vector<32x1xf32>
    %312 = arith.mulf %311, %309 : vector<32x1xf32>
    %313 = vector.broadcast %312 : vector<32x1xf32> to vector<32x8xf32>
    %314 = arith.mulf %301, %313 : vector<32x8xf32>
    %c2_182 = arith.constant 2 : index
    %c0_183 = arith.constant 0 : index
    %c0_184 = arith.constant 0 : index
    %315 = vector.load %arg14[%c2_182, %c0_183, %c0_184] : memref<3x32x1xf32, #tpu.memory_space<vmem>>, vector<1x32x1xf32>
    %316 = vector.shape_cast %315 : vector<1x32x1xf32> to vector<32x1xf32>
    %317 = vector.broadcast %316 : vector<32x1xf32> to vector<32x8xf32>
    %318 = arith.addf %314, %317 : vector<32x8xf32>
    %cst_185 = arith.constant 0.000000e+00 : f32
    %319 = vector.broadcast %cst_185 : f32 to vector<32x8xf32>
    %320 = arith.maximumf %318, %319 : vector<32x8xf32>
    %c2_186 = arith.constant 2 : index
    %c0_187 = arith.constant 0 : index
    %c0_188 = arith.constant 0 : index
    %321 = vector.load %arg11[%c2_186, %c0_187, %c0_188] : memref<3x32x32xf32, #tpu.memory_space<vmem>>, vector<1x32x32xf32>
    %322 = vector.shape_cast %321 : vector<1x32x32xf32> to vector<32x32xf32>
    %cst_189 = arith.constant dense<0.000000e+00> : vector<32x8xf32>
    %323 = tpu.matmul %322, %320, %cst_189 {dimension_numbers = #tpu.dot_dimension_numbers<[1], [0], [0], [1], [0, 0, 1, 1], [], []>} : vector<32x32xf32>, vector<32x8xf32>, vector<32x8xf32> -> vector<32x8xf32>
    %c2_190 = arith.constant 2 : index
    %c0_191 = arith.constant 0 : index
    %c0_192 = arith.constant 0 : index
    %324 = vector.load %arg12[%c2_190, %c0_191, %c0_192] : memref<3x32x1xf32, #tpu.memory_space<vmem>>, vector<1x32x1xf32>
    %325 = vector.shape_cast %324 : vector<1x32x1xf32> to vector<32x1xf32>
    %326 = vector.broadcast %325 : vector<32x1xf32> to vector<32x8xf32>
    %327 = arith.addf %323, %326 : vector<32x8xf32>
    %c2_193 = arith.constant 2 : index
    %c0_194 = arith.constant 0 : index
    %c0_195 = arith.constant 0 : index
    %328 = vector.load %arg17[%c2_193, %c0_194, %c0_195] : memref<3x1x8xf32, #tpu.memory_space<vmem>>, vector<1x1x8xf32>
    %329 = vector.shape_cast %328 : vector<1x1x8xf32> to vector<1x8xf32>
    %330 = vector.broadcast %329 : vector<1x8xf32> to vector<32x8xf32>
    %331 = arith.mulf %327, %330 : vector<32x8xf32>
    %c2_196 = arith.constant 2 : index
    %c0_197 = arith.constant 0 : index
    %c0_198 = arith.constant 0 : index
    %332 = vector.load %arg18[%c2_196, %c0_197, %c0_198] : memref<3x1x8xf32, #tpu.memory_space<vmem>>, vector<1x1x8xf32>
    %333 = vector.shape_cast %332 : vector<1x1x8xf32> to vector<1x8xf32>
    %334 = vector.broadcast %333 : vector<1x8xf32> to vector<32x8xf32>
    %335 = arith.addf %331, %334 : vector<32x8xf32>
    %cst_199 = arith.constant 0.000000e+00 : f32
    %336 = vector.broadcast %cst_199 : f32 to vector<32x8xf32>
    %337 = arith.maximumf %335, %336 : vector<32x8xf32>
    %c2_200 = arith.constant 2 : index
    %c0_201 = arith.constant 0 : index
    %c0_202 = arith.constant 0 : index
    %338 = vector.load %arg15[%c2_200, %c0_201, %c0_202] : memref<3x8x8xf32, #tpu.memory_space<vmem>>, vector<1x8x8xf32>
    %339 = vector.shape_cast %338 : vector<1x8x8xf32> to vector<8x8xf32>
    %cst_203 = arith.constant dense<0.000000e+00> : vector<32x8xf32>
    %340 = tpu.matmul %337, %339, %cst_203 {dimension_numbers = #tpu.dot_dimension_numbers<[1], [0], [0], [1], [0, 0, 1, 1], [], []>} : vector<32x8xf32>, vector<8x8xf32>, vector<32x8xf32> -> vector<32x8xf32>
    %341 = arith.addf %327, %340 : vector<32x8xf32>
    %c2_204 = arith.constant 2 : index
    %c0_205 = arith.constant 0 : index
    %c0_206 = arith.constant 0 : index
    %342 = vector.load %arg16[%c2_204, %c0_205, %c0_206] : memref<3x1x8xf32, #tpu.memory_space<vmem>>, vector<1x1x8xf32>
    %343 = vector.shape_cast %342 : vector<1x1x8xf32> to vector<1x8xf32>
    %344 = vector.broadcast %343 : vector<1x8xf32> to vector<32x8xf32>
    %345 = arith.addf %341, %344 : vector<32x8xf32>
    %cst_207 = arith.constant dense<0.000000e+00> : vector<32xf32>
    %346 = vector.multi_reduction <add>, %345, %cst_207 [1] : vector<32x8xf32> to vector<32xf32>
    %347 = vector.shape_cast %346 : vector<32xf32> to vector<32x1xf32>
    %cst_208 = arith.constant 8.000000e+00 : f32
    %348 = vector.broadcast %cst_208 : f32 to vector<32x1xf32>
    %349 = arith.divf %347, %348 : vector<32x1xf32>
    %350 = vector.broadcast %349 : vector<32x1xf32> to vector<32x8xf32>
    %351 = arith.subf %345, %350 : vector<32x8xf32>
    %352 = arith.mulf %351, %351 : vector<32x8xf32>
    %cst_209 = arith.constant dense<0.000000e+00> : vector<32xf32>
    %353 = vector.multi_reduction <add>, %352, %cst_209 [1] : vector<32x8xf32> to vector<32xf32>
    %354 = vector.shape_cast %353 : vector<32xf32> to vector<32x1xf32>
    %cst_210 = arith.constant 8.000000e+00 : f32
    %355 = vector.broadcast %cst_210 : f32 to vector<32x1xf32>
    %356 = arith.divf %354, %355 : vector<32x1xf32>
    %cst_211 = arith.constant 1.000000e-03 : f32
    %357 = vector.broadcast %cst_211 : f32 to vector<32x1xf32>
    %358 = arith.addf %356, %357 : vector<32x1xf32>
    %359 = math.rsqrt %358 : vector<32x1xf32>
    %c2_212 = arith.constant 2 : index
    %c0_213 = arith.constant 0 : index
    %c0_214 = arith.constant 0 : index
    %360 = vector.load %arg21[%c2_212, %c0_213, %c0_214] : memref<3x32x1xf32, #tpu.memory_space<vmem>>, vector<1x32x1xf32>
    %361 = vector.shape_cast %360 : vector<1x32x1xf32> to vector<32x1xf32>
    %362 = arith.mulf %361, %359 : vector<32x1xf32>
    %363 = vector.broadcast %362 : vector<32x1xf32> to vector<32x8xf32>
    %364 = arith.mulf %351, %363 : vector<32x8xf32>
    %c2_215 = arith.constant 2 : index
    %c0_216 = arith.constant 0 : index
    %c0_217 = arith.constant 0 : index
    %365 = vector.load %arg22[%c2_215, %c0_216, %c0_217] : memref<3x32x1xf32, #tpu.memory_space<vmem>>, vector<1x32x1xf32>
    %366 = vector.shape_cast %365 : vector<1x32x1xf32> to vector<32x1xf32>
    %367 = vector.broadcast %366 : vector<32x1xf32> to vector<32x8xf32>
    %368 = arith.addf %364, %367 : vector<32x8xf32>
    %cst_218 = arith.constant 0.000000e+00 : f32
    %369 = vector.broadcast %cst_218 : f32 to vector<32x8xf32>
    %370 = arith.maximumf %368, %369 : vector<32x8xf32>
    %c2_219 = arith.constant 2 : index
    %c0_220 = arith.constant 0 : index
    %c0_221 = arith.constant 0 : index
    %371 = vector.load %arg19[%c2_219, %c0_220, %c0_221] : memref<3x32x32xf32, #tpu.memory_space<vmem>>, vector<1x32x32xf32>
    %372 = vector.shape_cast %371 : vector<1x32x32xf32> to vector<32x32xf32>
    %cst_222 = arith.constant dense<0.000000e+00> : vector<32x8xf32>
    %373 = tpu.matmul %372, %370, %cst_222 {dimension_numbers = #tpu.dot_dimension_numbers<[1], [0], [0], [1], [0, 0, 1, 1], [], []>} : vector<32x32xf32>, vector<32x8xf32>, vector<32x8xf32> -> vector<32x8xf32>
    %374 = arith.addf %295, %373 : vector<32x8xf32>
    %c2_223 = arith.constant 2 : index
    %c0_224 = arith.constant 0 : index
    %c0_225 = arith.constant 0 : index
    %375 = vector.load %arg20[%c2_223, %c0_224, %c0_225] : memref<3x32x1xf32, #tpu.memory_space<vmem>>, vector<1x32x1xf32>
    %376 = vector.shape_cast %375 : vector<1x32x1xf32> to vector<32x1xf32>
    %377 = vector.broadcast %376 : vector<32x1xf32> to vector<32x8xf32>
    %378 = arith.addf %374, %377 : vector<32x8xf32>
    %c0_226 = arith.constant 0 : index
    %c0_227 = arith.constant 0 : index
    %379 = vector.load %arg25[%c0_226, %c0_227] : memref<32x1xf32, #tpu.memory_space<vmem>>, vector<32x1xf32>
    %380 = arith.mulf %379, %104 : vector<32x1xf32>
    %381 = vector.broadcast %380 : vector<32x1xf32> to vector<32x128xf32>
    %382 = arith.mulf %96, %381 : vector<32x128xf32>
    %c0_228 = arith.constant 0 : index
    %c0_229 = arith.constant 0 : index
    %383 = vector.load %arg26[%c0_228, %c0_229] : memref<32x1xf32, #tpu.memory_space<vmem>>, vector<32x1xf32>
    %384 = vector.broadcast %383 : vector<32x1xf32> to vector<32x128xf32>
    %385 = arith.addf %382, %384 : vector<32x128xf32>
    %cst_230 = arith.constant 0.000000e+00 : f32
    %386 = vector.broadcast %cst_230 : f32 to vector<32x128xf32>
    %387 = arith.maximumf %385, %386 : vector<32x128xf32>
    %c0_231 = arith.constant 0 : index
    %c0_232 = arith.constant 0 : index
    %388 = vector.load %arg23[%c0_231, %c0_232] : memref<8x32xf32, #tpu.memory_space<vmem>>, vector<8x32xf32>
    %cst_233 = arith.constant dense<0.000000e+00> : vector<8x128xf32>
    %389 = tpu.matmul %388, %387, %cst_233 {dimension_numbers = #tpu.dot_dimension_numbers<[1], [0], [0], [1], [0, 0, 1, 1], [], []>} : vector<8x32xf32>, vector<32x128xf32>, vector<8x128xf32> -> vector<8x128xf32>
    %c0_234 = arith.constant 0 : index
    %c0_235 = arith.constant 0 : index
    %390 = vector.load %arg24[%c0_234, %c0_235] : memref<8x1xf32, #tpu.memory_space<vmem>>, vector<8x1xf32>
    %391 = vector.broadcast %390 : vector<8x1xf32> to vector<8x128xf32>
    %392 = arith.addf %389, %391 : vector<8x128xf32>
    %cst_236 = arith.constant dense<0xFF800000> : vector<128xf32>
    %393 = vector.multi_reduction <maximumf>, %392, %cst_236 [0] : vector<8x128xf32> to vector<128xf32>
    %394 = vector.shape_cast %393 : vector<128xf32> to vector<1x128xf32>
    %395 = vector.broadcast %394 : vector<1x128xf32> to vector<8x128xf32>
    %396 = arith.subf %392, %395 : vector<8x128xf32>
    %397 = math.exp %396 : vector<8x128xf32>
    %cst_237 = arith.constant dense<0.000000e+00> : vector<128xf32>
    %398 = vector.multi_reduction <add>, %397, %cst_237 [0] : vector<8x128xf32> to vector<128xf32>
    %399 = vector.shape_cast %398 : vector<128xf32> to vector<1x128xf32>
    %400 = tpu.reciprocal %399 {approx = true} : vector<1x128xf32> -> vector<1x128xf32>
    %401 = vector.broadcast %400 : vector<1x128xf32> to vector<8x128xf32>
    %402 = arith.mulf %397, %401 : vector<8x128xf32>
    %cst_238 = arith.constant dense<0.000000e+00> : vector<32x128xf32>
    %403 = tpu.matmul %378, %402, %cst_238 {dimension_numbers = #tpu.dot_dimension_numbers<[1], [0], [0], [1], [0, 0, 1, 1], [], []>} : vector<32x8xf32>, vector<8x128xf32>, vector<32x128xf32> -> vector<32x128xf32>
    %c0_239 = arith.constant 0 : index
    %c0_240 = arith.constant 0 : index
    %404 = vector.load %arg27[%c0_239, %c0_240] : memref<32x32xf32, #tpu.memory_space<vmem>>, vector<32x32xf32>
    %cst_241 = arith.constant dense<0.000000e+00> : vector<32x128xf32>
    %405 = tpu.matmul %404, %90, %cst_241 {dimension_numbers = #tpu.dot_dimension_numbers<[1], [0], [0], [1], [0, 0, 1, 1], [], []>} : vector<32x32xf32>, vector<32x128xf32>, vector<32x128xf32> -> vector<32x128xf32>
    %c0_242 = arith.constant 0 : index
    %c0_243 = arith.constant 0 : index
    %406 = vector.load %arg28[%c0_242, %c0_243] : memref<32x32xf32, #tpu.memory_space<vmem>>, vector<32x32xf32>
    %cst_244 = arith.constant dense<0.000000e+00> : vector<32x128xf32>
    %407 = tpu.matmul %406, %403, %cst_244 {dimension_numbers = #tpu.dot_dimension_numbers<[1], [0], [0], [1], [0, 0, 1, 1], [], []>} : vector<32x32xf32>, vector<32x128xf32>, vector<32x128xf32> -> vector<32x128xf32>
    %408 = arith.addf %405, %407 : vector<32x128xf32>
    %c0_245 = arith.constant 0 : index
    %c0_246 = arith.constant 0 : index
    %409 = vector.load %arg29[%c0_245, %c0_246] : memref<32x1xf32, #tpu.memory_space<vmem>>, vector<32x1xf32>
    %410 = vector.broadcast %409 : vector<32x1xf32> to vector<32x128xf32>
    %411 = arith.addf %408, %410 : vector<32x128xf32>
    %c0_247 = arith.constant 0 : index
    %c0_248 = arith.constant 0 : index
    %c0_249 = arith.constant 0 : index
    %412 = vector.load %arg30[%c0_247, %c0_248, %c0_249] : memref<2x32x32xf32, #tpu.memory_space<vmem>>, vector<1x32x32xf32>
    %413 = vector.shape_cast %412 : vector<1x32x32xf32> to vector<32x32xf32>
    %cst_250 = arith.constant dense<0.000000e+00> : vector<32x128xf32>
    %414 = tpu.matmul %413, %411, %cst_250 {dimension_numbers = #tpu.dot_dimension_numbers<[1], [0], [0], [1], [0, 0, 1, 1], [], []>} : vector<32x32xf32>, vector<32x128xf32>, vector<32x128xf32> -> vector<32x128xf32>
    %c0_251 = arith.constant 0 : index
    %c0_252 = arith.constant 0 : index
    %c0_253 = arith.constant 0 : index
    %415 = vector.load %arg31[%c0_251, %c0_252, %c0_253] : memref<2x32x1xf32, #tpu.memory_space<vmem>>, vector<1x32x1xf32>
    %416 = vector.shape_cast %415 : vector<1x32x1xf32> to vector<32x1xf32>
    %c0_254 = arith.constant 0 : index
    %c0_255 = arith.constant 0 : index
    %c0_256 = arith.constant 0 : index
    %417 = vector.load %arg32[%c0_254, %c0_255, %c0_256] : memref<2x32x1xf32, #tpu.memory_space<vmem>>, vector<1x32x1xf32>
    %418 = vector.shape_cast %417 : vector<1x32x1xf32> to vector<32x1xf32>
    %cst_257 = arith.constant dense<0.000000e+00> : vector<32xf32>
    %419 = vector.multi_reduction <add>, %414, %cst_257 [1] : vector<32x128xf32> to vector<32xf32>
    %420 = vector.shape_cast %419 : vector<32xf32> to vector<32x1xf32>
    %cst_258 = arith.constant 1.280000e+02 : f32
    %421 = vector.broadcast %cst_258 : f32 to vector<32x1xf32>
    %422 = arith.divf %420, %421 : vector<32x1xf32>
    %423 = vector.broadcast %422 : vector<32x1xf32> to vector<32x128xf32>
    %424 = arith.subf %414, %423 : vector<32x128xf32>
    %425 = arith.mulf %424, %424 : vector<32x128xf32>
    %cst_259 = arith.constant dense<0.000000e+00> : vector<32xf32>
    %426 = vector.multi_reduction <add>, %425, %cst_259 [1] : vector<32x128xf32> to vector<32xf32>
    %427 = vector.shape_cast %426 : vector<32xf32> to vector<32x1xf32>
    %cst_260 = arith.constant 0.00787401571 : f32
    %428 = vector.broadcast %cst_260 : f32 to vector<32x1xf32>
    %429 = arith.mulf %427, %428 : vector<32x1xf32>
    %cst_261 = arith.constant 1.000000e-03 : f32
    %430 = vector.broadcast %cst_261 : f32 to vector<32x1xf32>
    %431 = arith.addf %429, %430 : vector<32x1xf32>
    %432 = math.rsqrt %431 : vector<32x1xf32>
    %433 = arith.mulf %416, %432 : vector<32x1xf32>
    %434 = vector.broadcast %433 : vector<32x1xf32> to vector<32x128xf32>
    %435 = arith.mulf %424, %434 : vector<32x128xf32>
    %436 = vector.broadcast %418 : vector<32x1xf32> to vector<32x128xf32>
    %437 = arith.addf %435, %436 : vector<32x128xf32>
    %cst_262 = arith.constant 0.000000e+00 : f32
    %438 = vector.broadcast %cst_262 : f32 to vector<32x128xf32>
    %439 = arith.maximumf %437, %438 : vector<32x128xf32>
    %c1_263 = arith.constant 1 : index
    %c0_264 = arith.constant 0 : index
    %c0_265 = arith.constant 0 : index
    %440 = vector.load %arg30[%c1_263, %c0_264, %c0_265] : memref<2x32x32xf32, #tpu.memory_space<vmem>>, vector<1x32x32xf32>
    %441 = vector.shape_cast %440 : vector<1x32x32xf32> to vector<32x32xf32>
    %cst_266 = arith.constant dense<0.000000e+00> : vector<32x128xf32>
    %442 = tpu.matmul %441, %439, %cst_266 {dimension_numbers = #tpu.dot_dimension_numbers<[1], [0], [0], [1], [0, 0, 1, 1], [], []>} : vector<32x32xf32>, vector<32x128xf32>, vector<32x128xf32> -> vector<32x128xf32>
    %c1_267 = arith.constant 1 : index
    %c0_268 = arith.constant 0 : index
    %c0_269 = arith.constant 0 : index
    %443 = vector.load %arg31[%c1_267, %c0_268, %c0_269] : memref<2x32x1xf32, #tpu.memory_space<vmem>>, vector<1x32x1xf32>
    %444 = vector.shape_cast %443 : vector<1x32x1xf32> to vector<32x1xf32>
    %c1_270 = arith.constant 1 : index
    %c0_271 = arith.constant 0 : index
    %c0_272 = arith.constant 0 : index
    %445 = vector.load %arg32[%c1_270, %c0_271, %c0_272] : memref<2x32x1xf32, #tpu.memory_space<vmem>>, vector<1x32x1xf32>
    %446 = vector.shape_cast %445 : vector<1x32x1xf32> to vector<32x1xf32>
    %cst_273 = arith.constant dense<0.000000e+00> : vector<32xf32>
    %447 = vector.multi_reduction <add>, %442, %cst_273 [1] : vector<32x128xf32> to vector<32xf32>
    %448 = vector.shape_cast %447 : vector<32xf32> to vector<32x1xf32>
    %cst_274 = arith.constant 1.280000e+02 : f32
    %449 = vector.broadcast %cst_274 : f32 to vector<32x1xf32>
    %450 = arith.divf %448, %449 : vector<32x1xf32>
    %451 = vector.broadcast %450 : vector<32x1xf32> to vector<32x128xf32>
    %452 = arith.subf %442, %451 : vector<32x128xf32>
    %453 = arith.mulf %452, %452 : vector<32x128xf32>
    %cst_275 = arith.constant dense<0.000000e+00> : vector<32xf32>
    %454 = vector.multi_reduction <add>, %453, %cst_275 [1] : vector<32x128xf32> to vector<32xf32>
    %455 = vector.shape_cast %454 : vector<32xf32> to vector<32x1xf32>
    %cst_276 = arith.constant 0.00787401571 : f32
    %456 = vector.broadcast %cst_276 : f32 to vector<32x1xf32>
    %457 = arith.mulf %455, %456 : vector<32x1xf32>
    %cst_277 = arith.constant 1.000000e-03 : f32
    %458 = vector.broadcast %cst_277 : f32 to vector<32x1xf32>
    %459 = arith.addf %457, %458 : vector<32x1xf32>
    %460 = math.rsqrt %459 : vector<32x1xf32>
    %461 = arith.mulf %444, %460 : vector<32x1xf32>
    %462 = vector.broadcast %461 : vector<32x1xf32> to vector<32x128xf32>
    %463 = arith.mulf %452, %462 : vector<32x128xf32>
    %464 = vector.broadcast %446 : vector<32x1xf32> to vector<32x128xf32>
    %465 = arith.addf %463, %464 : vector<32x128xf32>
    %cst_278 = arith.constant 0.000000e+00 : f32
    %466 = vector.broadcast %cst_278 : f32 to vector<32x128xf32>
    %467 = arith.maximumf %465, %466 : vector<32x128xf32>
    %c0_279 = arith.constant 0 : index
    %c0_280 = arith.constant 0 : index
    %c0_281 = arith.constant 0 : index
    %468 = vector.load %arg33[%c0_279, %c0_280, %c0_281] : memref<1x32x128xf32, #tpu.memory_space<vmem>>, vector<1x32x128xf32>
    %469 = vector.shape_cast %468 : vector<1x32x128xf32> to vector<32x128xf32>
    %470 = vector.shape_cast %467 : vector<32x128xf32> to vector<1x32x128xf32>
    tpu.vector_store %arg33[%c0_279, %c0_280, %c0_281], %470 {strides = array<i32>} : memref<1x32x128xf32, #tpu.memory_space<vmem>>, vector<1x32x128xf32>,
    return
  }
  func.func @transform_0(%arg0: i32) -> (i32, i32, i32) {
    %c0_i32 = arith.constant 0 : i32
    %c0_i32_0 = arith.constant 0 : i32
    %c0_i32_1 = arith.constant 0 : i32
    return %arg0, %c0_i32, %c0_i32_0 : i32, i32, i32
  }
  func.func @transform_1(%arg0: i32) -> (i32, i32) {
    %c0_i32 = arith.constant 0 : i32
    %c0_i32_0 = arith.constant 0 : i32
    %c0_i32_1 = arith.constant 0 : i32
    return %c0_i32, %c0_i32_0 : i32, i32
  }
  func.func @transform_2(%arg0: i32) -> (i32, i32) {
    %c0_i32 = arith.constant 0 : i32
    %c0_i32_0 = arith.constant 0 : i32
    %c0_i32_1 = arith.constant 0 : i32
    return %c0_i32, %c0_i32_0 : i32, i32
  }
  func.func @transform_3(%arg0: i32) -> (i32, i32, i32) {
    %c0_i32 = arith.constant 0 : i32
    %c0_i32_0 = arith.constant 0 : i32
    %c0_i32_1 = arith.constant 0 : i32
    %c0_i32_2 = arith.constant 0 : i32
    return %c0_i32, %c0_i32_0, %c0_i32_1 : i32, i32, i32
  }
  func.func @transform_4(%arg0: i32) -> (i32, i32, i32) {
    %c0_i32 = arith.constant 0 : i32
    %c0_i32_0 = arith.constant 0 : i32
    %c0_i32_1 = arith.constant 0 : i32
    %c0_i32_2 = arith.constant 0 : i32
    return %c0_i32, %c0_i32_0, %c0_i32_1 : i32, i32, i32
  }
  func.func @transform_5(%arg0: i32) -> (i32, i32, i32) {
    %c0_i32 = arith.constant 0 : i32
    %c0_i32_0 = arith.constant 0 : i32
    %c0_i32_1 = arith.constant 0 : i32
    %c0_i32_2 = arith.constant 0 : i32
    return %c0_i32, %c0_i32_0, %c0_i32_1 : i32, i32, i32
  }
  func.func @transform_6(%arg0: i32) -> (i32, i32) {
    %c0_i32 = arith.constant 0 : i32
    %c0_i32_0 = arith.constant 0 : i32
    %c0_i32_1 = arith.constant 0 : i32
    return %c0_i32, %c0_i32_0 : i32, i32
  }
  func.func @transform_7(%arg0: i32) -> (i32, i32) {
    %c0_i32 = arith.constant 0 : i32
    %c0_i32_0 = arith.constant 0 : i32
    %c0_i32_1 = arith.constant 0 : i32
    return %c0_i32, %c0_i32_0 : i32, i32
  }
  func.func @transform_8(%arg0: i32) -> (i32, i32) {
    %c0_i32 = arith.constant 0 : i32
    %c0_i32_0 = arith.constant 0 : i32
    %c0_i32_1 = arith.constant 0 : i32
    return %c0_i32, %c0_i32_0 : i32, i32
  }
  func.func @transform_9(%arg0: i32) -> (i32, i32) {
    %c0_i32 = arith.constant 0 : i32
    %c0_i32_0 = arith.constant 0 : i32
    %c0_i32_1 = arith.constant 0 : i32
    return %c0_i32, %c0_i32_0 : i32, i32
  }
  func.func @transform_10(%arg0: i32) -> (i32, i32, i32) {
    %c0_i32 = arith.constant 0 : i32
    %c0_i32_0 = arith.constant 0 : i32
    %c0_i32_1 = arith.constant 0 : i32
    %c0_i32_2 = arith.constant 0 : i32
    return %c0_i32, %c0_i32_0, %c0_i32_1 : i32, i32, i32
  }
  func.func @transform_11(%arg0: i32) -> (i32, i32, i32) {
    %c0_i32 = arith.constant 0 : i32
    %c0_i32_0 = arith.constant 0 : i32
    %c0_i32_1 = arith.constant 0 : i32
    %c0_i32_2 = arith.constant 0 : i32
    return %c0_i32, %c0_i32_0, %c0_i32_1 : i32, i32, i32
  }
  func.func @transform_12(%arg0: i32) -> (i32, i32, i32) {
    %c0_i32 = arith.constant 0 : i32
    %c0_i32_0 = arith.constant 0 : i32
    %c0_i32_1 = arith.constant 0 : i32
    %c0_i32_2 = arith.constant 0 : i32
    return %c0_i32, %c0_i32_0, %c0_i32_1 : i32, i32, i32
  }
  func.func @transform_13(%arg0: i32) -> (i32, i32, i32) {
    %c0_i32 = arith.constant 0 : i32
    %c0_i32_0 = arith.constant 0 : i32
    %c0_i32_1 = arith.constant 0 : i32
    %c0_i32_2 = arith.constant 0 : i32
    return %c0_i32, %c0_i32_0, %c0_i32_1 : i32, i32, i32
  }
  func.func @transform_14(%arg0: i32) -> (i32, i32, i32) {
    %c0_i32 = arith.constant 0 : i32
    %c0_i32_0 = arith.constant 0 : i32
    %c0_i32_1 = arith.constant 0 : i32
    %c0_i32_2 = arith.constant 0 : i32
    return %c0_i32, %c0_i32_0, %c0_i32_1 : i32, i32, i32
  }
  func.func @transform_15(%arg0: i32) -> (i32, i32, i32) {
    %c0_i32 = arith.constant 0 : i32
    %c0_i32_0 = arith.constant 0 : i32
    %c0_i32_1 = arith.constant 0 : i32
    %c0_i32_2 = arith.constant 0 : i32
    return %c0_i32, %c0_i32_0, %c0_i32_1 : i32, i32, i32
  }
  func.func @transform_16(%arg0: i32) -> (i32, i32, i32) {
    %c0_i32 = arith.constant 0 : i32
    %c0_i32_0 = arith.constant 0 : i32
    %c0_i32_1 = arith.constant 0 : i32
    %c0_i32_2 = arith.constant 0 : i32
    return %c0_i32, %c0_i32_0, %c0_i32_1 : i32, i32, i32
  }
  func.func @transform_17(%arg0: i32) -> (i32, i32, i32) {
    %c0_i32 = arith.constant 0 : i32
    %c0_i32_0 = arith.constant 0 : i32
    %c0_i32_1 = arith.constant 0 : i32
    %c0_i32_2 = arith.constant 0 : i32
    return %c0_i32, %c0_i32_0, %c0_i32_1 : i32, i32, i32
  }
  func.func @transform_18(%arg0: i32) -> (i32, i32, i32) {
    %c0_i32 = arith.constant 0 : i32
    %c0_i32_0 = arith.constant 0 : i32
    %c0_i32_1 = arith.constant 0 : i32
    %c0_i32_2 = arith.constant 0 : i32
    return %c0_i32, %c0_i32_0, %c0_i32_1 : i32, i32, i32
  }
  func.func @transform_19(%arg0: i32) -> (i32, i32, i32) {
    %c0_i32 = arith.constant 0 : i32
    %c0_i32_0 = arith.constant 0 : i32
    %c0_i32_1 = arith.constant 0 : i32
    %c0_i32_2 = arith.constant 0 : i32
    return %c0_i32, %c0_i32_0, %c0_i32_1 : i32, i32, i32
  }
  func.func @transform_20(%arg0: i32) -> (i32, i32, i32) {
    %c0_i32 = arith.constant 0 : i32
    %c0_i32_0 = arith.constant 0 : i32
    %c0_i32_1 = arith.constant 0 : i32
    %c0_i32_2 = arith.constant 0 : i32
    return %c0_i32, %c0_i32_0, %c0_i32_1 : i32, i32, i32
  }
  func.func @transform_21(%arg0: i32) -> (i32, i32, i32) {
    %c0_i32 = arith.constant 0 : i32
    %c0_i32_0 = arith.constant 0 : i32
    %c0_i32_1 = arith.constant 0 : i32
    %c0_i32_2 = arith.constant 0 : i32
    return %c0_i32, %c0_i32_0, %c0_i32_1 : i32, i32, i32
  }
  func.func @transform_22(%arg0: i32) -> (i32, i32) {
    %c0_i32 = arith.constant 0 : i32
    %c0_i32_0 = arith.constant 0 : i32
    %c0_i32_1 = arith.constant 0 : i32
    return %c0_i32, %c0_i32_0 : i32, i32
  }
  func.func @transform_23(%arg0: i32) -> (i32, i32) {
    %c0_i32 = arith.constant 0 : i32
    %c0_i32_0 = arith.constant 0 : i32
    %c0_i32_1 = arith.constant 0 : i32
    return %c0_i32, %c0_i32_0 : i32, i32
  }
  func.func @transform_24(%arg0: i32) -> (i32, i32) {
    %c0_i32 = arith.constant 0 : i32
    %c0_i32_0 = arith.constant 0 : i32
    %c0_i32_1 = arith.constant 0 : i32
    return %c0_i32, %c0_i32_0 : i32, i32
  }
  func.func @transform_25(%arg0: i32) -> (i32, i32) {
    %c0_i32 = arith.constant 0 : i32
    %c0_i32_0 = arith.constant 0 : i32
    %c0_i32_1 = arith.constant 0 : i32
    return %c0_i32, %c0_i32_0 : i32, i32
  }
  func.func @transform_26(%arg0: i32) -> (i32, i32) {
    %c0_i32 = arith.constant 0 : i32
    %c0_i32_0 = arith.constant 0 : i32
    %c0_i32_1 = arith.constant 0 : i32
    return %c0_i32, %c0_i32_0 : i32, i32
  }
  func.func @transform_27(%arg0: i32) -> (i32, i32) {
    %c0_i32 = arith.constant 0 : i32
    %c0_i32_0 = arith.constant 0 : i32
    %c0_i32_1 = arith.constant 0 : i32
    return %c0_i32, %c0_i32_0 : i32, i32
  }
  func.func @transform_28(%arg0: i32) -> (i32, i32) {
    %c0_i32 = arith.constant 0 : i32
    %c0_i32_0 = arith.constant 0 : i32
    %c0_i32_1 = arith.constant 0 : i32
    return %c0_i32, %c0_i32_0 : i32, i32
  }
  func.func @transform_29(%arg0: i32) -> (i32, i32, i32) {
    %c0_i32 = arith.constant 0 : i32
    %c0_i32_0 = arith.constant 0 : i32
    %c0_i32_1 = arith.constant 0 : i32
    %c0_i32_2 = arith.constant 0 : i32
    return %c0_i32, %c0_i32_0, %c0_i32_1 : i32, i32, i32
  }
  func.func @transform_30(%arg0: i32) -> (i32, i32, i32) {
    %c0_i32 = arith.constant 0 : i32
    %c0_i32_0 = arith.constant 0 : i32
    %c0_i32_1 = arith.constant 0 : i32
    %c0_i32_2 = arith.constant 0 : i32
    return %c0_i32, %c0_i32_0, %c0_i32_1 : i32, i32, i32
  }
  func.func @transform_31(%arg0: i32) -> (i32, i32, i32) {
    %c0_i32 = arith.constant 0 : i32
    %c0_i32_0 = arith.constant 0 : i32
    %c0_i32_1 = arith.constant 0 : i32
    %c0_i32_2 = arith.constant 0 : i32
    return %c0_i32, %c0_i32_0, %c0_i32_1 : i32, i32, i32
  }
  func.func @transform_32(%arg0: i32) -> (i32, i32, i32) {
    %c0_i32 = arith.constant 0 : i32
    %c0_i32_0 = arith.constant 0 : i32
    %c0_i32_1 = arith.constant 0 : i32
    return %arg0, %c0_i32, %c0_i32_0 : i32, i32, i32
  }
}

</mosaic_0001>

<llo_original>
// kernel: oanet_forward.1
$region0: #{oanet_forward.1}
  #allocation0 [shape = 'u32[]', space=smem, size = 0x4, offset = 0x4, fixed_abs, tag = 'smem constant byte address 0x4 - core index']
  #allocation1 [shape = 'u32[72,128]{1,0:T(1,128)}', space=vmem, size = 0x9000, scoped, tag = 'internal scratch']
  %s0 = inlined_call_operand.smem [shape: u32[33], index: -1, kind: input, shape index: {}]
  %s1 = sld [smem:[%s0]]
  %s2 = scalar_lea.smem %s0, 1
  %s3 = sld [smem:[%s2]]
  %s4 = scalar_lea.smem %s0, 2
  %s5 = sld [smem:[%s4]]
  %s6 = scalar_lea.smem %s0, 3
  %s7 = sld [smem:[%s6]]
  %s8 = scalar_lea.smem %s0, 4
  %s9 = sld [smem:[%s8]]
  %s10 = scalar_lea.smem %s0, 5
  %s11 = sld [smem:[%s10]]
  %s12 = scalar_lea.smem %s0, 6
  %s13 = sld [smem:[%s12]]
  %s14 = scalar_lea.smem %s0, 7
  %s15 = sld [smem:[%s14]]
  %s16 = scalar_lea.smem %s0, 8
  %s17 = sld [smem:[%s16]]
  %s18 = scalar_lea.smem %s0, 9
  %s19 = sld [smem:[%s18]]
  %s20 = scalar_lea.smem %s0, 10
  %s21 = sld [smem:[%s20]]
  %s22 = scalar_lea.smem %s0, 11
  %s23 = sld [smem:[%s22]]
  %s24 = scalar_lea.smem %s0, 12
  %s25 = sld [smem:[%s24]]
  %s26 = scalar_lea.smem %s0, 13
  %s27 = sld [smem:[%s26]]
  %s28 = scalar_lea.smem %s0, 14
  %s29 = sld [smem:[%s28]]
  %s30 = scalar_lea.smem %s0, 15
  %s31 = sld [smem:[%s30]]
  %s32 = scalar_lea.smem %s0, 16
  %s33 = sld [smem:[%s32]]
  %s34 = scalar_lea.smem %s0, 17
  %s35 = sld [smem:[%s34]]
  %s36 = scalar_lea.smem %s0, 18
  %s37 = sld [smem:[%s36]]
  %s38 = scalar_lea.smem %s0, 19
  %s39 = sld [smem:[%s38]]
  %s40 = scalar_lea.smem %s0, 20
  %s41 = sld [smem:[%s40]]
  %s42 = scalar_lea.smem %s0, 21
  %s43 = sld [smem:[%s42]]
  %s44 = scalar_lea.smem %s0, 22
  %s45 = sld [smem:[%s44]]
  %s46 = scalar_lea.smem %s0, 23
  %s47 = sld [smem:[%s46]]
  %s48 = scalar_lea.smem %s0, 24
  %s49 = sld [smem:[%s48]]
  %s50 = scalar_lea.smem %s0, 25
  %s51 = sld [smem:[%s50]]
  %s52 = scalar_lea.smem %s0, 26
  %s53 = sld [smem:[%s52]]
  %s54 = scalar_lea.smem %s0, 27
  %s55 = sld [smem:[%s54]]
  %s56 = scalar_lea.smem %s0, 28
  %s57 = sld [smem:[%s56]]
  %s58 = scalar_lea.smem %s0, 29
  %s59 = sld [smem:[%s58]]
  %s60 = scalar_lea.smem %s0, 30
  %s61 = sld [smem:[%s60]]
  %s62 = scalar_lea.smem %s0, 31
  %s63 = sld [smem:[%s62]]
  %s64 = scalar_lea.smem %s0, 32
  %s65 = sld [smem:[%s64]]
  %s66 = sld [smem:[#allocation0]]
  $region161: #{oanet_forward.1} parent=0
    _
  %s68 = ssub.s32 1, %s66
  %s69 = scalar_select 0, %s68, %s66
  $region1: #{oanet_forward.1} parent=0
    #allocation2 [shape = 'u8[32768]{0}', space=vmem, size = 0x8000, scoped, tag = 'output window, operand 0']
    #allocation3 [shape = 's32[2]{0}', space=sflag, size = 0x8, scoped, tag = 'scoped memory for oanet_forward.1']
    %70 = vsyncpa [#allocation3], 0
    %s71 = scalar_lea.sflag [#allocation3], 1
    %72 = vsyncpa %s71, 0
    loop: start=0, step=1, limit=4
    $region2: #{oanet_forward.1} parent=1 // loop_pre_header
      _
    $region3: #{oanet_forward.1} parent=1 // loop_header
      %s74 = sphi 0, %s78
      %p75 = scmp.ge.s32.totalorder %s74, 4
      %s84 = sphi 0, %s86
      %s87 = sphi 0, %s84
      %s88 = sphi 0, %s87
      %s104 = sphi 0, %s88
      %s108 = sphi 0, %s108
      %s110 = sphi 0, %s108
      %s111 = sphi 0, %s110
      %s125 = sphi 0, %s111
      %s129 = sphi 0, %s129
      %s131 = sphi 0, %s129
      %s132 = sphi 0, %s131
      %s146 = sphi 0, %s132
      %s150 = sphi 0, %s150
      %s152 = sphi 0, %s150
      %s153 = sphi 0, %s152
      %s167 = sphi 0, %s153
      %s171 = sphi 0, %s171
      %s173 = sphi 0, %s171
      %s174 = sphi 0, %s173
      %s188 = sphi 0, %s174
      %s192 = sphi 0, %s192
      %s194 = sphi 0, %s192
      %s195 = sphi 0, %s194
      %s209 = sphi 0, %s195
      %s213 = sphi 0, %s213
      %s215 = sphi 0, %s213
      %s216 = sphi 0, %s215
      %s230 = sphi 0, %s216
      %s234 = sphi 0, %s234
      %s236 = sphi 0, %s234
      %s237 = sphi 0, %s236
      %s251 = sphi 0, %s237
      %s255 = sphi 0, %s255
      %s257 = sphi 0, %s255
      %s258 = sphi 0, %s257
      %s272 = sphi 0, %s258
      %s276 = sphi 0, %s276
      %s278 = sphi 0, %s276
      %s279 = sphi 0, %s278
      %s293 = sphi 0, %s279
      %s297 = sphi 0, %s297
      %s299 = sphi 0, %s297
      %s300 = sphi 0, %s299
      %s314 = sphi 0, %s300
      %s318 = sphi 0, %s318
      %s320 = sphi 0, %s318
      %s321 = sphi 0, %s320
      %s335 = sphi 0, %s321
      %s339 = sphi 0, %s339
      %s341 = sphi 0, %s339
      %s342 = sphi 0, %s341
      %s356 = sphi 0, %s342
      %s360 = sphi 0, %s360
      %s362 = sphi 0, %s360
      %s363 = sphi 0, %s362
      %s377 = sphi 0, %s363
      %s381 = sphi 0, %s381
      %s383 = sphi 0, %s381
      %s384 = sphi 0, %s383
      %s398 = sphi 0, %s384
      %s402 = sphi 0, %s402
      %s404 = sphi 0, %s402
      %s405 = sphi 0, %s404
      %s419 = sphi 0, %s405
      %s423 = sphi 0, %s423
      %s425 = sphi 0, %s423
      %s426 = sphi 0, %s425
      %s440 = sphi 0, %s426
      %s444 = sphi 0, %s444
      %s446 = sphi 0, %s444
      %s447 = sphi 0, %s446
      %s461 = sphi 0, %s447
      %s465 = sphi 0, %s465
      %s467 = sphi 0, %s465
      %s468 = sphi 0, %s467
      %s482 = sphi 0, %s468
      %s486 = sphi 0, %s486
      %s488 = sphi 0, %s486
      %s489 = sphi 0, %s488
      %s503 = sphi 0, %s489
      %s507 = sphi 0, %s507
      %s509 = sphi 0, %s507
      %s510 = sphi 0, %s509
      %s524 = sphi 0, %s510
      %s528 = sphi 0, %s528
      %s530 = sphi 0, %s528
      %s531 = sphi 0, %s530
      %s545 = sphi 0, %s531
      %s549 = sphi 0, %s549
      %s551 = sphi 0, %s549
      %s552 = sphi 0, %s551
      %s566 = sphi 0, %s552
      %s570 = sphi 0, %s570
      %s572 = sphi 0, %s570
      %s573 = sphi 0, %s572
      %s587 = sphi 0, %s573
      %s591 = sphi 0, %s591
      %s593 = sphi 0, %s591
      %s594 = sphi 0, %s593
      %s608 = sphi 0, %s594
      %s612 = sphi 0, %s612
      %s614 = sphi 0, %s612
      %s615 = sphi 0, %s614
      %s629 = sphi 0, %s615
      %s633 = sphi 0, %s633
      %s635 = sphi 0, %s633
      %s636 = sphi 0, %s635
      %s650 = sphi 0, %s636
      %s654 = sphi 0, %s654
      %s656 = sphi 0, %s654
      %s657 = sphi 0, %s656
      %s671 = sphi 0, %s657
      %s675 = sphi 0, %s675
      %s677 = sphi 0, %s675
      %s678 = sphi 0, %s677
      %s692 = sphi 0, %s678
      %s696 = sphi 0, %s696
      %s698 = sphi 0, %s696
      %s699 = sphi 0, %s698
      %s713 = sphi 0, %s699
      %s717 = sphi 0, %s717
      %s719 = sphi 0, %s717
      %s720 = sphi 0, %s719
      %s734 = sphi 0, %s720
      %s738 = sphi 0, %s738
      %s740 = sphi 0, %s738
      %s741 = sphi 0, %s740
      %s755 = sphi 0, %s741
      %s761 = sphi 0, %s763
      %s764 = sphi 0, %s761
      %s765 = sphi 0, %s764
      %s781 = sphi 0, %s765
    $region4: #{oanet_forward.1} parent=1 // loop_header_branch
      %77 = sbr.rel (%p75) target = $region8
    $region5: #{oanet_forward.1} parent=1 // loop_body
      %s79 = ssub.s32 %s74, 1
      %s80 = ssub.s32 %s74, 2
      %s81 = sadd.s32 %s74, 1
      %s82 = ssub.s32 %s74, %s81
      %p83 = scmp.eq.s32.totalorder %s82, 0
      %s85 = sadd.s32 %s84, 1
      %s86 = scalar_select %p83, %s84, %s85
      %p89 = pneg %p83
      %p90 = scmp.eq.s32.totalorder %s74, 1
      %p91 = por %p89, %p90
      %p92 = scmp.ne.s32.totalorder %s84, %s87
      %p93 = scmp.eq.s32.totalorder %s74, 0
      %p94 = por %p92, %p93
      %p95 = scmp.ne.s32.totalorder %s84, %s87
      %p96 = scmp.eq.s32.totalorder %s79, 1
      %p97 = por %p95, %p96
      %p98 = scmp.ne.s32.totalorder %s87, %s88
      %p99 = scmp.eq.s32.totalorder %s79, 0
      %p100 = por %p98, %p99
      %p101 = scmp.ne.s32.totalorder %s87, %s88
      %p102 = scmp.eq.s32.totalorder %s80, 1
      %p103 = por %p101, %p102
      %p105 = scmp.ne.s32.totalorder %s88, %s104
      %p106 = scmp.eq.s32.totalorder %s80, 0
      %p107 = por %p105, %p106
      %s109 = sadd.s32 %s108, 1
      %p112 = scmp.eq.s32.totalorder %s74, 1
      %p113 = scmp.ne.s32.totalorder %s108, %s110
      %p114 = scmp.eq.s32.totalorder %s74, 0
      %p115 = por %p113, %p114
      %p116 = scmp.ne.s32.totalorder %s108, %s110
      %p117 = scmp.eq.s32.totalorder %s79, 1
      %p118 = por %p116, %p117
      %p119 = scmp.ne.s32.totalorder %s110, %s111
      %p120 = scmp.eq.s32.totalorder %s79, 0
      %p121 = por %p119, %p120
      %p122 = scmp.ne.s32.totalorder %s110, %s111
      %p123 = scmp.eq.s32.totalorder %s80, 1
      %p124 = por %p122, %p123
      %p126 = scmp.ne.s32.totalorder %s111, %s125
      %p127 = scmp.eq.s32.totalorder %s80, 0
      %p128 = por %p126, %p127
      %s130 = sadd.s32 %s129, 1
      %p133 = scmp.eq.s32.totalorder %s74, 1
      %p134 = scmp.ne.s32.totalorder %s129, %s131
      %p135 = scmp.eq.s32.totalorder %s74, 0
      %p136 = por %p134, %p135
      %p137 = scmp.ne.s32.totalorder %s129, %s131
      %p138 = scmp.eq.s32.totalorder %s79, 1
      %p139 = por %p137, %p138
      %p140 = scmp.ne.s32.totalorder %s131, %s132
      %p141 = scmp.eq.s32.totalorder %s79, 0
      %p142 = por %p140, %p141
      %p143 = scmp.ne.s32.totalorder %s131, %s132
      %p144 = scmp.eq.s32.totalorder %s80, 1
      %p145 = por %p143, %p144
      %p147 = scmp.ne.s32.totalorder %s132, %s146
      %p148 = scmp.eq.s32.totalorder %s80, 0
      %p149 = por %p147, %p148
      %s151 = sadd.s32 %s150, 1
      %p154 = scmp.eq.s32.totalorder %s74, 1
      %p155 = scmp.ne.s32.totalorder %s150, %s152
      %p156 = scmp.eq.s32.totalorder %s74, 0
      %p157 = por %p155, %p156
      %p158 = scmp.ne.s32.totalorder %s150, %s152
      %p159 = scmp.eq.s32.totalorder %s79, 1
      %p160 = por %p158, %p159
      %p161 = scmp.ne.s32.totalorder %s152, %s153
      %p162 = scmp.eq.s32.totalorder %s79, 0
      %p163 = por %p161, %p162
      %p164 = scmp.ne.s32.totalorder %s152, %s153
      %p165 = scmp.eq.s32.totalorder %s80, 1
      %p166 = por %p164, %p165
      %p168 = scmp.ne.s32.totalorder %s153, %s167
      %p169 = scmp.eq.s32.totalorder %s80, 0
      %p170 = por %p168, %p169
      %s172 = sadd.s32 %s171, 1
      %p175 = scmp.eq.s32.totalorder %s74, 1
      %p176 = scmp.ne.s32.totalorder %s171, %s173
      %p177 = scmp.eq.s32.totalorder %s74, 0
      %p178 = por %p176, %p177
      %p179 = scmp.ne.s32.totalorder %s171, %s173
      %p180 = scmp.eq.s32.totalorder %s79, 1
      %p181 = por %p179, %p180
      %p182 = scmp.ne.s32.totalorder %s173, %s174
      %p183 = scmp.eq.s32.totalorder %s79, 0
      %p184 = por %p182, %p183
      %p185 = scmp.ne.s32.totalorder %s173, %s174
      %p186 = scmp.eq.s32.totalorder %s80, 1
      %p187 = por %p185, %p186
      %p189 = scmp.ne.s32.totalorder %s174, %s188
      %p190 = scmp.eq.s32.totalorder %s80, 0
      %p191 = por %p189, %p190
      %s193 = sadd.s32 %s192, 1
      %p196 = scmp.eq.s32.totalorder %s74, 1
      %p197 = scmp.ne.s32.totalorder %s192, %s194
      %p198 = scmp.eq.s32.totalorder %s74, 0
      %p199 = por %p197, %p198
      %p200 = scmp.ne.s32.totalorder %s192, %s194
      %p201 = scmp.eq.s32.totalorder %s79, 1
      %p202 = por %p200, %p201
      %p203 = scmp.ne.s32.totalorder %s194, %s195
      %p204 = scmp.eq.s32.totalorder %s79, 0
      %p205 = por %p203, %p204
      %p206 = scmp.ne.s32.totalorder %s194, %s195
      %p207 = scmp.eq.s32.totalorder %s80, 1
      %p208 = por %p206, %p207
      %p210 = scmp.ne.s32.totalorder %s195, %s209
      %p211 = scmp.eq.s32.totalorder %s80, 0
      %p212 = por %p210, %p211
      %s214 = sadd.s32 %s213, 1
      %p217 = scmp.eq.s32.totalorder %s74, 1
      %p218 = scmp.ne.s32.totalorder %s213, %s215
      %p219 = scmp.eq.s32.totalorder %s74, 0
      %p220 = por %p218, %p219
      %p221 = scmp.ne.s32.totalorder %s213, %s215
      %p222 = scmp.eq.s32.totalorder %s79, 1
      %p223 = por %p221, %p222
      %p224 = scmp.ne.s32.totalorder %s215, %s216
      %p225 = scmp.eq.s32.totalorder %s79, 0
      %p226 = por %p224, %p225
      %p227 = scmp.ne.s32.totalorder %s215, %s216
      %p228 = scmp.eq.s32.totalorder %s80, 1
      %p229 = por %p227, %p228
      %p231 = scmp.ne.s32.totalorder %s216, %s230
      %p232 = scmp.eq.s32.totalorder %s80, 0
      %p233 = por %p231, %p232
      %s235 = sadd.s32 %s234, 1
      %p238 = scmp.eq.s32.totalorder %s74, 1
      %p239 = scmp.ne.s32.totalorder %s234, %s236
      %p240 = scmp.eq.s32.totalorder %s74, 0
      %p241 = por %p239, %p240
      %p242 = scmp.ne.s32.totalorder %s234, %s236
      %p243 = scmp.eq.s32.totalorder %s79, 1
      %p244 = por %p242, %p243
      %p245 = scmp.ne.s32.totalorder %s236, %s237
      %p246 = scmp.eq.s32.totalorder %s79, 0
      %p247 = por %p245, %p246
      %p248 = scmp.ne.s32.totalorder %s236, %s237
      %p249 = scmp.eq.s32.totalorder %s80, 1
      %p250 = por %p248, %p249
      %p252 = scmp.ne.s32.totalorder %s237, %s251
      %p253 = scmp.eq.s32.totalorder %s80, 0
      %p254 = por %p252, %p253
      %s256 = sadd.s32 %s255, 1
      %p259 = scmp.eq.s32.totalorder %s74, 1
      %p260 = scmp.ne.s32.totalorder %s255, %s257
      %p261 = scmp.eq.s32.totalorder %s74, 0
      %p262 = por %p260, %p261
      %p263 = scmp.ne.s32.totalorder %s255, %s257
      %p264 = scmp.eq.s32.totalorder %s79, 1
      %p265 = por %p263, %p264
      %p266 = scmp.ne.s32.totalorder %s257, %s258
      %p267 = scmp.eq.s32.totalorder %s79, 0
      %p268 = por %p266, %p267
      %p269 = scmp.ne.s32.totalorder %s257, %s258
      %p270 = scmp.eq.s32.totalorder %s80, 1
      %p271 = por %p269, %p270
      %p273 = scmp.ne.s32.totalorder %s258, %s272
      %p274 = scmp.eq.s32.totalorder %s80, 0
      %p275 = por %p273, %p274
      %s277 = sadd.s32 %s276, 1
      %p280 = scmp.eq.s32.totalorder %s74, 1
      %p281 = scmp.ne.s32.totalorder %s276, %s278
      %p282 = scmp.eq.s32.totalorder %s74, 0
      %p283 = por %p281, %p282
      %p284 = scmp.ne.s32.totalorder %s276, %s278
      %p285 = scmp.eq.s32.totalorder %s79, 1
      %p286 = por %p284, %p285
      %p287 = scmp.ne.s32.totalorder %s278, %s279
      %p288 = scmp.eq.s32.totalorder %s79, 0
      %p289 = por %p287, %p288
      %p290 = scmp.ne.s32.totalorder %s278, %s279
      %p291 = scmp.eq.s32.totalorder %s80, 1
      %p292 = por %p290, %p291
      %p294 = scmp.ne.s32.totalorder %s279, %s293
      %p295 = scmp.eq.s32.totalorder %s80, 0
      %p296 = por %p294, %p295
      %s298 = sadd.s32 %s297, 1
      %p301 = scmp.eq.s32.totalorder %s74, 1
      %p302 = scmp.ne.s32.totalorder %s297, %s299
      %p303 = scmp.eq.s32.totalorder %s74, 0
      %p304 = por %p302, %p303
      %p305 = scmp.ne.s32.totalorder %s297, %s299
      %p306 = scmp.eq.s32.totalorder %s79, 1
      %p307 = por %p305, %p306
      %p308 = scmp.ne.s32.totalorder %s299, %s300
      %p309 = scmp.eq.s32.totalorder %s79, 0
      %p310 = por %p308, %p309
      %p311 = scmp.ne.s32.totalorder %s299, %s300
      %p312 = scmp.eq.s32.totalorder %s80, 1
      %p313 = por %p311, %p312
      %p315 = scmp.ne.s32.totalorder %s300, %s314
      %p316 = scmp.eq.s32.totalorder %s80, 0
      %p317 = por %p315, %p316
      %s319 = sadd.s32 %s318, 1
      %p322 = scmp.eq.s32.totalorder %s74, 1
      %p323 = scmp.ne.s32.totalorder %s318, %s320
      %p324 = scmp.eq.s32.totalorder %s74, 0
      %p325 = por %p323, %p324
      %p326 = scmp.ne.s32.totalorder %s318, %s320
      %p327 = scmp.eq.s32.totalorder %s79, 1
      %p328 = por %p326, %p327
      %p329 = scmp.ne.s32.totalorder %s320, %s321
      %p330 = scmp.eq.s32.totalorder %s79, 0
      %p331 = por %p329, %p330
      %p332 = scmp.ne.s32.totalorder %s320, %s321
      %p333 = scmp.eq.s32.totalorder %s80, 1
      %p334 = por %p332, %p333
      %p336 = scmp.ne.s32.totalorder %s321, %s335
      %p337 = scmp.eq.s32.totalorder %s80, 0
      %p338 = por %p336, %p337
      %s340 = sadd.s32 %s339, 1
      %p343 = scmp.eq.s32.totalorder %s74, 1
      %p344 = scmp.ne.s32.totalorder %s339, %s341
      %p345 = scmp.eq.s32.totalorder %s74, 0
      %p346 = por %p344, %p345
      %p347 = scmp.ne.s32.totalorder %s339, %s341
      %p348 = scmp.eq.s32.totalorder %s79, 1
      %p349 = por %p347, %p348
      %p350 = scmp.ne.s32.totalorder %s341, %s342
      %p351 = scmp.eq.s32.totalorder %s79, 0
      %p352 = por %p350, %p351
      %p353 = scmp.ne.s32.totalorder %s341, %s342
      %p354 = scmp.eq.s32.totalorder %s80, 1
      %p355 = por %p353, %p354
      %p357 = scmp.ne.s32.totalorder %s342, %s356
      %p358 = scmp.eq.s32.totalorder %s80, 0
      %p359 = por %p357, %p358
      %s361 = sadd.s32 %s360, 1
      %p364 = scmp.eq.s32.totalorder %s74, 1
      %p365 = scmp.ne.s32.totalorder %s360, %s362
      %p366 = scmp.eq.s32.totalorder %s74, 0
      %p367 = por %p365, %p366
      %p368 = scmp.ne.s32.totalorder %s360, %s362
      %p369 = scmp.eq.s32.totalorder %s79, 1
      %p370 = por %p368, %p369
      %p371 = scmp.ne.s32.totalorder %s362, %s363
      %p372 = scmp.eq.s32.totalorder %s79, 0
      %p373 = por %p371, %p372
      %p374 = scmp.ne.s32.totalorder %s362, %s363
      %p375 = scmp.eq.s32.totalorder %s80, 1
      %p376 = por %p374, %p375
      %p378 = scmp.ne.s32.totalorder %s363, %s377
      %p379 = scmp.eq.s32.totalorder %s80, 0
      %p380 = por %p378, %p379
      %s382 = sadd.s32 %s381, 1
      %p385 = scmp.eq.s32.totalorder %s74, 1
      %p386 = scmp.ne.s32.totalorder %s381, %s383
      %p387 = scmp.eq.s32.totalorder %s74, 0
      %p388 = por %p386, %p387
      %p389 = scmp.ne.s32.totalorder %s381, %s383
      %p390 = scmp.eq.s32.totalorder %s79, 1
      %p391 = por %p389, %p390
      %p392 = scmp.ne.s32.totalorder %s383, %s384
      %p393 = scmp.eq.s32.totalorder %s79, 0
      %p394 = por %p392, %p393
      %p395 = scmp.ne.s32.totalorder %s383, %s384
      %p396 = scmp.eq.s32.totalorder %s80, 1
      %p397 = por %p395, %p396
      %p399 = scmp.ne.s32.totalorder %s384, %s398
      %p400 = scmp.eq.s32.totalorder %s80, 0
      %p401 = por %p399, %p400
      %s403 = sadd.s32 %s402, 1
      %p406 = scmp.eq.s32.totalorder %s74, 1
      %p407 = scmp.ne.s32.totalorder %s402, %s404
      %p408 = scmp.eq.s32.totalorder %s74, 0
      %p409 = por %p407, %p408
      %p410 = scmp.ne.s32.totalorder %s402, %s404
      %p411 = scmp.eq.s32.totalorder %s79, 1
      %p412 = por %p410, %p411
      %p413 = scmp.ne.s32.totalorder %s404, %s405
      %p414 = scmp.eq.s32.totalorder %s79, 0
      %p415 = por %p413, %p414
      %p416 = scmp.ne.s32.totalorder %s404, %s405
      %p417 = scmp.eq.s32.totalorder %s80, 1
      %p418 = por %p416, %p417
      %p420 = scmp.ne.s32.totalorder %s405, %s419
      %p421 = scmp.eq.s32.totalorder %s80, 0
      %p422 = por %p420, %p421
      %s424 = sadd.s32 %s423, 1
      %p427 = scmp.eq.s32.totalorder %s74, 1
      %p428 = scmp.ne.s32.totalorder %s423, %s425
      %p429 = scmp.eq.s32.totalorder %s74, 0
      %p430 = por %p428, %p429
      %p431 = scmp.ne.s32.totalorder %s423, %s425
      %p432 = scmp.eq.s32.totalorder %s79, 1
      %p433 = por %p431, %p432
      %p434 = scmp.ne.s32.totalorder %s425, %s426
      %p435 = scmp.eq.s32.totalorder %s79, 0
      %p436 = por %p434, %p435
      %p437 = scmp.ne.s32.totalorder %s425, %s426
      %p438 = scmp.eq.s32.totalorder %s80, 1
      %p439 = por %p437, %p438
      %p441 = scmp.ne.s32.totalorder %s426, %s440
      %p442 = scmp.eq.s32.totalorder %s80, 0
      %p443 = por %p441, %p442
      %s445 = sadd.s32 %s444, 1
      %p448 = scmp.eq.s32.totalorder %s74, 1
      %p449 = scmp.ne.s32.totalorder %s444, %s446
      %p450 = scmp.eq.s32.totalorder %s74, 0
      %p451 = por %p449, %p450
      %p452 = scmp.ne.s32.totalorder %s444, %s446
      %p453 = scmp.eq.s32.totalorder %s79, 1
      %p454 = por %p452, %p453
      %p455 = scmp.ne.s32.totalorder %s446, %s447
      %p456 = scmp.eq.s32.totalorder %s79, 0
      %p457 = por %p455, %p456
      %p458 = scmp.ne.s32.totalorder %s446, %s447
      %p459 = scmp.eq.s32.totalorder %s80, 1
      %p460 = por %p458, %p459
      %p462 = scmp.ne.s32.totalorder %s447, %s461
      %p463 = scmp.eq.s32.totalorder %s80, 0
      %p464 = por %p462, %p463
      %s466 = sadd.s32 %s465, 1
      %p469 = scmp.eq.s32.totalorder %s74, 1
      %p470 = scmp.ne.s32.totalorder %s465, %s467
      %p471 = scmp.eq.s32.totalorder %s74, 0
      %p472 = por %p470, %p471
      %p473 = scmp.ne.s32.totalorder %s465, %s467
      %p474 = scmp.eq.s32.totalorder %s79, 1
      %p475 = por %p473, %p474
      %p476 = scmp.ne.s32.totalorder %s467, %s468
      %p477 = scmp.eq.s32.totalorder %s79, 0
      %p478 = por %p476, %p477
      %p479 = scmp.ne.s32.totalorder %s467, %s468
      %p480 = scmp.eq.s32.totalorder %s80, 1
      %p481 = por %p479, %p480
      %p483 = scmp.ne.s32.totalorder %s468, %s482
      %p484 = scmp.eq.s32.totalorder %s80, 0
      %p485 = por %p483, %p484
      %s487 = sadd.s32 %s486, 1
      %p490 = scmp.eq.s32.totalorder %s74, 1
      %p491 = scmp.ne.s32.totalorder %s486, %s488
      %p492 = scmp.eq.s32.totalorder %s74, 0
      %p493 = por %p491, %p492
      %p494 = scmp.ne.s32.totalorder %s486, %s488
      %p495 = scmp.eq.s32.totalorder %s79, 1
      %p496 = por %p494, %p495
      %p497 = scmp.ne.s32.totalorder %s488, %s489
      %p498 = scmp.eq.s32.totalorder %s79, 0
      %p499 = por %p497, %p498
      %p500 = scmp.ne.s32.totalorder %s488, %s489
      %p501 = scmp.eq.s32.totalorder %s80, 1
      %p502 = por %p500, %p501
      %p504 = scmp.ne.s32.totalorder %s489, %s503
      %p505 = scmp.eq.s32.totalorder %s80, 0
      %p506 = por %p504, %p505
      %s508 = sadd.s32 %s507, 1
      %p511 = scmp.eq.s32.totalorder %s74, 1
      %p512 = scmp.ne.s32.totalorder %s507, %s509
      %p513 = scmp.eq.s32.totalorder %s74, 0
      %p514 = por %p512, %p513
      %p515 = scmp.ne.s32.totalorder %s507, %s509
      %p516 = scmp.eq.s32.totalorder %s79, 1
      %p517 = por %p515, %p516
      %p518 = scmp.ne.s32.totalorder %s509, %s510
      %p519 = scmp.eq.s32.totalorder %s79, 0
      %p520 = por %p518, %p519
      %p521 = scmp.ne.s32.totalorder %s509, %s510
      %p522 = scmp.eq.s32.totalorder %s80, 1
      %p523 = por %p521, %p522
      %p525 = scmp.ne.s32.totalorder %s510, %s524
      %p526 = scmp.eq.s32.totalorder %s80, 0
      %p527 = por %p525, %p526
      %s529 = sadd.s32 %s528, 1
      %p532 = scmp.eq.s32.totalorder %s74, 1
      %p533 = scmp.ne.s32.totalorder %s528, %s530
      %p534 = scmp.eq.s32.totalorder %s74, 0
      %p535 = por %p533, %p534
      %p536 = scmp.ne.s32.totalorder %s528, %s530
      %p537 = scmp.eq.s32.totalorder %s79, 1
      %p538 = por %p536, %p537
      %p539 = scmp.ne.s32.totalorder %s530, %s531
      %p540 = scmp.eq.s32.totalorder %s79, 0
      %p541 = por %p539, %p540
      %p542 = scmp.ne.s32.totalorder %s530, %s531
      %p543 = scmp.eq.s32.totalorder %s80, 1
      %p544 = por %p542, %p543
      %p546 = scmp.ne.s32.totalorder %s531, %s545
      %p547 = scmp.eq.s32.totalorder %s80, 0
      %p548 = por %p546, %p547
      %s550 = sadd.s32 %s549, 1
      %p553 = scmp.eq.s32.totalorder %s74, 1
      %p554 = scmp.ne.s32.totalorder %s549, %s551
      %p555 = scmp.eq.s32.totalorder %s74, 0
      %p556 = por %p554, %p555
      %p557 = scmp.ne.s32.totalorder %s549, %s551
      %p558 = scmp.eq.s32.totalorder %s79, 1
      %p559 = por %p557, %p558
      %p560 = scmp.ne.s32.totalorder %s551, %s552
      %p561 = scmp.eq.s32.totalorder %s79, 0
      %p562 = por %p560, %p561
      %p563 = scmp.ne.s32.totalorder %s551, %s552
      %p564 = scmp.eq.s32.totalorder %s80, 1
      %p565 = por %p563, %p564
      %p567 = scmp.ne.s32.totalorder %s552, %s566
      %p568 = scmp.eq.s32.totalorder %s80, 0
      %p569 = por %p567, %p568
      %s571 = sadd.s32 %s570, 1
      %p574 = scmp.eq.s32.totalorder %s74, 1
      %p575 = scmp.ne.s32.totalorder %s570, %s572
      %p576 = scmp.eq.s32.totalorder %s74, 0
      %p577 = por %p575, %p576
      %p578 = scmp.ne.s32.totalorder %s570, %s572
      %p579 = scmp.eq.s32.totalorder %s79, 1
      %p580 = por %p578, %p579
      %p581 = scmp.ne.s32.totalorder %s572, %s573
      %p582 = scmp.eq.s32.totalorder %s79, 0
      %p583 = por %p581, %p582
      %p584 = scmp.ne.s32.totalorder %s572, %s573
      %p585 = scmp.eq.s32.totalorder %s80, 1
      %p586 = por %p584, %p585
      %p588 = scmp.ne.s32.totalorder %s573, %s587
      %p589 = scmp.eq.s32.totalorder %s80, 0
      %p590 = por %p588, %p589
      %s592 = sadd.s32 %s591, 1
      %p595 = scmp.eq.s32.totalorder %s74, 1
      %p596 = scmp.ne.s32.totalorder %s591, %s593
      %p597 = scmp.eq.s32.totalorder %s74, 0
      %p598 = por %p596, %p597
      %p599 = scmp.ne.s32.totalorder %s591, %s593
      %p600 = scmp.eq.s32.totalorder %s79, 1
      %p601 = por %p599, %p600
      %p602 = scmp.ne.s32.totalorder %s593, %s594
      %p603 = scmp.eq.s32.totalorder %s79, 0
      %p604 = por %p602, %p603
      %p605 = scmp.ne.s32.totalorder %s593, %s594
      %p606 = scmp.eq.s32.totalorder %s80, 1
      %p607 = por %p605, %p606
      %p609 = scmp.ne.s32.totalorder %s594, %s608
      %p610 = scmp.eq.s32.totalorder %s80, 0
      %p611 = por %p609, %p610
      %s613 = sadd.s32 %s612, 1
      %p616 = scmp.eq.s32.totalorder %s74, 1
      %p617 = scmp.ne.s32.totalorder %s612, %s614
      %p618 = scmp.eq.s32.totalorder %s74, 0
      %p619 = por %p617, %p618
      %p620 = scmp.ne.s32.totalorder %s612, %s614
      %p621 = scmp.eq.s32.totalorder %s79, 1
      %p622 = por %p620, %p621
      %p623 = scmp.ne.s32.totalorder %s614, %s615
      %p624 = scmp.eq.s32.totalorder %s79, 0
      %p625 = por %p623, %p624
      %p626 = scmp.ne.s32.totalorder %s614, %s615
      %p627 = scmp.eq.s32.totalorder %s80, 1
      %p628 = por %p626, %p627
      %p630 = scmp.ne.s32.totalorder %s615, %s629
      %p631 = scmp.eq.s32.totalorder %s80, 0
      %p632 = por %p630, %p631
      %s634 = sadd.s32 %s633, 1
      %p637 = scmp.eq.s32.totalorder %s74, 1
      %p638 = scmp.ne.s32.totalorder %s633, %s635
      %p639 = scmp.eq.s32.totalorder %s74, 0
      %p640 = por %p638, %p639
      %p641 = scmp.ne.s32.totalorder %s633, %s635
      %p642 = scmp.eq.s32.totalorder %s79, 1
      %p643 = por %p641, %p642
      %p644 = scmp.ne.s32.totalorder %s635, %s636
      %p645 = scmp.eq.s32.totalorder %s79, 0
      %p646 = por %p644, %p645
      %p647 = scmp.ne.s32.totalorder %s635, %s636
      %p648 = scmp.eq.s32.totalorder %s80, 1
      %p649 = por %p647, %p648
      %p651 = scmp.ne.s32.totalorder %s636, %s650
      %p652 = scmp.eq.s32.totalorder %s80, 0
      %p653 = por %p651, %p652
      %s655 = sadd.s32 %s654, 1
      %p658 = scmp.eq.s32.totalorder %s74, 1
      %p659 = scmp.ne.s32.totalorder %s654, %s656
      %p660 = scmp.eq.s32.totalorder %s74, 0
      %p661 = por %p659, %p660
      %p662 = scmp.ne.s32.totalorder %s654, %s656
      %p663 = scmp.eq.s32.totalorder %s79, 1
      %p664 = por %p662, %p663
      %p665 = scmp.ne.s32.totalorder %s656, %s657
      %p666 = scmp.eq.s32.totalorder %s79, 0
      %p667 = por %p665, %p666
      %p668 = scmp.ne.s32.totalorder %s656, %s657
      %p669 = scmp.eq.s32.totalorder %s80, 1
      %p670 = por %p668, %p669
      %p672 = scmp.ne.s32.totalorder %s657, %s671
      %p673 = scmp.eq.s32.totalorder %s80, 0
      %p674 = por %p672, %p673
      %s676 = sadd.s32 %s675, 1
      %p679 = scmp.eq.s32.totalorder %s74, 1
      %p680 = scmp.ne.s32.totalorder %s675, %s677
      %p681 = scmp.eq.s32.totalorder %s74, 0
      %p682 = por %p680, %p681
      %p683 = scmp.ne.s32.totalorder %s675, %s677
      %p684 = scmp.eq.s32.totalorder %s79, 1
      %p685 = por %p683, %p684
      %p686 = scmp.ne.s32.totalorder %s677, %s678
      %p687 = scmp.eq.s32.totalorder %s79, 0
      %p688 = por %p686, %p687
      %p689 = scmp.ne.s32.totalorder %s677, %s678
      %p690 = scmp.eq.s32.totalorder %s80, 1
      %p691 = por %p689, %p690
      %p693 = scmp.ne.s32.totalorder %s678, %s692
      %p694 = scmp.eq.s32.totalorder %s80, 0
      %p695 = por %p693, %p694
      %s697 = sadd.s32 %s696, 1
      %p700 = scmp.eq.s32.totalorder %s74, 1
      %p701 = scmp.ne.s32.totalorder %s696, %s698
      %p702 = scmp.eq.s32.totalorder %s74, 0
      %p703 = por %p701, %p702
      %p704 = scmp.ne.s32.totalorder %s696, %s698
      %p705 = scmp.eq.s32.totalorder %s79, 1
      %p706 = por %p704, %p705
      %p707 = scmp.ne.s32.totalorder %s698, %s699
      %p708 = scmp.eq.s32.totalorder %s79, 0
      %p709 = por %p707, %p708
      %p710 = scmp.ne.s32.totalorder %s698, %s699
      %p711 = scmp.eq.s32.totalorder %s80, 1
      %p712 = por %p710, %p711
      %p714 = scmp.ne.s32.totalorder %s699, %s713
      %p715 = scmp.eq.s32.totalorder %s80, 0
      %p716 = por %p714, %p715
      %s718 = sadd.s32 %s717, 1
      %p721 = scmp.eq.s32.totalorder %s74, 1
      %p722 = scmp.ne.s32.totalorder %s717, %s719
      %p723 = scmp.eq.s32.totalorder %s74, 0
      %p724 = por %p722, %p723
      %p725 = scmp.ne.s32.totalorder %s717, %s719
      %p726 = scmp.eq.s32.totalorder %s79, 1
      %p727 = por %p725, %p726
      %p728 = scmp.ne.s32.totalorder %s719, %s720
      %p729 = scmp.eq.s32.totalorder %s79, 0
      %p730 = por %p728, %p729
      %p731 = scmp.ne.s32.totalorder %s719, %s720
      %p732 = scmp.eq.s32.totalorder %s80, 1
      %p733 = por %p731, %p732
      %p735 = scmp.ne.s32.totalorder %s720, %s734
      %p736 = scmp.eq.s32.totalorder %s80, 0
      %p737 = por %p735, %p736
      %s739 = sadd.s32 %s738, 1
      %p742 = scmp.eq.s32.totalorder %s74, 1
      %p743 = scmp.ne.s32.totalorder %s738, %s740
      %p744 = scmp.eq.s32.totalorder %s74, 0
      %p745 = por %p743, %p744
      %p746 = scmp.ne.s32.totalorder %s738, %s740
      %p747 = scmp.eq.s32.totalorder %s79, 1
      %p748 = por %p746, %p747
      %p749 = scmp.ne.s32.totalorder %s740, %s741
      %p750 = scmp.eq.s32.totalorder %s79, 0
      %p751 = por %p749, %p750
      %p752 = scmp.ne.s32.totalorder %s740, %s741
      %p753 = scmp.eq.s32.totalorder %s80, 1
      %p754 = por %p752, %p753
      %p756 = scmp.ne.s32.totalorder %s741, %s755
      %p757 = scmp.eq.s32.totalorder %s80, 0
      %p758 = por %p756, %p757
      %s759 = ssub.s32 %s74, %s81
      %p760 = scmp.eq.s32.totalorder %s759, 0
      %s762 = sadd.s32 %s761, 1
      %s763 = scalar_select %p760, %s761, %s762
      %p766 = pneg %p760
      %p767 = scmp.eq.s32.totalorder %s74, 1
      %p768 = por %p766, %p767
      %p769 = scmp.ne.s32.totalorder %s761, %s764
      %p770 = scmp.eq.s32.totalorder %s74, 0
      %p771 = por %p769, %p770
      %p772 = scmp.ne.s32.totalorder %s761, %s764
      %p773 = scmp.eq.s32.totalorder %s79, 1
      %p774 = por %p772, %p773
      %p775 = scmp.ne.s32.totalorder %s764, %s765
      %p776 = scmp.eq.s32.totalorder %s79, 0
      %p777 = por %p775, %p776
      %p778 = scmp.ne.s32.totalorder %s764, %s765
      %p779 = scmp.eq.s32.totalorder %s80, 1
      %p780 = por %p778, %p779
      %p782 = scmp.ne.s32.totalorder %s765, %s781
      %p783 = scmp.eq.s32.totalorder %s80, 0
      %p784 = por %p782, %p783
      %p785 = scmp.le.s32.totalorder 1, %s74
      %p786 = scmp.lt.s32.totalorder %s74, 3
      %p787 = pnand %p785, %p786
      %p788 = pneg %p787
      // Predicated region
      $region9: #{oanet_forward.1} parent=5 // pred_check
        _
      $region10: #{oanet_forward.1} parent=5 // pred_check_branch
        %790 = sbr.rel (%p787) target = $region12
      $region11: #{oanet_forward.1} parent=5 // pred_region
        %s791 = ssub.s32 %s74, 1
        // Predicated region
        $region13: #{oanet_forward.1} parent=11 // pred_check
          %p792 = pneg %p121
        $region14: #{oanet_forward.1} parent=11 // pred_check_branch
          %794 = sbr.rel (%p792) target = $region16
        $region15: #{oanet_forward.1} parent=11 // pred_region
          _
        $region16: #{oanet_forward.1} parent=11 // pred_fallthru
          _
        // Predicated region
        $region17: #{oanet_forward.1} parent=11 // pred_check
          %p795 = pneg %p142
        $region18: #{oanet_forward.1} parent=11 // pred_check_branch
          %797 = sbr.rel (%p795) target = $region20
        $region19: #{oanet_forward.1} parent=11 // pred_region
          _
        $region20: #{oanet_forward.1} parent=11 // pred_fallthru
          _
        // Predicated region
        $region21: #{oanet_forward.1} parent=11 // pred_check
          %p798 = pneg %p163
        $region22: #{oanet_forward.1} parent=11 // pred_check_branch
          %800 = sbr.rel (%p798) target = $region24
        $region23: #{oanet_forward.1} parent=11 // pred_region
          _
        $region24: #{oanet_forward.1} parent=11 // pred_fallthru
          _
        // Predicated region
        $region25: #{oanet_forward.1} parent=11 // pred_check
          %p801 = pneg %p184
        $region26: #{oanet_forward.1} parent=11 // pred_check_branch
          %803 = sbr.rel (%p801) target = $region28
        $region27: #{oanet_forward.1} parent=11 // pred_region
          _
        $region28: #{oanet_forward.1} parent=11 // pred_fallthru
          _
        // Predicated region
        $region29: #{oanet_forward.1} parent=11 // pred_check
          %p804 = pneg %p205
        $region30: #{oanet_forward.1} parent=11 // pred_check_branch
          %806 = sbr.rel (%p804) target = $region32
        $region31: #{oanet_forward.1} parent=11 // pred_region
          _
        $region32: #{oanet_forward.1} parent=11 // pred_fallthru
          _
        // Predicated region
        $region33: #{oanet_forward.1} parent=11 // pred_check
          %p807 = pneg %p226
        $region34: #{oanet_forward.1} parent=11 // pred_check_branch
          %809 = sbr.rel (%p807) target = $region36
        $region35: #{oanet_forward.1} parent=11 // pred_region
          _
        $region36: #{oanet_forward.1} parent=11 // pred_fallthru
          _
        // Predicated region
        $region37: #{oanet_forward.1} parent=11 // pred_check
          %p810 = pneg %p247
        $region38: #{oanet_forward.1} parent=11 // pred_check_branch
          %812 = sbr.rel (%p810) target = $region40
        $region39: #{oanet_forward.1} parent=11 // pred_region
          _
        $region40: #{oanet_forward.1} parent=11 // pred_fallthru
          _
        // Predicated region
        $region41: #{oanet_forward.1} parent=11 // pred_check
          %p813 = pneg %p268
        $region42: #{oanet_forward.1} parent=11 // pred_check_branch
          %815 = sbr.rel (%p813) target = $region44
        $region43: #{oanet_forward.1} parent=11 // pred_region
          _
        $region44: #{oanet_forward.1} parent=11 // pred_fallthru
          _
        // Predicated region
        $region45: #{oanet_forward.1} parent=11 // pred_check
          %p816 = pneg %p289
        $region46: #{oanet_forward.1} parent=11 // pred_check_branch
          %818 = sbr.rel (%p816) target = $region48
        $region47: #{oanet_forward.1} parent=11 // pred_region
          _
        $region48: #{oanet_forward.1} parent=11 // pred_fallthru
          _
        // Predicated region
        $region49: #{oanet_forward.1} parent=11 // pred_check
          %p819 = pneg %p310
        $region50: #{oanet_forward.1} parent=11 // pred_check_branch
          %821 = sbr.rel (%p819) target = $region52
        $region51: #{oanet_forward.1} parent=11 // pred_region
          _
        $region52: #{oanet_forward.1} parent=11 // pred_fallthru
          _
        // Predicated region
        $region53: #{oanet_forward.1} parent=11 // pred_check
          %p822 = pneg %p331
        $region54: #{oanet_forward.1} parent=11 // pred_check_branch
          %824 = sbr.rel (%p822) target = $region56
        $region55: #{oanet_forward.1} parent=11 // pred_region
          _
        $region56: #{oanet_forward.1} parent=11 // pred_fallthru
          _
        // Predicated region
        $region57: #{oanet_forward.1} parent=11 // pred_check
          %p825 = pneg %p352
        $region58: #{oanet_forward.1} parent=11 // pred_check_branch
          %827 = sbr.rel (%p825) target = $region60
        $region59: #{oanet_forward.1} parent=11 // pred_region
          _
        $region60: #{oanet_forward.1} parent=11 // pred_fallthru
          _
        // Predicated region
        $region61: #{oanet_forward.1} parent=11 // pred_check
          %p828 = pneg %p373
        $region62: #{oanet_forward.1} parent=11 // pred_check_branch
          %830 = sbr.rel (%p828) target = $region64
        $region63: #{oanet_forward.1} parent=11 // pred_region
          _
        $region64: #{oanet_forward.1} parent=11 // pred_fallthru
          _
        // Predicated region
        $region65: #{oanet_forward.1} parent=11 // pred_check
          %p831 = pneg %p394
        $region66: #{oanet_forward.1} parent=11 // pred_check_branch
          %833 = sbr.rel (%p831) target = $region68
        $region67: #{oanet_forward.1} parent=11 // pred_region
          _
        $region68: #{oanet_forward.1} parent=11 // pred_fallthru
          _
        // Predicated region
        $region69: #{oanet_forward.1} parent=11 // pred_check
          %p834 = pneg %p415
        $region70: #{oanet_forward.1} parent=11 // pred_check_branch
          %836 = sbr.rel (%p834) target = $region72
        $region71: #{oanet_forward.1} parent=11 // pred_region
          _
        $region72: #{oanet_forward.1} parent=11 // pred_fallthru
          _
        // Predicated region
        $region73: #{oanet_forward.1} parent=11 // pred_check
          %p837 = pneg %p436
        $region74: #{oanet_forward.1} parent=11 // pred_check_branch
          %839 = sbr.rel (%p837) target = $region76
        $region75: #{oanet_forward.1} parent=11 // pred_region
          _
        $region76: #{oanet_forward.1} parent=11 // pred_fallthru
          _
        // Predicated region
        $region77: #{oanet_forward.1} parent=11 // pred_check
          %p840 = pneg %p457
        $region78: #{oanet_forward.1} parent=11 // pred_check_branch
          %842 = sbr.rel (%p840) target = $region80
        $region79: #{oanet_forward.1} parent=11 // pred_region
          _
        $region80: #{oanet_forward.1} parent=11 // pred_fallthru
          _
        // Predicated region
        $region81: #{oanet_forward.1} parent=11 // pred_check
          %p843 = pneg %p478
        $region82: #{oanet_forward.1} parent=11 // pred_check_branch
          %845 = sbr.rel (%p843) target = $region84
        $region83: #{oanet_forward.1} parent=11 // pred_region
          _
        $region84: #{oanet_forward.1} parent=11 // pred_fallthru
          _
        // Predicated region
        $region85: #{oanet_forward.1} parent=11 // pred_check
          %p846 = pneg %p499
        $region86: #{oanet_forward.1} parent=11 // pred_check_branch
          %848 = sbr.rel (%p846) target = $region88
        $region87: #{oanet_forward.1} parent=11 // pred_region
          _
        $region88: #{oanet_forward.1} parent=11 // pred_fallthru
          _
        // Predicated region
        $region89: #{oanet_forward.1} parent=11 // pred_check
          %p849 = pneg %p520
        $region90: #{oanet_forward.1} parent=11 // pred_check_branch
          %851 = sbr.rel (%p849) target = $region92
        $region91: #{oanet_forward.1} parent=11 // pred_region
          _
        $region92: #{oanet_forward.1} parent=11 // pred_fallthru
          _
        // Predicated region
        $region93: #{oanet_forward.1} parent=11 // pred_check
          %p852 = pneg %p541
        $region94: #{oanet_forward.1} parent=11 // pred_check_branch
          %854 = sbr.rel (%p852) target = $region96
        $region95: #{oanet_forward.1} parent=11 // pred_region
          _
        $region96: #{oanet_forward.1} parent=11 // pred_fallthru
          _
        // Predicated region
        $region97: #{oanet_forward.1} parent=11 // pred_check
          %p855 = pneg %p562
        $region98: #{oanet_forward.1} parent=11 // pred_check_branch
          %857 = sbr.rel (%p855) target = $region100
        $region99: #{oanet_forward.1} parent=11 // pred_region
          _
        $region100: #{oanet_forward.1} parent=11 // pred_fallthru
          _
        // Predicated region
        $region101: #{oanet_forward.1} parent=11 // pred_check
          %p858 = pneg %p583
        $region102: #{oanet_forward.1} parent=11 // pred_check_branch
          %860 = sbr.rel (%p858) target = $region104
        $region103: #{oanet_forward.1} parent=11 // pred_region
          _
        $region104: #{oanet_forward.1} parent=11 // pred_fallthru
          _
        // Predicated region
        $region105: #{oanet_forward.1} parent=11 // pred_check
          %p861 = pneg %p604
        $region106: #{oanet_forward.1} parent=11 // pred_check_branch
          %863 = sbr.rel (%p861) target = $region108
        $region107: #{oanet_forward.1} parent=11 // pred_region
          _
        $region108: #{oanet_forward.1} parent=11 // pred_fallthru
          _
        // Predicated region
        $region109: #{oanet_forward.1} parent=11 // pred_check
          %p864 = pneg %p625
        $region110: #{oanet_forward.1} parent=11 // pred_check_branch
          %866 = sbr.rel (%p864) target = $region112
        $region111: #{oanet_forward.1} parent=11 // pred_region
          _
        $region112: #{oanet_forward.1} parent=11 // pred_fallthru
          _
        // Predicated region
        $region113: #{oanet_forward.1} parent=11 // pred_check
          %p867 = pneg %p646
        $region114: #{oanet_forward.1} parent=11 // pred_check_branch
          %869 = sbr.rel (%p867) target = $region116
        $region115: #{oanet_forward.1} parent=11 // pred_region
          _
        $region116: #{oanet_forward.1} parent=11 // pred_fallthru
          _
        // Predicated region
        $region117: #{oanet_forward.1} parent=11 // pred_check
          %p870 = pneg %p667
        $region118: #{oanet_forward.1} parent=11 // pred_check_branch
          %872 = sbr.rel (%p870) target = $region120
        $region119: #{oanet_forward.1} parent=11 // pred_region
          _
        $region120: #{oanet_forward.1} parent=11 // pred_fallthru
          _
        // Predicated region
        $region121: #{oanet_forward.1} parent=11 // pred_check
          %p873 = pneg %p688
        $region122: #{oanet_forward.1} parent=11 // pred_check_branch
          %875 = sbr.rel (%p873) target = $region124
        $region123: #{oanet_forward.1} parent=11 // pred_region
          _
        $region124: #{oanet_forward.1} parent=11 // pred_fallthru
          _
        // Predicated region
        $region125: #{oanet_forward.1} parent=11 // pred_check
          %p876 = pneg %p709
        $region126: #{oanet_forward.1} parent=11 // pred_check_branch
          %878 = sbr.rel (%p876) target = $region128
        $region127: #{oanet_forward.1} parent=11 // pred_region
          _
        $region128: #{oanet_forward.1} parent=11 // pred_fallthru
          _
        // Predicated region
        $region129: #{oanet_forward.1} parent=11 // pred_check
          %p879 = pneg %p730
        $region130: #{oanet_forward.1} parent=11 // pred_check_branch
          %881 = sbr.rel (%p879) target = $region132
        $region131: #{oanet_forward.1} parent=11 // pred_region
          _
        $region132: #{oanet_forward.1} parent=11 // pred_fallthru
          _
        // Predicated region
        $region133: #{oanet_forward.1} parent=11 // pred_check
          %p882 = pneg %p751
        $region134: #{oanet_forward.1} parent=11 // pred_check_branch
          %884 = sbr.rel (%p882) target = $region136
        $region135: #{oanet_forward.1} parent=11 // pred_region
          _
        $region136: #{oanet_forward.1} parent=11 // pred_fallthru
          _
      $region12: #{oanet_forward.1} parent=5 // pred_fallthru
        _
      %p885 = scmp.lt.s32.totalorder %s74, 2
      // Predicated region
      $region137: #{oanet_forward.1} parent=5 // pred_check
        %p886 = pneg %p885
      $region138: #{oanet_forward.1} parent=5 // pred_check_branch
        %888 = sbr.rel (%p886) target = $region140
      $region139: #{oanet_forward.1} parent=5 // pred_region
        // Predicated region
        $region141: #{oanet_forward.1} parent=139 // pred_check
          %p889 = pneg %p94
        $region142: #{oanet_forward.1} parent=139 // pred_check_branch
          %891 = sbr.rel (%p889) target = $region144
        $region143: #{oanet_forward.1} parent=139 // pred_region
          %p892 = scmp.lt.s32.totalorder %s74, 1
          %s893 = scalar_select %p892, %s74, 1
          %s894 = smul.addr %s893, 8
          %s895 = scalar_lea.vmem %s1, %s894
        $region144: #{oanet_forward.1} parent=139 // pred_fallthru
          _
      $region140: #{oanet_forward.1} parent=5 // pred_fallthru
        _
      %p896 = scmp.le.s32.totalorder 1, %s74
      %p897 = scmp.lt.s32.totalorder %s74, 3
      %p898 = pnand %p896, %p897
      %p899 = pneg %p898
      // Predicated region
      $region145: #{oanet_forward.1} parent=5 // pred_check
        _
      $region146: #{oanet_forward.1} parent=5 // pred_check_branch
        %901 = sbr.rel (%p898) target = $region148
      $region147: #{oanet_forward.1} parent=5 // pred_region
        %s902 = ssub.s32 %s74, 1
        %p903 = scmp.lt.s32.totalorder %s79, 1
        %s904 = scalar_select %p903, %s79, 1
        %s905 = smul.addr %s904, 8
        %s906 = scalar_lea.vmem %s1, %s905
        %p907 = pneg %p100
        %p908 = pneg %p97
        %p909 = pneg %p121
        %p910 = pneg %p118
        %p911 = pneg %p142
        %p912 = pneg %p139
        %p913 = pneg %p163
        %p914 = pneg %p160
        %p915 = pneg %p184
        %p916 = pneg %p181
        %p917 = pneg %p205
        %p918 = pneg %p202
        %p919 = pneg %p226
        %p920 = pneg %p223
        %p921 = pneg %p247
        %p922 = pneg %p244
        %p923 = pneg %p268
        %p924 = pneg %p265
        %p925 = pneg %p289
        %p926 = pneg %p286
        %p927 = pneg %p310
        %p928 = pneg %p307
        %p929 = pneg %p331
        %p930 = pneg %p328
        %p931 = pneg %p352
        %p932 = pneg %p349
        %p933 = pneg %p373
        %p934 = pneg %p370
        %p935 = pneg %p394
        %p936 = pneg %p391
        %p937 = pneg %p415
        %p938 = pneg %p412
        %p939 = pneg %p436
        %p940 = pneg %p433
        %p941 = pneg %p457
        %p942 = pneg %p454
        %p943 = pneg %p478
        %p944 = pneg %p475
        %p945 = pneg %p499
        %p946 = pneg %p496
        %p947 = pneg %p520
        %p948 = pneg %p517
        %p949 = pneg %p541
        %p950 = pneg %p538
        %p951 = pneg %p562
        %p952 = pneg %p559
        %p953 = pneg %p583
        %p954 = pneg %p580
        %p955 = pneg %p604
        %p956 = pneg %p601
        %p957 = pneg %p625
        %p958 = pneg %p622
        %p959 = pneg %p646
        %p960 = pneg %p643
        %p961 = pneg %p667
        %p962 = pneg %p664
        %p963 = pneg %p688
        %p964 = pneg %p685
        %p965 = pneg %p709
        %p966 = pneg %p706
        %p967 = pneg %p730
        %p968 = pneg %p727
        %p969 = pneg %p751
        %p970 = pneg %p748
        %p971 = pneg %p777
        %p972 = pneg %p774
        %s973 = sand.u32 %s764, 1
        %s974 = scalar_lea.sflag [#allocation3], %s973
        %s975 = sand.u32 %s764, 1
        %s976 = smul.addr %s975, 32
        %s977 = scalar_lea.vmem [#allocation2], %s976
        %p978 = scmp.lt.s32.totalorder %s79, 1
        %s979 = scalar_select %p978, %s79, 1
        %s980 = smul.addr %s979, 8
        %s981 = scalar_lea.vmem %s1, %s980
        %v982 = vld [vmem:[%s981] sm:$0x3f]
        %v983 = vld [vmem:[%s3] sm:$0xff]
        %v984 = vld [vmem:[%s3 + $0x8] sm:$0xff]
        %v985 = vld [vmem:[%s3 + $0x10] sm:$0xff]
        %v986 = vld [vmem:[%s3 + $0x18] sm:$0xff]
        %v987 = vld [vmem:[%s5] sm:$0xff]
        %v988 = vld [vmem:[%s5 + $0x8] sm:$0xff]
        %v989 = vld [vmem:[%s5 + $0x10] sm:$0xff]
        %v990 = vld [vmem:[%s5 + $0x18] sm:$0xff]
        %992 = vset.pattern.permute.xlu0 0
        %993 = vperm.xlu0 %992, %v987
        %v994 = vpop.permute.xlu0 %993
        %997 = vset.pattern.permute.xlu0 0
        %998 = vperm.xlu0 %997, %v988
        %v999 = vpop.permute.xlu0 %998
        %1002 = vset.pattern.permute.xlu0 0
        %1003 = vperm.xlu0 %1002, %v989
        %v1004 = vpop.permute.xlu0 %1003
        %1007 = vset.pattern.permute.xlu0 0
        %1008 = vperm.xlu0 %1007, %v990
        %v1009 = vpop.permute.xlu0 %1008
        %vm1011 = vcmask 48128
        %v1013 = vsel %vm1011, %v983, 0
        %v1016 = vsel %vm1011, %v984, 0
        %v1019 = vsel %vm1011, %v985, 0
        %v1022 = vsel %vm1011, %v986, 0
        %vm1024 = vcmask 1045504
        %v1026 = vsel %vm1024, %v982, 0
        %1028 = vmatpush.msra.mxu0 0.0
        %1029 = vmatpush.msra.mxu0 0.0
        %1030 = vmatpush.msra.mxu0 0.0
        %1031 = vmatpush.msra.mxu0 0.0
        %1032 = vmatpush.msra.mxu0 0.0
        %1033 = vmatpush.msra.mxu0 0.0
        %1034 = vmatpush.msra.mxu0 0.0
        %1035 = vmatpush.msra.mxu0 0.0
        %1036 = vmatpush.msra.mxu0 0.0
        %1037 = vmatpush.msra.mxu0 0.0
        %1038 = vmatpush.msra.mxu0 0.0
        %1039 = vmatpush.msra.mxu0 0.0
        %1040 = vmatpush.msra.mxu0 0.0
        %1041 = vmatpush.msra.mxu0 0.0
        %1042 = vmatpush.msra.mxu0 0.0
        %1043 = vmatpush.msra.mxu0 %v1026
        %1044 = vmatmul.f32.gmra.mxu0 %v1013
        %v1045 = vpop.f32.mrf.mxu0
        %v1046 = vadd.f32 %v994, %v1045
        %1047 = vmatmul.f32.gmra.mxu0 %v1016
        %v1048 = vpop.f32.mrf.mxu0
        %v1049 = vadd.f32 %v999, %v1048
        %1050 = vmatmul.f32.gmra.mxu0 %v1019
        %v1051 = vpop.f32.mrf.mxu0
        %v1052 = vadd.f32 %v1004, %v1051
        %1053 = vmatmul.f32.gmra.mxu0 %v1022
        %v1054 = vpop.f32.mrf.mxu0
        %v1055 = vadd.f32 %v1009, %v1054
        %1056 = vdwg.mxu0
        %v1057 = vld [vmem:[%s7] sm:$0xff]
        %v1058 = vld [vmem:[%s7 + $0x8] sm:$0xff]
        %v1059 = vld [vmem:[%s7 + $0x10] sm:$0xff]
        %v1060 = vld [vmem:[%s7 + $0x18] sm:$0xff]
        %vm1061 = vcmask 261120
        %v1063 = vsel %vm1061, %v1057, 0
        %v1066 = vsel %vm1061, %v1058, 0
        %v1069 = vsel %vm1061, %v1059, 0
        %v1072 = vsel %vm1061, %v1060, 0
        %1074 = vmatpush.msra.mxu0 0.0
        %1075 = vmatpush.msra.mxu0 0.0
        %1076 = vmatpush.msra.mxu0 0.0
        %1077 = vmatpush.msra.mxu0 0.0
        %1078 = vmatpush.msra.mxu0 0.0
        %1079 = vmatpush.msra.mxu0 0.0
        %1080 = vmatpush.msra.mxu0 0.0
        %1081 = vmatpush.msra.mxu0 0.0
        %1082 = vmatpush.msra.mxu0 0.0
        %1083 = vmatpush.msra.mxu0 0.0
        %1084 = vmatpush.msra.mxu0 0.0
        %1085 = vmatpush.msra.mxu0 0.0
        %1086 = vmatpush.msra.mxu0 %v1055
        %1087 = vmatpush.msra.mxu0 %v1052
        %1088 = vmatpush.msra.mxu0 %v1049
        %1089 = vmatpush.msra.mxu0 %v1046
        %1090 = vmatmul.f32.gmra.mxu0 %v1063
        %v1091 = vpop.f32.mrf.mxu0
        %v1092 = vadd.f32 0.0, %v1091
        %1093 = vmatmul.f32.gmra.mxu0 %v1066
        %v1094 = vpop.f32.mrf.mxu0
        %v1095 = vadd.f32 0.0, %v1094
        %1096 = vmatmul.f32.gmra.mxu0 %v1069
        %v1097 = vpop.f32.mrf.mxu0
        %v1098 = vadd.f32 0.0, %v1097
        %1099 = vmatmul.f32.gmra.mxu0 %v1072
        %v1100 = vpop.f32.mrf.mxu0
        %v1101 = vadd.f32 0.0, %v1100
        %1102 = vdwg.mxu0
        %v1103 = vld [vmem:[%s9] sm:$0xff]
        %v1104 = vld [vmem:[%s9 + $0x8] sm:$0xff]
        %v1105 = vld [vmem:[%s9 + $0x10] sm:$0xff]
        %v1106 = vld [vmem:[%s9 + $0x18] sm:$0xff]
        %v1107 = vld [vmem:[%s11] sm:$0xff]
        %v1108 = vld [vmem:[%s11 + $0x8] sm:$0xff]
        %v1109 = vld [vmem:[%s11 + $0x10] sm:$0xff]
        %v1110 = vld [vmem:[%s11 + $0x18] sm:$0xff]
        %1111 = vadd.xlane.f32.xlu0 %v1092
        %v1112 = vpop.xlane.xlu0 %1111
        %1113 = vadd.xlane.f32.xlu0 %v1095
        %v1114 = vpop.xlane.xlu0 %1113
        %1115 = vadd.xlane.f32.xlu0 %v1098
        %v1116 = vpop.xlane.xlu0 %1115
        %1117 = vadd.xlane.f32.xlu0 %v1101
        %v1118 = vpop.xlane.xlu0 %1117
        %v1119 = vrcp.pop 128.0
        %v1120 = vmul.f32 128.0, %v1119
        %v1121 = vsub.f32 1.0, %v1120
        %v1122 = vmul.f32 %v1119, %v1121
        %v1123 = vadd.f32 %v1119, %v1122
        %vm1124 = vweird.f32 %v1119
        %v1125 = vsel %vm1124, %v1119, %v1123
        %v1126 = vmul.f32 %v1112, %v1125
        %v1127 = vmul.f32 %v1114, %v1125
        %v1128 = vmul.f32 %v1116, %v1125
        %v1129 = vmul.f32 %v1118, %v1125
        %v1130 = vsub.f32 %v1092, %v1126
        %v1131 = vsub.f32 %v1095, %v1127
        %v1132 = vsub.f32 %v1098, %v1128
        %v1133 = vsub.f32 %v1101, %v1129
        %v1134 = vmul.f32 %v1130, %v1130
        %v1135 = vmul.f32 %v1131, %v1131
        %v1136 = vmul.f32 %v1132, %v1132
        %v1137 = vmul.f32 %v1133, %v1133
        %1138 = vadd.xlane.f32.xlu0 %v1134
        %v1139 = vpop.xlane.xlu0 %1138
        %1140 = vadd.xlane.f32.xlu0 %v1135
        %v1141 = vpop.xlane.xlu0 %1140
        %1142 = vadd.xlane.f32.xlu0 %v1136
        %v1143 = vpop.xlane.xlu0 %1142
        %1144 = vadd.xlane.f32.xlu0 %v1137
        %v1145 = vpop.xlane.xlu0 %1144
        %v1146 = vmul.f32 %v1139, 0.007874016
        %v1147 = vmul.f32 %v1141, 0.007874016
        %v1148 = vmul.f32 %v1143, 0.007874016
        %v1149 = vmul.f32 %v1145, 0.007874016
        %v1150 = vadd.f32 %v1146, 0.001
        %v1151 = vadd.f32 %v1147, 0.001
        %v1152 = vadd.f32 %v1148, 0.001
        %v1153 = vadd.f32 %v1149, 0.001
        %v1154 = vrsqrt.pop %v1150
        %v1155 = vmul.f32 %v1154, %v1150
        %v1156 = vmul.f32 %v1155, %v1154
        %v1157 = vmul.f32 0.5, %v1156
        %v1158 = vsub.f32 1.5, %v1157
        %v1159 = vmul.f32 %v1154, %v1158
        %vm1160 = vweird.f32 %v1150
        %vm1161 = vweird.f32 %v1154
        %vm1162 = vmor %vm1160, %vm1161
        %v1163 = vsel %vm1162, %v1154, %v1159
        %v1164 = vrsqrt.pop %v1151
        %v1165 = vmul.f32 %v1164, %v1151
        %v1166 = vmul.f32 %v1165, %v1164
        %v1167 = vmul.f32 0.5, %v1166
        %v1168 = vsub.f32 1.5, %v1167
        %v1169 = vmul.f32 %v1164, %v1168
        %vm1170 = vweird.f32 %v1151
        %vm1171 = vweird.f32 %v1164
        %vm1172 = vmor %vm1170, %vm1171
        %v1173 = vsel %vm1172, %v1164, %v1169
        %v1174 = vrsqrt.pop %v1152
        %v1175 = vmul.f32 %v1174, %v1152
        %v1176 = vmul.f32 %v1175, %v1174
        %v1177 = vmul.f32 0.5, %v1176
        %v1178 = vsub.f32 1.5, %v1177
        %v1179 = vmul.f32 %v1174, %v1178
        %vm1180 = vweird.f32 %v1152
        %vm1181 = vweird.f32 %v1174
        %vm1182 = vmor %vm1180, %vm1181
        %v1183 = vsel %vm1182, %v1174, %v1179
        %v1184 = vrsqrt.pop %v1153
        %v1185 = vmul.f32 %v1184, %v1153
        %v1186 = vmul.f32 %v1185, %v1184
        %v1187 = vmul.f32 0.5, %v1186
        %v1188 = vsub.f32 1.5, %v1187
        %v1189 = vmul.f32 %v1184, %v1188
        %vm1190 = vweird.f32 %v1153
        %vm1191 = vweird.f32 %v1184
        %vm1192 = vmor %vm1190, %vm1191
        %v1193 = vsel %vm1192, %v1184, %v1189
        %v1194 = vmul.f32 %v1103, %v1163
        %v1195 = vmul.f32 %v1104, %v1173
        %v1196 = vmul.f32 %v1105, %v1183
        %v1197 = vmul.f32 %v1106, %v1193
        %1199 = vset.pattern.permute.xlu0 0
        %1200 = vperm.xlu0 %1199, %v1194
        %v1201 = vpop.permute.xlu0 %1200
        %1204 = vset.pattern.permute.xlu0 0
        %1205 = vperm.xlu0 %1204, %v1195
        %v1206 = vpop.permute.xlu0 %1205
        %1209 = vset.pattern.permute.xlu0 0
        %1210 = vperm.xlu0 %1209, %v1196
        %v1211 = vpop.permute.xlu0 %1210
        %1214 = vset.pattern.permute.xlu0 0
        %1215 = vperm.xlu0 %1214, %v1197
        %v1216 = vpop.permute.xlu0 %1215
        %v1218 = vmul.f32 %v1130, %v1201
        %v1219 = vmul.f32 %v1131, %v1206
        %v1220 = vmul.f32 %v1132, %v1211
        %v1221 = vmul.f32 %v1133, %v1216
        %1223 = vset.pattern.permute.xlu0 0
        %1224 = vperm.xlu0 %1223, %v1107
        %v1225 = vpop.permute.xlu0 %1224
        %1228 = vset.pattern.permute.xlu0 0
        %1229 = vperm.xlu0 %1228, %v1108
        %v1230 = vpop.permute.xlu0 %1229
        %1233 = vset.pattern.permute.xlu0 0
        %1234 = vperm.xlu0 %1233, %v1109
        %v1235 = vpop.permute.xlu0 %1234
        %1238 = vset.pattern.permute.xlu0 0
        %1239 = vperm.xlu0 %1238, %v1110
        %v1240 = vpop.permute.xlu0 %1239
        %v1242 = vadd.f32 %v1218, %v1225
        %v1243 = vadd.f32 %v1219, %v1230
        %v1244 = vadd.f32 %v1220, %v1235
        %v1245 = vadd.f32 %v1221, %v1240
        %v1246 = vmax.f32 %v1242, 0.0
        %v1247 = vmax.f32 %v1243, 0.0
        %v1248 = vmax.f32 %v1244, 0.0
        %v1249 = vmax.f32 %v1245, 0.0
        %s1250 = scalar_lea.vmem %s7, 32
        %v1251 = vld [vmem:[%s1250] sm:$0xff]
        %v1252 = vld [vmem:[%s1250 + $0x8] sm:$0xff]
        %v1253 = vld [vmem:[%s1250 + $0x10] sm:$0xff]
        %v1254 = vld [vmem:[%s1250 + $0x18] sm:$0xff]
        %v1256 = vsel %vm1061, %v1251, 0
        %v1259 = vsel %vm1061, %v1252, 0
        %v1262 = vsel %vm1061, %v1253, 0
        %v1265 = vsel %vm1061, %v1254, 0
        %1267 = vmatpush.msra.mxu0 0.0
        %1268 = vmatpush.msra.mxu0 0.0
        %1269 = vmatpush.msra.mxu0 0.0
        %1270 = vmatpush.msra.mxu0 0.0
        %1271 = vmatpush.msra.mxu0 0.0
        %1272 = vmatpush.msra.mxu0 0.0
        %1273 = vmatpush.msra.mxu0 0.0
        %1274 = vmatpush.msra.mxu0 0.0
        %1275 = vmatpush.msra.mxu0 0.0
        %1276 = vmatpush.msra.mxu0 0.0
        %1277 = vmatpush.msra.mxu0 0.0
        %1278 = vmatpush.msra.mxu0 0.0
        %1279 = vmatpush.msra.mxu0 %v1249
        %1280 = vmatpush.msra.mxu0 %v1248
        %1281 = vmatpush.msra.mxu0 %v1247
        %1282 = vmatpush.msra.mxu0 %v1246
        %1283 = vmatmul.f32.gmra.mxu0 %v1256
        %v1284 = vpop.f32.mrf.mxu0
        %v1285 = vadd.f32 0.0, %v1284
        %1286 = vmatmul.f32.gmra.mxu0 %v1259
        %v1287 = vpop.f32.mrf.mxu0
        %v1288 = vadd.f32 0.0, %v1287
        %1289 = vmatmul.f32.gmra.mxu0 %v1262
        %v1290 = vpop.f32.mrf.mxu0
        %v1291 = vadd.f32 0.0, %v1290
        %1292 = vmatmul.f32.gmra.mxu0 %v1265
        %v1293 = vpop.f32.mrf.mxu0
        %v1294 = vadd.f32 0.0, %v1293
        %1295 = vdwg.mxu0
        %s1296 = scalar_lea.vmem %s9, 32
        %v1297 = vld [vmem:[%s1296] sm:$0xff]
        %v1298 = vld [vmem:[%s1296 + $0x8] sm:$0xff]
        %v1299 = vld [vmem:[%s1296 + $0x10] sm:$0xff]
        %v1300 = vld [vmem:[%s1296 + $0x18] sm:$0xff]
        %s1301 = scalar_lea.vmem %s11, 32
        %v1302 = vld [vmem:[%s1301] sm:$0xff]
        %v1303 = vld [vmem:[%s1301 + $0x8] sm:$0xff]
        %v1304 = vld [vmem:[%s1301 + $0x10] sm:$0xff]
        %v1305 = vld [vmem:[%s1301 + $0x18] sm:$0xff]
        %1306 = vadd.xlane.f32.xlu0 %v1285
        %v1307 = vpop.xlane.xlu0 %1306
        %1308 = vadd.xlane.f32.xlu0 %v1288
        %v1309 = vpop.xlane.xlu0 %1308
        %1310 = vadd.xlane.f32.xlu0 %v1291
        %v1311 = vpop.xlane.xlu0 %1310
        %1312 = vadd.xlane.f32.xlu0 %v1294
        %v1313 = vpop.xlane.xlu0 %1312
        %v1314 = vmul.f32 %v1307, %v1125
        %v1315 = vmul.f32 %v1309, %v1125
        %v1316 = vmul.f32 %v1311, %v1125
        %v1317 = vmul.f32 %v1313, %v1125
        %v1318 = vsub.f32 %v1285, %v1314
        %v1319 = vsub.f32 %v1288, %v1315
        %v1320 = vsub.f32 %v1291, %v1316
        %v1321 = vsub.f32 %v1294, %v1317
        %v1322 = vmul.f32 %v1318, %v1318
        %v1323 = vmul.f32 %v1319, %v1319
        %v1324 = vmul.f32 %v1320, %v1320
        %v1325 = vmul.f32 %v1321, %v1321
        %1326 = vadd.xlane.f32.xlu0 %v1322
        %v1327 = vpop.xlane.xlu0 %1326
        %1328 = vadd.xlane.f32.xlu0 %v1323
        %v1329 = vpop.xlane.xlu0 %1328
        %1330 = vadd.xlane.f32.xlu0 %v1324
        %v1331 = vpop.xlane.xlu0 %1330
        %1332 = vadd.xlane.f32.xlu0 %v1325
        %v1333 = vpop.xlane.xlu0 %1332
        %v1334 = vmul.f32 %v1327, 0.007874016
        %v1335 = vmul.f32 %v1329, 0.007874016
        %v1336 = vmul.f32 %v1331, 0.007874016
        %v1337 = vmul.f32 %v1333, 0.007874016
        %v1338 = vadd.f32 %v1334, 0.001
        %v1339 = vadd.f32 %v1335, 0.001
        %v1340 = vadd.f32 %v1336, 0.001
        %v1341 = vadd.f32 %v1337, 0.001
        %v1342 = vrsqrt.pop %v1338
        %v1343 = vmul.f32 %v1342, %v1338
        %v1344 = vmul.f32 %v1343, %v1342
        %v1345 = vmul.f32 0.5, %v1344
        %v1346 = vsub.f32 1.5, %v1345
        %v1347 = vmul.f32 %v1342, %v1346
        %vm1348 = vweird.f32 %v1338
        %vm1349 = vweird.f32 %v1342
        %vm1350 = vmor %vm1348, %vm1349
        %v1351 = vsel %vm1350, %v1342, %v1347
        %v1352 = vrsqrt.pop %v1339
        %v1353 = vmul.f32 %v1352, %v1339
        %v1354 = vmul.f32 %v1353, %v1352
        %v1355 = vmul.f32 0.5, %v1354
        %v1356 = vsub.f32 1.5, %v1355
        %v1357 = vmul.f32 %v1352, %v1356
        %vm1358 = vweird.f32 %v1339
        %vm1359 = vweird.f32 %v1352
        %vm1360 = vmor %vm1358, %vm1359
        %v1361 = vsel %vm1360, %v1352, %v1357
        %v1362 = vrsqrt.pop %v1340
        %v1363 = vmul.f32 %v1362, %v1340
        %v1364 = vmul.f32 %v1363, %v1362
        %v1365 = vmul.f32 0.5, %v1364
        %v1366 = vsub.f32 1.5, %v1365
        %v1367 = vmul.f32 %v1362, %v1366
        %vm1368 = vweird.f32 %v1340
        %vm1369 = vweird.f32 %v1362
        %vm1370 = vmor %vm1368, %vm1369
        %v1371 = vsel %vm1370, %v1362, %v1367
        %v1372 = vrsqrt.pop %v1341
        %v1373 = vmul.f32 %v1372, %v1341
        %v1374 = vmul.f32 %v1373, %v1372
        %v1375 = vmul.f32 0.5, %v1374
        %v1376 = vsub.f32 1.5, %v1375
        %v1377 = vmul.f32 %v1372, %v1376
        %vm1378 = vweird.f32 %v1341
        %vm1379 = vweird.f32 %v1372
        %vm1380 = vmor %vm1378, %vm1379
        %v1381 = vsel %vm1380, %v1372, %v1377
        %v1382 = vmul.f32 %v1297, %v1351
        %v1383 = vmul.f32 %v1298, %v1361
        %v1384 = vmul.f32 %v1299, %v1371
        %v1385 = vmul.f32 %v1300, %v1381
        %1387 = vset.pattern.permute.xlu0 0
        %1388 = vperm.xlu0 %1387, %v1382
        %v1389 = vpop.permute.xlu0 %1388
        %1392 = vset.pattern.permute.xlu0 0
        %1393 = vperm.xlu0 %1392, %v1383
        %v1394 = vpop.permute.xlu0 %1393
        %1397 = vset.pattern.permute.xlu0 0
        %1398 = vperm.xlu0 %1397, %v1384
        %v1399 = vpop.permute.xlu0 %1398
        %1402 = vset.pattern.permute.xlu0 0
        %1403 = vperm.xlu0 %1402, %v1385
        %v1404 = vpop.permute.xlu0 %1403
        %v1406 = vmul.f32 %v1318, %v1389
        %v1407 = vmul.f32 %v1319, %v1394
        %v1408 = vmul.f32 %v1320, %v1399
        %v1409 = vmul.f32 %v1321, %v1404
        %1411 = vset.pattern.permute.xlu0 0
        %1412 = vperm.xlu0 %1411, %v1302
        %v1413 = vpop.permute.xlu0 %1412
        %1416 = vset.pattern.permute.xlu0 0
        %1417 = vperm.xlu0 %1416, %v1303
        %v1418 = vpop.permute.xlu0 %1417
        %1421 = vset.pattern.permute.xlu0 0
        %1422 = vperm.xlu0 %1421, %v1304
        %v1423 = vpop.permute.xlu0 %1422
        %1426 = vset.pattern.permute.xlu0 0
        %1427 = vperm.xlu0 %1426, %v1305
        %v1428 = vpop.permute.xlu0 %1427
        %v1430 = vadd.f32 %v1406, %v1413
        %v1431 = vadd.f32 %v1407, %v1418
        %v1432 = vadd.f32 %v1408, %v1423
        %v1433 = vadd.f32 %v1409, %v1428
        %v1434 = vmax.f32 %v1430, 0.0
        %v1435 = vmax.f32 %v1431, 0.0
        %v1436 = vmax.f32 %v1432, 0.0
        %v1437 = vmax.f32 %v1433, 0.0
        %s1438 = scalar_lea.vmem %s7, 64
        %v1439 = vld [vmem:[%s1438] sm:$0xff]
        %v1440 = vld [vmem:[%s1438 + $0x8] sm:$0xff]
        %v1441 = vld [vmem:[%s1438 + $0x10] sm:$0xff]
        %v1442 = vld [vmem:[%s1438 + $0x18] sm:$0xff]
        %v1444 = vsel %vm1061, %v1439, 0
        %v1447 = vsel %vm1061, %v1440, 0
        %v1450 = vsel %vm1061, %v1441, 0
        %v1453 = vsel %vm1061, %v1442, 0
        %1455 = vmatpush.msra.mxu0 0.0
        %1456 = vmatpush.msra.mxu0 0.0
        %1457 = vmatpush.msra.mxu0 0.0
        %1458 = vmatpush.msra.mxu0 0.0
        %1459 = vmatpush.msra.mxu0 0.0
        %1460 = vmatpush.msra.mxu0 0.0
        %1461 = vmatpush.msra.mxu0 0.0
        %1462 = vmatpush.msra.mxu0 0.0
        %1463 = vmatpush.msra.mxu0 0.0
        %1464 = vmatpush.msra.mxu0 0.0
        %1465 = vmatpush.msra.mxu0 0.0
        %1466 = vmatpush.msra.mxu0 0.0
        %1467 = vmatpush.msra.mxu0 %v1437
        %1468 = vmatpush.msra.mxu0 %v1436
        %1469 = vmatpush.msra.mxu0 %v1435
        %1470 = vmatpush.msra.mxu0 %v1434
        %1471 = vmatmul.f32.gmra.mxu0 %v1444
        %v1472 = vpop.f32.mrf.mxu0
        %v1473 = vadd.f32 0.0, %v1472
        %1474 = vmatmul.f32.gmra.mxu0 %v1447
        %v1475 = vpop.f32.mrf.mxu0
        %v1476 = vadd.f32 0.0, %v1475
        %1477 = vmatmul.f32.gmra.mxu0 %v1450
        %v1478 = vpop.f32.mrf.mxu0
        %v1479 = vadd.f32 0.0, %v1478
        %1480 = vmatmul.f32.gmra.mxu0 %v1453
        %v1481 = vpop.f32.mrf.mxu0
        %v1482 = vadd.f32 0.0, %v1481
        %1483 = vdwg.mxu0
        %s1484 = scalar_lea.vmem %s9, 64
        %v1485 = vld [vmem:[%s1484] sm:$0xff]
        %v1486 = vld [vmem:[%s1484 + $0x8] sm:$0xff]
        %v1487 = vld [vmem:[%s1484 + $0x10] sm:$0xff]
        %v1488 = vld [vmem:[%s1484 + $0x18] sm:$0xff]
        %s1489 = scalar_lea.vmem %s11, 64
        %v1490 = vld [vmem:[%s1489] sm:$0xff]
        %v1491 = vld [vmem:[%s1489 + $0x8] sm:$0xff]
        %v1492 = vld [vmem:[%s1489 + $0x10] sm:$0xff]
        %v1493 = vld [vmem:[%s1489 + $0x18] sm:$0xff]
        %1494 = vadd.xlane.f32.xlu0 %v1473
        %v1495 = vpop.xlane.xlu0 %1494
        %1496 = vadd.xlane.f32.xlu0 %v1476
        %v1497 = vpop.xlane.xlu0 %1496
        %1498 = vadd.xlane.f32.xlu0 %v1479
        %v1499 = vpop.xlane.xlu0 %1498
        %1500 = vadd.xlane.f32.xlu0 %v1482
        %v1501 = vpop.xlane.xlu0 %1500
        %v1502 = vmul.f32 %v1495, %v1125
        %v1503 = vmul.f32 %v1497, %v1125
        %v1504 = vmul.f32 %v1499, %v1125
        %v1505 = vmul.f32 %v1501, %v1125
        %v1506 = vsub.f32 %v1473, %v1502
        %v1507 = vsub.f32 %v1476, %v1503
        %v1508 = vsub.f32 %v1479, %v1504
        %v1509 = vsub.f32 %v1482, %v1505
        %v1510 = vmul.f32 %v1506, %v1506
        %v1511 = vmul.f32 %v1507, %v1507
        %v1512 = vmul.f32 %v1508, %v1508
        %v1513 = vmul.f32 %v1509, %v1509
        %1514 = vadd.xlane.f32.xlu0 %v1510
        %v1515 = vpop.xlane.xlu0 %1514
        %1516 = vadd.xlane.f32.xlu0 %v1511
        %v1517 = vpop.xlane.xlu0 %1516
        %1518 = vadd.xlane.f32.xlu0 %v1512
        %v1519 = vpop.xlane.xlu0 %1518
        %1520 = vadd.xlane.f32.xlu0 %v1513
        %v1521 = vpop.xlane.xlu0 %1520
        %v1522 = vmul.f32 %v1515, 0.007874016
        %v1523 = vmul.f32 %v1517, 0.007874016
        %v1524 = vmul.f32 %v1519, 0.007874016
        %v1525 = vmul.f32 %v1521, 0.007874016
        %v1526 = vadd.f32 %v1522, 0.001
        %v1527 = vadd.f32 %v1523, 0.001
        %v1528 = vadd.f32 %v1524, 0.001
        %v1529 = vadd.f32 %v1525, 0.001
        %v1530 = vrsqrt.pop %v1526
        %v1531 = vmul.f32 %v1530, %v1526
        %v1532 = vmul.f32 %v1531, %v1530
        %v1533 = vmul.f32 0.5, %v1532
        %v1534 = vsub.f32 1.5, %v1533
        %v1535 = vmul.f32 %v1530, %v1534
        %vm1536 = vweird.f32 %v1526
        %vm1537 = vweird.f32 %v1530
        %vm1538 = vmor %vm1536, %vm1537
        %v1539 = vsel %vm1538, %v1530, %v1535
        %v1540 = vrsqrt.pop %v1527
        %v1541 = vmul.f32 %v1540, %v1527
        %v1542 = vmul.f32 %v1541, %v1540
        %v1543 = vmul.f32 0.5, %v1542
        %v1544 = vsub.f32 1.5, %v1543
        %v1545 = vmul.f32 %v1540, %v1544
        %vm1546 = vweird.f32 %v1527
        %vm1547 = vweird.f32 %v1540
        %vm1548 = vmor %vm1546, %vm1547
        %v1549 = vsel %vm1548, %v1540, %v1545
        %v1550 = vrsqrt.pop %v1528
        %v1551 = vmul.f32 %v1550, %v1528
        %v1552 = vmul.f32 %v1551, %v1550
        %v1553 = vmul.f32 0.5, %v1552
        %v1554 = vsub.f32 1.5, %v1553
        %v1555 = vmul.f32 %v1550, %v1554
        %vm1556 = vweird.f32 %v1528
        %vm1557 = vweird.f32 %v1550
        %vm1558 = vmor %vm1556, %vm1557
        %v1559 = vsel %vm1558, %v1550, %v1555
        %v1560 = vrsqrt.pop %v1529
        %v1561 = vmul.f32 %v1560, %v1529
        %v1562 = vmul.f32 %v1561, %v1560
        %v1563 = vmul.f32 0.5, %v1562
        %v1564 = vsub.f32 1.5, %v1563
        %v1565 = vmul.f32 %v1560, %v1564
        %vm1566 = vweird.f32 %v1529
        %vm1567 = vweird.f32 %v1560
        %vm1568 = vmor %vm1566, %vm1567
        %v1569 = vsel %vm1568, %v1560, %v1565
        %v1570 = vmul.f32 %v1485, %v1539
        %v1571 = vmul.f32 %v1486, %v1549
        %v1572 = vmul.f32 %v1487, %v1559
        %v1573 = vmul.f32 %v1488, %v1569
        %1575 = vset.pattern.permute.xlu0 0
        %1576 = vperm.xlu0 %1575, %v1570
        %v1577 = vpop.permute.xlu0 %1576
        %1580 = vset.pattern.permute.xlu0 0
        %1581 = vperm.xlu0 %1580, %v1571
        %v1582 = vpop.permute.xlu0 %1581
        %1585 = vset.pattern.permute.xlu0 0
        %1586 = vperm.xlu0 %1585, %v1572
        %v1587 = vpop.permute.xlu0 %1586
        %1590 = vset.pattern.permute.xlu0 0
        %1591 = vperm.xlu0 %1590, %v1573
        %v1592 = vpop.permute.xlu0 %1591
        %v1594 = vmul.f32 %v1506, %v1577
        %v1595 = vmul.f32 %v1507, %v1582
        %v1596 = vmul.f32 %v1508, %v1587
        %v1597 = vmul.f32 %v1509, %v1592
        %1599 = vset.pattern.permute.xlu0 0
        %1600 = vperm.xlu0 %1599, %v1490
        %v1601 = vpop.permute.xlu0 %1600
        %1604 = vset.pattern.permute.xlu0 0
        %1605 = vperm.xlu0 %1604, %v1491
        %v1606 = vpop.permute.xlu0 %1605
        %1609 = vset.pattern.permute.xlu0 0
        %1610 = vperm.xlu0 %1609, %v1492
        %v1611 = vpop.permute.xlu0 %1610
        %1614 = vset.pattern.permute.xlu0 0
        %1615 = vperm.xlu0 %1614, %v1493
        %v1616 = vpop.permute.xlu0 %1615
        %v1618 = vadd.f32 %v1594, %v1601
        %v1619 = vadd.f32 %v1595, %v1606
        %v1620 = vadd.f32 %v1596, %v1611
        %v1621 = vadd.f32 %v1597, %v1616
        %v1622 = vmax.f32 %v1618, 0.0
        %v1623 = vmax.f32 %v1619, 0.0
        %v1624 = vmax.f32 %v1620, 0.0
        %v1625 = vmax.f32 %v1621, 0.0
        %1626 = vadd.xlane.f32.xlu0 %v1622
        %v1627 = vpop.xlane.xlu0 %1626
        %1628 = vadd.xlane.f32.xlu0 %v1623
        %v1629 = vpop.xlane.xlu0 %1628
        %1630 = vadd.xlane.f32.xlu0 %v1624
        %v1631 = vpop.xlane.xlu0 %1630
        %1632 = vadd.xlane.f32.xlu0 %v1625
        %v1633 = vpop.xlane.xlu0 %1632
        %v1634 = vmul.f32 %v1627, %v1125
        %v1635 = vmul.f32 %v1629, %v1125
        %v1636 = vmul.f32 %v1631, %v1125
        %v1637 = vmul.f32 %v1633, %v1125
        %v1638 = vsub.f32 %v1622, %v1634
        %v1639 = vsub.f32 %v1623, %v1635
        %v1640 = vsub.f32 %v1624, %v1636
        %v1641 = vsub.f32 %v1625, %v1637
        %v1642 = vmul.f32 %v1638, %v1638
        %v1643 = vmul.f32 %v1639, %v1639
        %v1644 = vmul.f32 %v1640, %v1640
        %v1645 = vmul.f32 %v1641, %v1641
        %1646 = vadd.xlane.f32.xlu0 %v1642
        %v1647 = vpop.xlane.xlu0 %1646
        %1648 = vadd.xlane.f32.xlu0 %v1643
        %v1649 = vpop.xlane.xlu0 %1648
        %1650 = vadd.xlane.f32.xlu0 %v1644
        %v1651 = vpop.xlane.xlu0 %1650
        %1652 = vadd.xlane.f32.xlu0 %v1645
        %v1653 = vpop.xlane.xlu0 %1652
        %v1654 = vmul.f32 %v1647, %v1125
        %v1655 = vmul.f32 %v1649, %v1125
        %v1656 = vmul.f32 %v1651, %v1125
        %v1657 = vmul.f32 %v1653, %v1125
        %v1658 = vadd.f32 %v1654, 0.001
        %v1659 = vadd.f32 %v1655, 0.001
        %v1660 = vadd.f32 %v1656, 0.001
        %v1661 = vadd.f32 %v1657, 0.001
        %v1662 = vrsqrt.pop %v1658
        %v1663 = vmul.f32 %v1662, %v1658
        %v1664 = vmul.f32 %v1663, %v1662
        %v1665 = vmul.f32 0.5, %v1664
        %v1666 = vsub.f32 1.5, %v1665
        %v1667 = vmul.f32 %v1662, %v1666
        %vm1668 = vweird.f32 %v1658
        %vm1669 = vweird.f32 %v1662
        %vm1670 = vmor %vm1668, %vm1669
        %v1671 = vsel %vm1670, %v1662, %v1667
        %v1672 = vrsqrt.pop %v1659
        %v1673 = vmul.f32 %v1672, %v1659
        %v1674 = vmul.f32 %v1673, %v1672
        %v1675 = vmul.f32 0.5, %v1674
        %v1676 = vsub.f32 1.5, %v1675
        %v1677 = vmul.f32 %v1672, %v1676
        %vm1678 = vweird.f32 %v1659
        %vm1679 = vweird.f32 %v1672
        %vm1680 = vmor %vm1678, %vm1679
        %v1681 = vsel %vm1680, %v1672, %v1677
        %v1682 = vrsqrt.pop %v1660
        %v1683 = vmul.f32 %v1682, %v1660
        %v1684 = vmul.f32 %v1683, %v1682
        %v1685 = vmul.f32 0.5, %v1684
        %v1686 = vsub.f32 1.5, %v1685
        %v1687 = vmul.f32 %v1682, %v1686
        %vm1688 = vweird.f32 %v1660
        %vm1689 = vweird.f32 %v1682
        %vm1690 = vmor %vm1688, %vm1689
        %v1691 = vsel %vm1690, %v1682, %v1687
        %v1692 = vrsqrt.pop %v1661
        %v1693 = vmul.f32 %v1692, %v1661
        %v1694 = vmul.f32 %v1693, %v1692
        %v1695 = vmul.f32 0.5, %v1694
        %v1696 = vsub.f32 1.5, %v1695
        %v1697 = vmul.f32 %v1692, %v1696
        %vm1698 = vweird.f32 %v1661
        %vm1699 = vweird.f32 %v1692
        %vm1700 = vmor %vm1698, %vm1699
        %v1701 = vsel %vm1700, %v1692, %v1697
        %v1702 = vld [vmem:[%s17] sm:$0xff]
        %v1703 = vld [vmem:[%s17 + $0x8] sm:$0xff]
        %v1704 = vld [vmem:[%s17 + $0x10] sm:$0xff]
        %v1705 = vld [vmem:[%s17 + $0x18] sm:$0xff]
        %v1706 = vmul.f32 %v1702, %v1671
        %v1707 = vmul.f32 %v1703, %v1681
        %v1708 = vmul.f32 %v1704, %v1691
        %v1709 = vmul.f32 %v1705, %v1701
        %1711 = vset.pattern.permute.xlu0 0
        %1712 = vperm.xlu0 %1711, %v1706
        %v1713 = vpop.permute.xlu0 %1712
        %1716 = vset.pattern.permute.xlu0 0
        %1717 = vperm.xlu0 %1716, %v1707
        %v1718 = vpop.permute.xlu0 %1717
        %1721 = vset.pattern.permute.xlu0 0
        %1722 = vperm.xlu0 %1721, %v1708
        %v1723 = vpop.permute.xlu0 %1722
        %1726 = vset.pattern.permute.xlu0 0
        %1727 = vperm.xlu0 %1726, %v1709
        %v1728 = vpop.permute.xlu0 %1727
        %v1730 = vmul.f32 %v1638, %v1713
        %v1731 = vmul.f32 %v1639, %v1718
        %v1732 = vmul.f32 %v1640, %v1723
        %v1733 = vmul.f32 %v1641, %v1728
        %v1734 = vld [vmem:[%s19] sm:$0xff]
        %v1735 = vld [vmem:[%s19 + $0x8] sm:$0xff]
        %v1736 = vld [vmem:[%s19 + $0x10] sm:$0xff]
        %v1737 = vld [vmem:[%s19 + $0x18] sm:$0xff]
        %1739 = vset.pattern.permute.xlu0 0
        %1740 = vperm.xlu0 %1739, %v1734
        %v1741 = vpop.permute.xlu0 %1740
        %1744 = vset.pattern.permute.xlu0 0
        %1745 = vperm.xlu0 %1744, %v1735
        %v1746 = vpop.permute.xlu0 %1745
        %1749 = vset.pattern.permute.xlu0 0
        %1750 = vperm.xlu0 %1749, %v1736
        %v1751 = vpop.permute.xlu0 %1750
        %1754 = vset.pattern.permute.xlu0 0
        %1755 = vperm.xlu0 %1754, %v1737
        %v1756 = vpop.permute.xlu0 %1755
        %v1758 = vadd.f32 %v1730, %v1741
        %v1759 = vadd.f32 %v1731, %v1746
        %v1760 = vadd.f32 %v1732, %v1751
        %v1761 = vadd.f32 %v1733, %v1756
        %v1762 = vmax.f32 %v1758, 0.0
        %v1763 = vmax.f32 %v1759, 0.0
        %v1764 = vmax.f32 %v1760, 0.0
        %v1765 = vmax.f32 %v1761, 0.0
        %v1766 = vld [vmem:[%s13] sm:$0xff]
        %v1767 = vld [vmem:[%s15] sm:$0xff]
        %1769 = vset.pattern.permute.xlu0 0
        %1770 = vperm.xlu0 %1769, %v1767
        %v1771 = vpop.permute.xlu0 %1770
        %v1774 = vsel %vm1061, %v1766, 0
        %1776 = vmatpush.msra.mxu0 0.0
        %1777 = vmatpush.msra.mxu0 0.0
        %1778 = vmatpush.msra.mxu0 0.0
        %1779 = vmatpush.msra.mxu0 0.0
        %1780 = vmatpush.msra.mxu0 0.0
        %1781 = vmatpush.msra.mxu0 0.0
        %1782 = vmatpush.msra.mxu0 0.0
        %1783 = vmatpush.msra.mxu0 0.0
        %1784 = vmatpush.msra.mxu0 0.0
        %1785 = vmatpush.msra.mxu0 0.0
        %1786 = vmatpush.msra.mxu0 0.0
        %1787 = vmatpush.msra.mxu0 0.0
        %1788 = vmatpush.msra.mxu0 %v1765
        %1789 = vmatpush.msra.mxu0 %v1764
        %1790 = vmatpush.msra.mxu0 %v1763
        %1791 = vmatpush.msra.mxu0 %v1762
        %1792 = vmatmul.f32.gmra.mxu0 %v1774
        %v1793 = vpop.f32.mrf.mxu0
        %v1794 = vadd.f32 %v1771, %v1793
        %1795 = vdwg.mxu0
        %1796 = vmax.xlane.f32.xlu0 %v1794
        %v1797 = vpop.xlane.xlu0 %1796
        %v1798 = vsub.f32 %v1794, %v1797
        %v1799 = vmul.f32 %v1798, 1.442695
        %v1800 = vpow.pop %v1799
        %1801 = vadd.xlane.f32.xlu0 %v1800
        %v1802 = vpop.xlane.xlu0 %1801
        %v1803 = vrcp.pop %v1802
        %v1804 = vmul.f32 %v1800, %v1803
        %1805 = vmatpush.xpose.msra.mxu0 0.0
        %1806 = vmatpush.xpose.msra.mxu0 0.0
        %1807 = vmatpush.xpose.msra.mxu0 0.0
        %1808 = vmatpush.xpose.msra.mxu0 0.0
        %1809 = vmatpush.xpose.msra.mxu0 0.0
        %1810 = vmatpush.xpose.msra.mxu0 0.0
        %1811 = vmatpush.xpose.msra.mxu0 0.0
        %1812 = vmatpush.xpose.msra.mxu0 0.0
        %1813 = vmatpush.xpose.msra.mxu0 0.0
        %1814 = vmatpush.xpose.msra.mxu0 0.0
        %1815 = vmatpush.xpose.msra.mxu0 0.0
        %1816 = vmatpush.xpose.msra.mxu0 0.0
        %1817 = vmatpush.xpose.msra.mxu0 0.0
        %1818 = vmatpush.xpose.msra.mxu0 0.0
        %1819 = vmatpush.xpose.msra.mxu0 0.0
        %1820 = vmatpush.xpose.msra.mxu0 %v1804
        %1821 = vmatmul.f32.gmra.mxu0 %v1622
        %v1822 = vpop.f32.mrf.mxu0
        %v1823 = vadd.f32 0.0, %v1822
        %1824 = vmatmul.f32.gmra.mxu0 %v1623
        %v1825 = vpop.f32.mrf.mxu0
        %v1826 = vadd.f32 0.0, %v1825
        %1827 = vmatmul.f32.gmra.mxu0 %v1624
        %v1828 = vpop.f32.mrf.mxu0
        %v1829 = vadd.f32 0.0, %v1828
        %1830 = vmatmul.f32.gmra.mxu0 %v1625
        %v1831 = vpop.f32.mrf.mxu0
        %v1832 = vadd.f32 0.0, %v1831
        %1833 = vdwg.mxu0
        %vm1834 = vcmask 64512
        %v1835 = vsel %vm1834, %v1823, 0.0
        %1836 = vadd.xlane.f32.xlu0 %v1835
        %v1837 = vpop.xlane.xlu0 %1836
        %v1838 = vsel %vm1834, %v1826, 0.0
        %1839 = vadd.xlane.f32.xlu0 %v1838
        %v1840 = vpop.xlane.xlu0 %1839
        %v1841 = vsel %vm1834, %v1829, 0.0
        %1842 = vadd.xlane.f32.xlu0 %v1841
        %v1843 = vpop.xlane.xlu0 %1842
        %v1844 = vsel %vm1834, %v1832, 0.0
        %1845 = vadd.xlane.f32.xlu0 %v1844
        %v1846 = vpop.xlane.xlu0 %1845
        %v1847 = vrcp.pop 8.0
        %v1848 = vmul.f32 8.0, %v1847
        %v1849 = vsub.f32 1.0, %v1848
        %v1850 = vmul.f32 %v1847, %v1849
        %v1851 = vadd.f32 %v1847, %v1850
        %vm1852 = vweird.f32 %v1847
        %v1853 = vsel %vm1852, %v1847, %v1851
        %v1854 = vmul.f32 %v1837, %v1853
        %v1855 = vmul.f32 %v1840, %v1853
        %v1856 = vmul.f32 %v1843, %v1853
        %v1857 = vmul.f32 %v1846, %v1853
        %v1858 = vsub.f32 %v1823, %v1854
        %v1859 = vsub.f32 %v1826, %v1855
        %v1860 = vsub.f32 %v1829, %v1856
        %v1861 = vsub.f32 %v1832, %v1857
        %v1862 = vmul.f32 %v1858, %v1858
        %v1863 = vmul.f32 %v1859, %v1859
        %v1864 = vmul.f32 %v1860, %v1860
        %v1865 = vmul.f32 %v1861, %v1861
        %v1866 = vsel %vm1834, %v1862, 0.0
        %1867 = vadd.xlane.f32.xlu0 %v1866
        %v1868 = vpop.xlane.xlu0 %1867
        %v1869 = vsel %vm1834, %v1863, 0.0
        %1870 = vadd.xlane.f32.xlu0 %v1869
        %v1871 = vpop.xlane.xlu0 %1870
        %v1872 = vsel %vm1834, %v1864, 0.0
        %1873 = vadd.xlane.f32.xlu0 %v1872
        %v1874 = vpop.xlane.xlu0 %1873
        %v1875 = vsel %vm1834, %v1865, 0.0
        %1876 = vadd.xlane.f32.xlu0 %v1875
        %v1877 = vpop.xlane.xlu0 %1876
        %v1878 = vmul.f32 %v1868, %v1853
        %v1879 = vmul.f32 %v1871, %v1853
        %v1880 = vmul.f32 %v1874, %v1853
        %v1881 = vmul.f32 %v1877, %v1853
        %v1882 = vadd.f32 %v1878, 0.001
        %v1883 = vadd.f32 %v1879, 0.001
        %v1884 = vadd.f32 %v1880, 0.001
        %v1885 = vadd.f32 %v1881, 0.001
        %v1886 = vrsqrt.pop %v1882
        %v1887 = vmul.f32 %v1886, %v1882
        %v1888 = vmul.f32 %v1887, %v1886
        %v1889 = vmul.f32 0.5, %v1888
        %v1890 = vsub.f32 1.5, %v1889
        %v1891 = vmul.f32 %v1886, %v1890
        %vm1892 = vweird.f32 %v1882
        %vm1893 = vweird.f32 %v1886
        %vm1894 = vmor %vm1892, %vm1893
        %v1895 = vsel %vm1894, %v1886, %v1891
        %v1896 = vrsqrt.pop %v1883
        %v1897 = vmul.f32 %v1896, %v1883
        %v1898 = vmul.f32 %v1897, %v1896
        %v1899 = vmul.f32 0.5, %v1898
        %v1900 = vsub.f32 1.5, %v1899
        %v1901 = vmul.f32 %v1896, %v1900
        %vm1902 = vweird.f32 %v1883
        %vm1903 = vweird.f32 %v1896
        %vm1904 = vmor %vm1902, %vm1903
        %v1905 = vsel %vm1904, %v1896, %v1901
        %v1906 = vrsqrt.pop %v1884
        %v1907 = vmul.f32 %v1906, %v1884
        %v1908 = vmul.f32 %v1907, %v1906
        %v1909 = vmul.f32 0.5, %v1908
        %v1910 = vsub.f32 1.5, %v1909
        %v1911 = vmul.f32 %v1906, %v1910
        %vm1912 = vweird.f32 %v1884
        %vm1913 = vweird.f32 %v1906
        %vm1914 = vmor %vm1912, %vm1913
        %v1915 = vsel %vm1914, %v1906, %v1911
        %v1916 = vrsqrt.pop %v1885
        %v1917 = vmul.f32 %v1916, %v1885
        %v1918 = vmul.f32 %v1917, %v1916
        %v1919 = vmul.f32 0.5, %v1918
        %v1920 = vsub.f32 1.5, %v1919
        %v1921 = vmul.f32 %v1916, %v1920
        %vm1922 = vweird.f32 %v1885
        %vm1923 = vweird.f32 %v1916
        %vm1924 = vmor %vm1922, %vm1923
        %v1925 = vsel %vm1924, %v1916, %v1921
        %v1926 = vld [vmem:[%s25] sm:$0xff]
        %v1927 = vld [vmem:[%s25 + $0x8] sm:$0xff]
        %v1928 = vld [vmem:[%s25 + $0x10] sm:$0xff]
        %v1929 = vld [vmem:[%s25 + $0x18] sm:$0xff]
        %v1930 = vmul.f32 %v1926, %v1895
        %v1931 = vmul.f32 %v1927, %v1905
        %v1932 = vmul.f32 %v1928, %v1915
        %v1933 = vmul.f32 %v1929, %v1925
        %1935 = vset.pattern.permute.xlu0 0
        %1936 = vperm.xlu0 %1935, %v1930
        %v1937 = vpop.permute.xlu0 %1936
        %1940 = vset.pattern.permute.xlu0 0
        %1941 = vperm.xlu0 %1940, %v1931
        %v1942 = vpop.permute.xlu0 %1941
        %1945 = vset.pattern.permute.xlu0 0
        %1946 = vperm.xlu0 %1945, %v1932
        %v1947 = vpop.permute.xlu0 %1946
        %1950 = vset.pattern.permute.xlu0 0
        %1951 = vperm.xlu0 %1950, %v1933
        %v1952 = vpop.permute.xlu0 %1951
        %v1954 = vmul.f32 %v1858, %v1937
        %v1955 = vmul.f32 %v1859, %v1942
        %v1956 = vmul.f32 %v1860, %v1947
        %v1957 = vmul.f32 %v1861, %v1952
        %v1958 = vld [vmem:[%s27] sm:$0xff]
        %v1959 = vld [vmem:[%s27 + $0x8] sm:$0xff]
        %v1960 = vld [vmem:[%s27 + $0x10] sm:$0xff]
        %v1961 = vld [vmem:[%s27 + $0x18] sm:$0xff]
        %1963 = vset.pattern.permute.xlu0 0
        %1964 = vperm.xlu0 %1963, %v1958
        %v1965 = vpop.permute.xlu0 %1964
        %1968 = vset.pattern.permute.xlu0 0
        %1969 = vperm.xlu0 %1968, %v1959
        %v1970 = vpop.permute.xlu0 %1969
        %1973 = vset.pattern.permute.xlu0 0
        %1974 = vperm.xlu0 %1973, %v1960
        %v1975 = vpop.permute.xlu0 %1974
        %1978 = vset.pattern.permute.xlu0 0
        %1979 = vperm.xlu0 %1978, %v1961
        %v1980 = vpop.permute.xlu0 %1979
        %v1982 = vadd.f32 %v1954, %v1965
        %v1983 = vadd.f32 %v1955, %v1970
        %v1984 = vadd.f32 %v1956, %v1975
        %v1985 = vadd.f32 %v1957, %v1980
        %v1986 = vmax.f32 %v1982, 0.0
        %v1987 = vmax.f32 %v1983, 0.0
        %v1988 = vmax.f32 %v1984, 0.0
        %v1989 = vmax.f32 %v1985, 0.0
        %v1990 = vld [vmem:[%s21] sm:$0xff]
        %v1991 = vld [vmem:[%s21 + $0x8] sm:$0xff]
        %v1992 = vld [vmem:[%s21 + $0x10] sm:$0xff]
        %v1993 = vld [vmem:[%s21 + $0x18] sm:$0xff]
        %v1994 = vld [vmem:[%s23] sm:$0xff]
        %v1995 = vld [vmem:[%s23 + $0x8] sm:$0xff]
        %v1996 = vld [vmem:[%s23 + $0x10] sm:$0xff]
        %v1997 = vld [vmem:[%s23 + $0x18] sm:$0xff]
        %1999 = vset.pattern.permute.xlu0 0
        %2000 = vperm.xlu0 %1999, %v1994
        %v2001 = vpop.permute.xlu0 %2000
        %2004 = vset.pattern.permute.xlu0 0
        %2005 = vperm.xlu0 %2004, %v1995
        %v2006 = vpop.permute.xlu0 %2005
        %2009 = vset.pattern.permute.xlu0 0
        %2010 = vperm.xlu0 %2009, %v1996
        %v2011 = vpop.permute.xlu0 %2010
        %2014 = vset.pattern.permute.xlu0 0
        %2015 = vperm.xlu0 %2014, %v1997
        %v2016 = vpop.permute.xlu0 %2015
        %v2019 = vsel %vm1061, %v1990, 0
        %v2022 = vsel %vm1061, %v1991, 0
        %v2025 = vsel %vm1061, %v1992, 0
        %v2028 = vsel %vm1061, %v1993, 0
        %2030 = vmatpush.msra.mxu0 0.0
        %2031 = vmatpush.msra.mxu0 0.0
        %2032 = vmatpush.msra.mxu0 0.0
        %2033 = vmatpush.msra.mxu0 0.0
        %2034 = vmatpush.msra.mxu0 0.0
        %2035 = vmatpush.msra.mxu0 0.0
        %2036 = vmatpush.msra.mxu0 0.0
        %2037 = vmatpush.msra.mxu0 0.0
        %2038 = vmatpush.msra.mxu0 0.0
        %2039 = vmatpush.msra.mxu0 0.0
        %2040 = vmatpush.msra.mxu0 0.0
        %2041 = vmatpush.msra.mxu0 0.0
        %2042 = vmatpush.msra.mxu0 %v1989
        %2043 = vmatpush.msra.mxu0 %v1988
        %2044 = vmatpush.msra.mxu0 %v1987
        %2045 = vmatpush.msra.mxu0 %v1986
        %2046 = vmatmul.f32.gmra.mxu0 %v2019
        %v2047 = vpop.f32.mrf.mxu0
        %v2048 = vadd.f32 %v2001, %v2047
        %2049 = vmatmul.f32.gmra.mxu0 %v2022
        %v2050 = vpop.f32.mrf.mxu0
        %v2051 = vadd.f32 %v2006, %v2050
        %2052 = vmatmul.f32.gmra.mxu0 %v2025
        %v2053 = vpop.f32.mrf.mxu0
        %v2054 = vadd.f32 %v2011, %v2053
        %2055 = vmatmul.f32.gmra.mxu0 %v2028
        %v2056 = vpop.f32.mrf.mxu0
        %v2057 = vadd.f32 %v2016, %v2056
        %2058 = vdwg.mxu0
        %v2059 = vld [vmem:[%s33] sm:$0x1]
        %v2061 = vperm.slane %v2059, 0
        %v2063 = vmul.f32 %v2048, %v2061
        %v2064 = vmul.f32 %v2051, %v2061
        %v2065 = vmul.f32 %v2054, %v2061
        %v2066 = vmul.f32 %v2057, %v2061
        %v2067 = vld [vmem:[%s35] sm:$0x1]
        %v2069 = vperm.slane %v2067, 0
        %v2071 = vadd.f32 %v2063, %v2069
        %v2072 = vadd.f32 %v2064, %v2069
        %v2073 = vadd.f32 %v2065, %v2069
        %v2074 = vadd.f32 %v2066, %v2069
        %v2075 = vmax.f32 %v2071, 0.0
        %v2076 = vmax.f32 %v2072, 0.0
        %v2077 = vmax.f32 %v2073, 0.0
        %v2078 = vmax.f32 %v2074, 0.0
        %v2079 = vld [vmem:[%s29] sm:$0xff]
        %v2081 = vsel %vm1834, %v2075, 0
        %v2084 = vsel %vm1834, %v2076, 0
        %v2087 = vsel %vm1834, %v2077, 0
        %v2090 = vsel %vm1834, %v2078, 0
        %2092 = vmatpush.msra.mxu0 0.0
        %2093 = vmatpush.msra.mxu0 0.0
        %2094 = vmatpush.msra.mxu0 0.0
        %2095 = vmatpush.msra.mxu0 0.0
        %2096 = vmatpush.msra.mxu0 0.0
        %2097 = vmatpush.msra.mxu0 0.0
        %2098 = vmatpush.msra.mxu0 0.0
        %2099 = vmatpush.msra.mxu0 0.0
        %2100 = vmatpush.msra.mxu0 0.0
        %2101 = vmatpush.msra.mxu0 0.0
        %2102 = vmatpush.msra.mxu0 0.0
        %2103 = vmatpush.msra.mxu0 0.0
        %2104 = vmatpush.msra.mxu0 0.0
        %2105 = vmatpush.msra.mxu0 0.0
        %2106 = vmatpush.msra.mxu0 0.0
        %2107 = vmatpush.msra.mxu0 %v2079
        %2108 = vmatmul.f32.gmra.mxu0 %v2081
        %v2109 = vpop.f32.mrf.mxu0
        %v2110 = vadd.f32 0.0, %v2109
        %2111 = vmatmul.f32.gmra.mxu0 %v2084
        %v2112 = vpop.f32.mrf.mxu0
        %v2113 = vadd.f32 0.0, %v2112
        %2114 = vmatmul.f32.gmra.mxu0 %v2087
        %v2115 = vpop.f32.mrf.mxu0
        %v2116 = vadd.f32 0.0, %v2115
        %2117 = vmatmul.f32.gmra.mxu0 %v2090
        %v2118 = vpop.f32.mrf.mxu0
        %v2119 = vadd.f32 0.0, %v2118
        %2120 = vdwg.mxu0
        %v2121 = vadd.f32 %v2048, %v2110
        %v2122 = vadd.f32 %v2051, %v2113
        %v2123 = vadd.f32 %v2054, %v2116
        %v2124 = vadd.f32 %v2057, %v2119
        %v2125 = vld [vmem:[%s31] sm:$0x1]
        %v2127 = vperm.slane %v2125, 0
        %v2129 = vadd.f32 %v2121, %v2127
        %v2130 = vadd.f32 %v2122, %v2127
        %v2131 = vadd.f32 %v2123, %v2127
        %v2132 = vadd.f32 %v2124, %v2127
        %v2133 = vsel %vm1834, %v2129, 0.0
        %2134 = vadd.xlane.f32.xlu0 %v2133
        %v2135 = vpop.xlane.xlu0 %2134
        %v2136 = vsel %vm1834, %v2130, 0.0
        %2137 = vadd.xlane.f32.xlu0 %v2136
        %v2138 = vpop.xlane.xlu0 %2137
        %v2139 = vsel %vm1834, %v2131, 0.0
        %2140 = vadd.xlane.f32.xlu0 %v2139
        %v2141 = vpop.xlane.xlu0 %2140
        %v2142 = vsel %vm1834, %v2132, 0.0
        %2143 = vadd.xlane.f32.xlu0 %v2142
        %v2144 = vpop.xlane.xlu0 %2143
        %v2145 = vmul.f32 %v2135, %v1853
        %v2146 = vmul.f32 %v2138, %v1853
        %v2147 = vmul.f32 %v2141, %v1853
        %v2148 = vmul.f32 %v2144, %v1853
        %v2149 = vsub.f32 %v2129, %v2145
        %v2150 = vsub.f32 %v2130, %v2146
        %v2151 = vsub.f32 %v2131, %v2147
        %v2152 = vsub.f32 %v2132, %v2148
        %v2153 = vmul.f32 %v2149, %v2149
        %v2154 = vmul.f32 %v2150, %v2150
        %v2155 = vmul.f32 %v2151, %v2151
        %v2156 = vmul.f32 %v2152, %v2152
        %v2157 = vsel %vm1834, %v2153, 0.0
        %2158 = vadd.xlane.f32.xlu0 %v2157
        %v2159 = vpop.xlane.xlu0 %2158
        %v2160 = vsel %vm1834, %v2154, 0.0
        %2161 = vadd.xlane.f32.xlu0 %v2160
        %v2162 = vpop.xlane.xlu0 %2161
        %v2163 = vsel %vm1834, %v2155, 0.0
        %2164 = vadd.xlane.f32.xlu0 %v2163
        %v2165 = vpop.xlane.xlu0 %2164
        %v2166 = vsel %vm1834, %v2156, 0.0
        %2167 = vadd.xlane.f32.xlu0 %v2166
        %v2168 = vpop.xlane.xlu0 %2167
        %v2169 = vmul.f32 %v2159, %v1853
        %v2170 = vmul.f32 %v2162, %v1853
        %v2171 = vmul.f32 %v2165, %v1853
        %v2172 = vmul.f32 %v2168, %v1853
        %v2173 = vadd.f32 %v2169, 0.001
        %v2174 = vadd.f32 %v2170, 0.001
        %v2175 = vadd.f32 %v2171, 0.001
        %v2176 = vadd.f32 %v2172, 0.001
        %v2177 = vrsqrt.pop %v2173
        %v2178 = vmul.f32 %v2177, %v2173
        %v2179 = vmul.f32 %v2178, %v2177
        %v2180 = vmul.f32 0.5, %v2179
        %v2181 = vsub.f32 1.5, %v2180
        %v2182 = vmul.f32 %v2177, %v2181
        %vm2183 = vweird.f32 %v2173
        %vm2184 = vweird.f32 %v2177
        %vm2185 = vmor %vm2183, %vm2184
        %v2186 = vsel %vm2185, %v2177, %v2182
        %v2187 = vrsqrt.pop %v2174
        %v2188 = vmul.f32 %v2187, %v2174
        %v2189 = vmul.f32 %v2188, %v2187
        %v2190 = vmul.f32 0.5, %v2189
        %v2191 = vsub.f32 1.5, %v2190
        %v2192 = vmul.f32 %v2187, %v2191
        %vm2193 = vweird.f32 %v2174
        %vm2194 = vweird.f32 %v2187
        %vm2195 = vmor %vm2193, %vm2194
        %v2196 = vsel %vm2195, %v2187, %v2192
        %v2197 = vrsqrt.pop %v2175
        %v2198 = vmul.f32 %v2197, %v2175
        %v2199 = vmul.f32 %v2198, %v2197
        %v2200 = vmul.f32 0.5, %v2199
        %v2201 = vsub.f32 1.5, %v2200
        %v2202 = vmul.f32 %v2197, %v2201
        %vm2203 = vweird.f32 %v2175
        %vm2204 = vweird.f32 %v2197
        %vm2205 = vmor %vm2203, %vm2204
        %v2206 = vsel %vm2205, %v2197, %v2202
        %v2207 = vrsqrt.pop %v2176
        %v2208 = vmul.f32 %v2207, %v2176
        %v2209 = vmul.f32 %v2208, %v2207
        %v2210 = vmul.f32 0.5, %v2209
        %v2211 = vsub.f32 1.5, %v2210
        %v2212 = vmul.f32 %v2207, %v2211
        %vm2213 = vweird.f32 %v2176
        %vm2214 = vweird.f32 %v2207
        %vm2215 = vmor %vm2213, %vm2214
        %v2216 = vsel %vm2215, %v2207, %v2212
        %v2217 = vld [vmem:[%s41] sm:$0xff]
        %v2218 = vld [vmem:[%s41 + $0x8] sm:$0xff]
        %v2219 = vld [vmem:[%s41 + $0x10] sm:$0xff]
        %v2220 = vld [vmem:[%s41 + $0x18] sm:$0xff]
        %v2221 = vmul.f32 %v2217, %v2186
        %v2222 = vmul.f32 %v2218, %v2196
        %v2223 = vmul.f32 %v2219, %v2206
        %v2224 = vmul.f32 %v2220, %v2216
        %2226 = vset.pattern.permute.xlu0 0
        %2227 = vperm.xlu0 %2226, %v2221
        %v2228 = vpop.permute.xlu0 %2227
        %2231 = vset.pattern.permute.xlu0 0
        %2232 = vperm.xlu0 %2231, %v2222
        %v2233 = vpop.permute.xlu0 %2232
        %2236 = vset.pattern.permute.xlu0 0
        %2237 = vperm.xlu0 %2236, %v2223
        %v2238 = vpop.permute.xlu0 %2237
        %2241 = vset.pattern.permute.xlu0 0
        %2242 = vperm.xlu0 %2241, %v2224
        %v2243 = vpop.permute.xlu0 %2242
        %v2245 = vmul.f32 %v2149, %v2228
        %v2246 = vmul.f32 %v2150, %v2233
        %v2247 = vmul.f32 %v2151, %v2238
        %v2248 = vmul.f32 %v2152, %v2243
        %v2249 = vld [vmem:[%s43] sm:$0xff]
        %v2250 = vld [vmem:[%s43 + $0x8] sm:$0xff]
        %v2251 = vld [vmem:[%s43 + $0x10] sm:$0xff]
        %v2252 = vld [vmem:[%s43 + $0x18] sm:$0xff]
        %2254 = vset.pattern.permute.xlu0 0
        %2255 = vperm.xlu0 %2254, %v2249
        %v2256 = vpop.permute.xlu0 %2255
        %2259 = vset.pattern.permute.xlu0 0
        %2260 = vperm.xlu0 %2259, %v2250
        %v2261 = vpop.permute.xlu0 %2260
        %2264 = vset.pattern.permute.xlu0 0
        %2265 = vperm.xlu0 %2264, %v2251
        %v2266 = vpop.permute.xlu0 %2265
        %2269 = vset.pattern.permute.xlu0 0
        %2270 = vperm.xlu0 %2269, %v2252
        %v2271 = vpop.permute.xlu0 %2270
        %v2273 = vadd.f32 %v2245, %v2256
        %v2274 = vadd.f32 %v2246, %v2261
        %v2275 = vadd.f32 %v2247, %v2266
        %v2276 = vadd.f32 %v2248, %v2271
        %v2277 = vmax.f32 %v2273, 0.0
        %v2278 = vmax.f32 %v2274, 0.0
        %v2279 = vmax.f32 %v2275, 0.0
        %v2280 = vmax.f32 %v2276, 0.0
        %v2281 = vld [vmem:[%s37] sm:$0xff]
        %v2282 = vld [vmem:[%s37 + $0x8] sm:$0xff]
        %v2283 = vld [vmem:[%s37 + $0x10] sm:$0xff]
        %v2284 = vld [vmem:[%s37 + $0x18] sm:$0xff]
        %v2286 = vsel %vm1061, %v2281, 0
        %v2289 = vsel %vm1061, %v2282, 0
        %v2292 = vsel %vm1061, %v2283, 0
        %v2295 = vsel %vm1061, %v2284, 0
        %2297 = vmatpush.msra.mxu0 0.0
        %2298 = vmatpush.msra.mxu0 0.0
        %2299 = vmatpush.msra.mxu0 0.0
        %2300 = vmatpush.msra.mxu0 0.0
        %2301 = vmatpush.msra.mxu0 0.0
        %2302 = vmatpush.msra.mxu0 0.0
        %2303 = vmatpush.msra.mxu0 0.0
        %2304 = vmatpush.msra.mxu0 0.0
        %2305 = vmatpush.msra.mxu0 0.0
        %2306 = vmatpush.msra.mxu0 0.0
        %2307 = vmatpush.msra.mxu0 0.0
        %2308 = vmatpush.msra.mxu0 0.0
        %2309 = vmatpush.msra.mxu0 %v2280
        %2310 = vmatpush.msra.mxu0 %v2279
        %2311 = vmatpush.msra.mxu0 %v2278
        %2312 = vmatpush.msra.mxu0 %v2277
        %2313 = vmatmul.f32.gmra.mxu0 %v2286
        %v2314 = vpop.f32.mrf.mxu0
        %v2315 = vadd.f32 0.0, %v2314
        %2316 = vmatmul.f32.gmra.mxu0 %v2289
        %v2317 = vpop.f32.mrf.mxu0
        %v2318 = vadd.f32 0.0, %v2317
        %2319 = vmatmul.f32.gmra.mxu0 %v2292
        %v2320 = vpop.f32.mrf.mxu0
        %v2321 = vadd.f32 0.0, %v2320
        %2322 = vmatmul.f32.gmra.mxu0 %v2295
        %v2323 = vpop.f32.mrf.mxu0
        %v2324 = vadd.f32 0.0, %v2323
        %2325 = vdwg.mxu0
        %v2326 = vadd.f32 %v1823, %v2315
        %v2327 = vadd.f32 %v1826, %v2318
        %v2328 = vadd.f32 %v1829, %v2321
        %v2329 = vadd.f32 %v1832, %v2324
        %v2330 = vld [vmem:[%s39] sm:$0xff]
        %v2331 = vld [vmem:[%s39 + $0x8] sm:$0xff]
        %v2332 = vld [vmem:[%s39 + $0x10] sm:$0xff]
        %v2333 = vld [vmem:[%s39 + $0x18] sm:$0xff]
        %2335 = vset.pattern.permute.xlu0 0
        %2336 = vperm.xlu0 %2335, %v2330
        %v2337 = vpop.permute.xlu0 %2336
        %2340 = vset.pattern.permute.xlu0 0
        %2341 = vperm.xlu0 %2340, %v2331
        %v2342 = vpop.permute.xlu0 %2341
        %2345 = vset.pattern.permute.xlu0 0
        %2346 = vperm.xlu0 %2345, %v2332
        %v2347 = vpop.permute.xlu0 %2346
        %2350 = vset.pattern.permute.xlu0 0
        %2351 = vperm.xlu0 %2350, %v2333
        %v2352 = vpop.permute.xlu0 %2351
        %v2354 = vadd.f32 %v2326, %v2337
        %v2355 = vadd.f32 %v2327, %v2342
        %v2356 = vadd.f32 %v2328, %v2347
        %v2357 = vadd.f32 %v2329, %v2352
        %v2358 = vsel %vm1834, %v2354, 0.0
        %2359 = vadd.xlane.f32.xlu0 %v2358
        %v2360 = vpop.xlane.xlu0 %2359
        %v2361 = vsel %vm1834, %v2355, 0.0
        %2362 = vadd.xlane.f32.xlu0 %v2361
        %v2363 = vpop.xlane.xlu0 %2362
        %v2364 = vsel %vm1834, %v2356, 0.0
        %2365 = vadd.xlane.f32.xlu0 %v2364
        %v2366 = vpop.xlane.xlu0 %2365
        %v2367 = vsel %vm1834, %v2357, 0.0
        %2368 = vadd.xlane.f32.xlu0 %v2367
        %v2369 = vpop.xlane.xlu0 %2368
        %v2370 = vmul.f32 %v2360, %v1853
        %v2371 = vmul.f32 %v2363, %v1853
        %v2372 = vmul.f32 %v2366, %v1853
        %v2373 = vmul.f32 %v2369, %v1853
        %v2374 = vsub.f32 %v2354, %v2370
        %v2375 = vsub.f32 %v2355, %v2371
        %v2376 = vsub.f32 %v2356, %v2372
        %v2377 = vsub.f32 %v2357, %v2373
        %v2378 = vmul.f32 %v2374, %v2374
        %v2379 = vmul.f32 %v2375, %v2375
        %v2380 = vmul.f32 %v2376, %v2376
        %v2381 = vmul.f32 %v2377, %v2377
        %v2382 = vsel %vm1834, %v2378, 0.0
        %2383 = vadd.xlane.f32.xlu0 %v2382
        %v2384 = vpop.xlane.xlu0 %2383
        %v2385 = vsel %vm1834, %v2379, 0.0
        %2386 = vadd.xlane.f32.xlu0 %v2385
        %v2387 = vpop.xlane.xlu0 %2386
        %v2388 = vsel %vm1834, %v2380, 0.0
        %2389 = vadd.xlane.f32.xlu0 %v2388
        %v2390 = vpop.xlane.xlu0 %2389
        %v2391 = vsel %vm1834, %v2381, 0.0
        %2392 = vadd.xlane.f32.xlu0 %v2391
        %v2393 = vpop.xlane.xlu0 %2392
        %v2394 = vmul.f32 %v2384, %v1853
        %v2395 = vmul.f32 %v2387, %v1853
        %v2396 = vmul.f32 %v2390, %v1853
        %v2397 = vmul.f32 %v2393, %v1853
        %v2398 = vadd.f32 %v2394, 0.001
        %v2399 = vadd.f32 %v2395, 0.001
        %v2400 = vadd.f32 %v2396, 0.001
        %v2401 = vadd.f32 %v2397, 0.001
        %v2402 = vrsqrt.pop %v2398
        %v2403 = vmul.f32 %v2402, %v2398
        %v2404 = vmul.f32 %v2403, %v2402
        %v2405 = vmul.f32 0.5, %v2404
        %v2406 = vsub.f32 1.5, %v2405
        %v2407 = vmul.f32 %v2402, %v2406
        %vm2408 = vweird.f32 %v2398
        %vm2409 = vweird.f32 %v2402
        %vm2410 = vmor %vm2408, %vm2409
        %v2411 = vsel %vm2410, %v2402, %v2407
        %v2412 = vrsqrt.pop %v2399
        %v2413 = vmul.f32 %v2412, %v2399
        %v2414 = vmul.f32 %v2413, %v2412
        %v2415 = vmul.f32 0.5, %v2414
        %v2416 = vsub.f32 1.5, %v2415
        %v2417 = vmul.f32 %v2412, %v2416
        %vm2418 = vweird.f32 %v2399
        %vm2419 = vweird.f32 %v2412
        %vm2420 = vmor %vm2418, %vm2419
        %v2421 = vsel %vm2420, %v2412, %v2417
        %v2422 = vrsqrt.pop %v2400
        %v2423 = vmul.f32 %v2422, %v2400
        %v2424 = vmul.f32 %v2423, %v2422
        %v2425 = vmul.f32 0.5, %v2424
        %v2426 = vsub.f32 1.5, %v2425
        %v2427 = vmul.f32 %v2422, %v2426
        %vm2428 = vweird.f32 %v2400
        %vm2429 = vweird.f32 %v2422
        %vm2430 = vmor %vm2428, %vm2429
        %v2431 = vsel %vm2430, %v2422, %v2427
        %v2432 = vrsqrt.pop %v2401
        %v2433 = vmul.f32 %v2432, %v2401
        %v2434 = vmul.f32 %v2433, %v2432
        %v2435 = vmul.f32 0.5, %v2434
        %v2436 = vsub.f32 1.5, %v2435
        %v2437 = vmul.f32 %v2432, %v2436
        %vm2438 = vweird.f32 %v2401
        %vm2439 = vweird.f32 %v2432
        %vm2440 = vmor %vm2438, %vm2439
        %v2441 = vsel %vm2440, %v2432, %v2437
        %s2442 = scalar_lea.vmem %s25, 32
        %v2443 = vld [vmem:[%s2442] sm:$0xff]
        %v2444 = vld [vmem:[%s2442 + $0x8] sm:$0xff]
        %v2445 = vld [vmem:[%s2442 + $0x10] sm:$0xff]
        %v2446 = vld [vmem:[%s2442 + $0x18] sm:$0xff]
        %v2447 = vmul.f32 %v2443, %v2411
        %v2448 = vmul.f32 %v2444, %v2421
        %v2449 = vmul.f32 %v2445, %v2431
        %v2450 = vmul.f32 %v2446, %v2441
        %2452 = vset.pattern.permute.xlu0 0
        %2453 = vperm.xlu0 %2452, %v2447
        %v2454 = vpop.permute.xlu0 %2453
        %2457 = vset.pattern.permute.xlu0 0
        %2458 = vperm.xlu0 %2457, %v2448
        %v2459 = vpop.permute.xlu0 %2458
        %2462 = vset.pattern.permute.xlu0 0
        %2463 = vperm.xlu0 %2462, %v2449
        %v2464 = vpop.permute.xlu0 %2463
        %2467 = vset.pattern.permute.xlu0 0
        %2468 = vperm.xlu0 %2467, %v2450
        %v2469 = vpop.permute.xlu0 %2468
        %v2471 = vmul.f32 %v2374, %v2454
        %v2472 = vmul.f32 %v2375, %v2459
        %v2473 = vmul.f32 %v2376, %v2464
        %v2474 = vmul.f32 %v2377, %v2469
        %s2475 = scalar_lea.vmem %s27, 32
        %v2476 = vld [vmem:[%s2475] sm:$0xff]
        %v2477 = vld [vmem:[%s2475 + $0x8] sm:$0xff]
        %v2478 = vld [vmem:[%s2475 + $0x10] sm:$0xff]
        %v2479 = vld [vmem:[%s2475 + $0x18] sm:$0xff]
        %2481 = vset.pattern.permute.xlu0 0
        %2482 = vperm.xlu0 %2481, %v2476
        %v2483 = vpop.permute.xlu0 %2482
        %2486 = vset.pattern.permute.xlu0 0
        %2487 = vperm.xlu0 %2486, %v2477
        %v2488 = vpop.permute.xlu0 %2487
        %2491 = vset.pattern.permute.xlu0 0
        %2492 = vperm.xlu0 %2491, %v2478
        %v2493 = vpop.permute.xlu0 %2492
        %2496 = vset.pattern.permute.xlu0 0
        %2497 = vperm.xlu0 %2496, %v2479
        %v2498 = vpop.permute.xlu0 %2497
        %v2500 = vadd.f32 %v2471, %v2483
        %v2501 = vadd.f32 %v2472, %v2488
        %v2502 = vadd.f32 %v2473, %v2493
        %v2503 = vadd.f32 %v2474, %v2498
        %v2504 = vmax.f32 %v2500, 0.0
        %v2505 = vmax.f32 %v2501, 0.0
        %v2506 = vmax.f32 %v2502, 0.0
        %v2507 = vmax.f32 %v2503, 0.0
        %s2508 = scalar_lea.vmem %s21, 32
        %v2509 = vld [vmem:[%s2508] sm:$0xff]
        %v2510 = vld [vmem:[%s2508 + $0x8] sm:$0xff]
        %v2511 = vld [vmem:[%s2508 + $0x10] sm:$0xff]
        %v2512 = vld [vmem:[%s2508 + $0x18] sm:$0xff]
        %s2513 = scalar_lea.vmem %s23, 32
        %v2514 = vld [vmem:[%s2513] sm:$0xff]
        %v2515 = vld [vmem:[%s2513 + $0x8] sm:$0xff]
        %v2516 = vld [vmem:[%s2513 + $0x10] sm:$0xff]
        %v2517 = vld [vmem:[%s2513 + $0x18] sm:$0xff]
        %2519 = vset.pattern.permute.xlu0 0
        %2520 = vperm.xlu0 %2519, %v2514
        %v2521 = vpop.permute.xlu0 %2520
        %2524 = vset.pattern.permute.xlu0 0
        %2525 = vperm.xlu0 %2524, %v2515
        %v2526 = vpop.permute.xlu0 %2525
        %2529 = vset.pattern.permute.xlu0 0
        %2530 = vperm.xlu0 %2529, %v2516
        %v2531 = vpop.permute.xlu0 %2530
        %2534 = vset.pattern.permute.xlu0 0
        %2535 = vperm.xlu0 %2534, %v2517
        %v2536 = vpop.permute.xlu0 %2535
        %v2539 = vsel %vm1061, %v2509, 0
        %v2542 = vsel %vm1061, %v2510, 0
        %v2545 = vsel %vm1061, %v2511, 0
        %v2548 = vsel %vm1061, %v2512, 0
        %2550 = vmatpush.msra.mxu0 0.0
        %2551 = vmatpush.msra.mxu0 0.0
        %2552 = vmatpush.msra.mxu0 0.0
        %2553 = vmatpush.msra.mxu0 0.0
        %2554 = vmatpush.msra.mxu0 0.0
        %2555 = vmatpush.msra.mxu0 0.0
        %2556 = vmatpush.msra.mxu0 0.0
        %2557 = vmatpush.msra.mxu0 0.0
        %2558 = vmatpush.msra.mxu0 0.0
        %2559 = vmatpush.msra.mxu0 0.0
        %2560 = vmatpush.msra.mxu0 0.0
        %2561 = vmatpush.msra.mxu0 0.0
        %2562 = vmatpush.msra.mxu0 %v2507
        %2563 = vmatpush.msra.mxu0 %v2506
        %2564 = vmatpush.msra.mxu0 %v2505
        %2565 = vmatpush.msra.mxu0 %v2504
        %2566 = vmatmul.f32.gmra.mxu0 %v2539
        %v2567 = vpop.f32.mrf.mxu0
        %v2568 = vadd.f32 %v2521, %v2567
        %2569 = vmatmul.f32.gmra.mxu0 %v2542
        %v2570 = vpop.f32.mrf.mxu0
        %v2571 = vadd.f32 %v2526, %v2570
        %2572 = vmatmul.f32.gmra.mxu0 %v2545
        %v2573 = vpop.f32.mrf.mxu0
        %v2574 = vadd.f32 %v2531, %v2573
        %2575 = vmatmul.f32.gmra.mxu0 %v2548
        %v2576 = vpop.f32.mrf.mxu0
        %v2577 = vadd.f32 %v2536, %v2576
        %2578 = vdwg.mxu0
        %s2579 = scalar_lea.vmem %s33, 1
        %v2580 = vld [vmem:[%s2579] sm:$0x1]
        %v2582 = vperm.slane %v2580, 0
        %v2584 = vmul.f32 %v2568, %v2582
        %v2585 = vmul.f32 %v2571, %v2582
        %v2586 = vmul.f32 %v2574, %v2582
        %v2587 = vmul.f32 %v2577, %v2582
        %s2588 = scalar_lea.vmem %s35, 1
        %v2589 = vld [vmem:[%s2588] sm:$0x1]
        %v2591 = vperm.slane %v2589, 0
        %v2593 = vadd.f32 %v2584, %v2591
        %v2594 = vadd.f32 %v2585, %v2591
        %v2595 = vadd.f32 %v2586, %v2591
        %v2596 = vadd.f32 %v2587, %v2591
        %v2597 = vmax.f32 %v2593, 0.0
        %v2598 = vmax.f32 %v2594, 0.0
        %v2599 = vmax.f32 %v2595, 0.0
        %v2600 = vmax.f32 %v2596, 0.0
        %s2601 = scalar_lea.vmem %s29, 8
        %v2602 = vld [vmem:[%s2601] sm:$0xff]
        %v2604 = vsel %vm1834, %v2597, 0
        %v2607 = vsel %vm1834, %v2598, 0
        %v2610 = vsel %vm1834, %v2599, 0
        %v2613 = vsel %vm1834, %v2600, 0
        %2615 = vmatpush.msra.mxu0 0.0
        %2616 = vmatpush.msra.mxu0 0.0
        %2617 = vmatpush.msra.mxu0 0.0
        %2618 = vmatpush.msra.mxu0 0.0
        %2619 = vmatpush.msra.mxu0 0.0
        %2620 = vmatpush.msra.mxu0 0.0
        %2621 = vmatpush.msra.mxu0 0.0
        %2622 = vmatpush.msra.mxu0 0.0
        %2623 = vmatpush.msra.mxu0 0.0
        %2624 = vmatpush.msra.mxu0 0.0
        %2625 = vmatpush.msra.mxu0 0.0
        %2626 = vmatpush.msra.mxu0 0.0
        %2627 = vmatpush.msra.mxu0 0.0
        %2628 = vmatpush.msra.mxu0 0.0
        %2629 = vmatpush.msra.mxu0 0.0
        %2630 = vmatpush.msra.mxu0 %v2602
        %2631 = vmatmul.f32.gmra.mxu0 %v2604
        %v2632 = vpop.f32.mrf.mxu0
        %v2633 = vadd.f32 0.0, %v2632
        %2634 = vmatmul.f32.gmra.mxu0 %v2607
        %v2635 = vpop.f32.mrf.mxu0
        %v2636 = vadd.f32 0.0, %v2635
        %2637 = vmatmul.f32.gmra.mxu0 %v2610
        %v2638 = vpop.f32.mrf.mxu0
        %v2639 = vadd.f32 0.0, %v2638
        %2640 = vmatmul.f32.gmra.mxu0 %v2613
        %v2641 = vpop.f32.mrf.mxu0
        %v2642 = vadd.f32 0.0, %v2641
        %2643 = vdwg.mxu0
        %v2644 = vadd.f32 %v2568, %v2633
        %v2645 = vadd.f32 %v2571, %v2636
        %v2646 = vadd.f32 %v2574, %v2639
        %v2647 = vadd.f32 %v2577, %v2642
        %s2648 = scalar_lea.vmem %s31, 1
        %v2649 = vld [vmem:[%s2648] sm:$0x1]
        %v2651 = vperm.slane %v2649, 0
        %v2653 = vadd.f32 %v2644, %v2651
        %v2654 = vadd.f32 %v2645, %v2651
        %v2655 = vadd.f32 %v2646, %v2651
        %v2656 = vadd.f32 %v2647, %v2651
        %v2657 = vsel %vm1834, %v2653, 0.0
        %2658 = vadd.xlane.f32.xlu0 %v2657
        %v2659 = vpop.xlane.xlu0 %2658
        %v2660 = vsel %vm1834, %v2654, 0.0
        %2661 = vadd.xlane.f32.xlu0 %v2660
        %v2662 = vpop.xlane.xlu0 %2661
        %v2663 = vsel %vm1834, %v2655, 0.0
        %2664 = vadd.xlane.f32.xlu0 %v2663
        %v2665 = vpop.xlane.xlu0 %2664
        %v2666 = vsel %vm1834, %v2656, 0.0
        %2667 = vadd.xlane.f32.xlu0 %v2666
        %v2668 = vpop.xlane.xlu0 %2667
        %v2669 = vmul.f32 %v2659, %v1853
        %v2670 = vmul.f32 %v2662, %v1853
        %v2671 = vmul.f32 %v2665, %v1853
        %v2672 = vmul.f32 %v2668, %v1853
        %v2673 = vsub.f32 %v2653, %v2669
        %v2674 = vsub.f32 %v2654, %v2670
        %v2675 = vsub.f32 %v2655, %v2671
        %v2676 = vsub.f32 %v2656, %v2672
        %v2677 = vmul.f32 %v2673, %v2673
        %v2678 = vmul.f32 %v2674, %v2674
        %v2679 = vmul.f32 %v2675, %v2675
        %v2680 = vmul.f32 %v2676, %v2676
        %v2681 = vsel %vm1834, %v2677, 0.0
        %2682 = vadd.xlane.f32.xlu0 %v2681
        %v2683 = vpop.xlane.xlu0 %2682
        %v2684 = vsel %vm1834, %v2678, 0.0
        %2685 = vadd.xlane.f32.xlu0 %v2684
        %v2686 = vpop.xlane.xlu0 %2685
        %v2687 = vsel %vm1834, %v2679, 0.0
        %2688 = vadd.xlane.f32.xlu0 %v2687
        %v2689 = vpop.xlane.xlu0 %2688
        %v2690 = vsel %vm1834, %v2680, 0.0
        %2691 = vadd.xlane.f32.xlu0 %v2690
        %v2692 = vpop.xlane.xlu0 %2691
        %v2693 = vmul.f32 %v2683, %v1853
        %v2694 = vmul.f32 %v2686, %v1853
        %v2695 = vmul.f32 %v2689, %v1853
        %v2696 = vmul.f32 %v2692, %v1853
        %v2697 = vadd.f32 %v2693, 0.001
        %v2698 = vadd.f32 %v2694, 0.001
        %v2699 = vadd.f32 %v2695, 0.001
        %v2700 = vadd.f32 %v2696, 0.001
        %v2701 = vrsqrt.pop %v2697
        %v2702 = vmul.f32 %v2701, %v2697
        %v2703 = vmul.f32 %v2702, %v2701
        %v2704 = vmul.f32 0.5, %v2703
        %v2705 = vsub.f32 1.5, %v2704
        %v2706 = vmul.f32 %v2701, %v2705
        %vm2707 = vweird.f32 %v2697
        %vm2708 = vweird.f32 %v2701
        %vm2709 = vmor %vm2707, %vm2708
        %v2710 = vsel %vm2709, %v2701, %v2706
        %v2711 = vrsqrt.pop %v2698
        %v2712 = vmul.f32 %v2711, %v2698
        %v2713 = vmul.f32 %v2712, %v2711
        %v2714 = vmul.f32 0.5, %v2713
        %v2715 = vsub.f32 1.5, %v2714
        %v2716 = vmul.f32 %v2711, %v2715
        %vm2717 = vweird.f32 %v2698
        %vm2718 = vweird.f32 %v2711
        %vm2719 = vmor %vm2717, %vm2718
        %v2720 = vsel %vm2719, %v2711, %v2716
        %v2721 = vrsqrt.pop %v2699
        %v2722 = vmul.f32 %v2721, %v2699
        %v2723 = vmul.f32 %v2722, %v2721
        %v2724 = vmul.f32 0.5, %v2723
        %v2725 = vsub.f32 1.5, %v2724
        %v2726 = vmul.f32 %v2721, %v2725
        %vm2727 = vweird.f32 %v2699
        %vm2728 = vweird.f32 %v2721
        %vm2729 = vmor %vm2727, %vm2728
        %v2730 = vsel %vm2729, %v2721, %v2726
        %v2731 = vrsqrt.pop %v2700
        %v2732 = vmul.f32 %v2731, %v2700
        %v2733 = vmul.f32 %v2732, %v2731
        %v2734 = vmul.f32 0.5, %v2733
        %v2735 = vsub.f32 1.5, %v2734
        %v2736 = vmul.f32 %v2731, %v2735
        %vm2737 = vweird.f32 %v2700
        %vm2738 = vweird.f32 %v2731
        %vm2739 = vmor %vm2737, %vm2738
        %v2740 = vsel %vm2739, %v2731, %v2736
        %s2741 = scalar_lea.vmem %s41, 32
        %v2742 = vld [vmem:[%s2741] sm:$0xff]
        %v2743 = vld [vmem:[%s2741 + $0x8] sm:$0xff]
        %v2744 = vld [vmem:[%s2741 + $0x10] sm:$0xff]
        %v2745 = vld [vmem:[%s2741 + $0x18] sm:$0xff]
        %v2746 = vmul.f32 %v2742, %v2710
        %v2747 = vmul.f32 %v2743, %v2720
        %v2748 = vmul.f32 %v2744, %v2730
        %v2749 = vmul.f32 %v2745, %v2740
        %2751 = vset.pattern.permute.xlu0 0
        %2752 = vperm.xlu0 %2751, %v2746
        %v2753 = vpop.permute.xlu0 %2752
        %2756 = vset.pattern.permute.xlu0 0
        %2757 = vperm.xlu0 %2756, %v2747
        %v2758 = vpop.permute.xlu0 %2757
        %2761 = vset.pattern.permute.xlu0 0
        %2762 = vperm.xlu0 %2761, %v2748
        %v2763 = vpop.permute.xlu0 %2762
        %2766 = vset.pattern.permute.xlu0 0
        %2767 = vperm.xlu0 %2766, %v2749
        %v2768 = vpop.permute.xlu0 %2767
        %v2770 = vmul.f32 %v2673, %v2753
        %v2771 = vmul.f32 %v2674, %v2758
        %v2772 = vmul.f32 %v2675, %v2763
        %v2773 = vmul.f32 %v2676, %v2768
        %s2774 = scalar_lea.vmem %s43, 32
        %v2775 = vld [vmem:[%s2774] sm:$0xff]
        %v2776 = vld [vmem:[%s2774 + $0x8] sm:$0xff]
        %v2777 = vld [vmem:[%s2774 + $0x10] sm:$0xff]
        %v2778 = vld [vmem:[%s2774 + $0x18] sm:$0xff]
        %2780 = vset.pattern.permute.xlu0 0
        %2781 = vperm.xlu0 %2780, %v2775
        %v2782 = vpop.permute.xlu0 %2781
        %2785 = vset.pattern.permute.xlu0 0
        %2786 = vperm.xlu0 %2785, %v2776
        %v2787 = vpop.permute.xlu0 %2786
        %2790 = vset.pattern.permute.xlu0 0
        %2791 = vperm.xlu0 %2790, %v2777
        %v2792 = vpop.permute.xlu0 %2791
        %2795 = vset.pattern.permute.xlu0 0
        %2796 = vperm.xlu0 %2795, %v2778
        %v2797 = vpop.permute.xlu0 %2796
        %v2799 = vadd.f32 %v2770, %v2782
        %v2800 = vadd.f32 %v2771, %v2787
        %v2801 = vadd.f32 %v2772, %v2792
        %v2802 = vadd.f32 %v2773, %v2797
        %v2803 = vmax.f32 %v2799, 0.0
        %v2804 = vmax.f32 %v2800, 0.0
        %v2805 = vmax.f32 %v2801, 0.0
        %v2806 = vmax.f32 %v2802, 0.0
        %s2807 = scalar_lea.vmem %s37, 32
        %v2808 = vld [vmem:[%s2807] sm:$0xff]
        %v2809 = vld [vmem:[%s2807 + $0x8] sm:$0xff]
        %v2810 = vld [vmem:[%s2807 + $0x10] sm:$0xff]
        %v2811 = vld [vmem:[%s2807 + $0x18] sm:$0xff]
        %v2813 = vsel %vm1061, %v2808, 0
        %v2816 = vsel %vm1061, %v2809, 0
        %v2819 = vsel %vm1061, %v2810, 0
        %v2822 = vsel %vm1061, %v2811, 0
        %2824 = vmatpush.msra.mxu0 0.0
        %2825 = vmatpush.msra.mxu0 0.0
        %2826 = vmatpush.msra.mxu0 0.0
        %2827 = vmatpush.msra.mxu0 0.0
        %2828 = vmatpush.msra.mxu0 0.0
        %2829 = vmatpush.msra.mxu0 0.0
        %2830 = vmatpush.msra.mxu0 0.0
        %2831 = vmatpush.msra.mxu0 0.0
        %2832 = vmatpush.msra.mxu0 0.0
        %2833 = vmatpush.msra.mxu0 0.0
        %2834 = vmatpush.msra.mxu0 0.0
        %2835 = vmatpush.msra.mxu0 0.0
        %2836 = vmatpush.msra.mxu0 %v2806
        %2837 = vmatpush.msra.mxu0 %v2805
        %2838 = vmatpush.msra.mxu0 %v2804
        %2839 = vmatpush.msra.mxu0 %v2803
        %2840 = vmatmul.f32.gmra.mxu0 %v2813
        %v2841 = vpop.f32.mrf.mxu0
        %v2842 = vadd.f32 0.0, %v2841
        %2843 = vmatmul.f32.gmra.mxu0 %v2816
        %v2844 = vpop.f32.mrf.mxu0
        %v2845 = vadd.f32 0.0, %v2844
        %2846 = vmatmul.f32.gmra.mxu0 %v2819
        %v2847 = vpop.f32.mrf.mxu0
        %v2848 = vadd.f32 0.0, %v2847
        %2849 = vmatmul.f32.gmra.mxu0 %v2822
        %v2850 = vpop.f32.mrf.mxu0
        %v2851 = vadd.f32 0.0, %v2850
        %2852 = vdwg.mxu0
        %v2853 = vadd.f32 %v2354, %v2842
        %v2854 = vadd.f32 %v2355, %v2845
        %v2855 = vadd.f32 %v2356, %v2848
        %v2856 = vadd.f32 %v2357, %v2851
        %s2857 = scalar_lea.vmem %s39, 32
        %v2858 = vld [vmem:[%s2857] sm:$0xff]
        %v2859 = vld [vmem:[%s2857 + $0x8] sm:$0xff]
        %v2860 = vld [vmem:[%s2857 + $0x10] sm:$0xff]
        %v2861 = vld [vmem:[%s2857 + $0x18] sm:$0xff]
        %2863 = vset.pattern.permute.xlu0 0
        %2864 = vperm.xlu0 %2863, %v2858
        %v2865 = vpop.permute.xlu0 %2864
        %2868 = vset.pattern.permute.xlu0 0
        %2869 = vperm.xlu0 %2868, %v2859
        %v2870 = vpop.permute.xlu0 %2869
        %2873 = vset.pattern.permute.xlu0 0
        %2874 = vperm.xlu0 %2873, %v2860
        %v2875 = vpop.permute.xlu0 %2874
        %2878 = vset.pattern.permute.xlu0 0
        %2879 = vperm.xlu0 %2878, %v2861
        %v2880 = vpop.permute.xlu0 %2879
        %v2882 = vadd.f32 %v2853, %v2865
        %v2883 = vadd.f32 %v2854, %v2870
        %v2884 = vadd.f32 %v2855, %v2875
        %v2885 = vadd.f32 %v2856, %v2880
        %v2886 = vsel %vm1834, %v2882, 0.0
        %2887 = vadd.xlane.f32.xlu0 %v2886
        %v2888 = vpop.xlane.xlu0 %2887
        %v2889 = vsel %vm1834, %v2883, 0.0
        %2890 = vadd.xlane.f32.xlu0 %v2889
        %v2891 = vpop.xlane.xlu0 %2890
        %v2892 = vsel %vm1834, %v2884, 0.0
        %2893 = vadd.xlane.f32.xlu0 %v2892
        %v2894 = vpop.xlane.xlu0 %2893
        %v2895 = vsel %vm1834, %v2885, 0.0
        %2896 = vadd.xlane.f32.xlu0 %v2895
        %v2897 = vpop.xlane.xlu0 %2896
        %v2898 = vmul.f32 %v2888, %v1853
        %v2899 = vmul.f32 %v2891, %v1853
        %v2900 = vmul.f32 %v2894, %v1853
        %v2901 = vmul.f32 %v2897, %v1853
        %v2902 = vsub.f32 %v2882, %v2898
        %v2903 = vsub.f32 %v2883, %v2899
        %v2904 = vsub.f32 %v2884, %v2900
        %v2905 = vsub.f32 %v2885, %v2901
        %v2906 = vmul.f32 %v2902, %v2902
        %v2907 = vmul.f32 %v2903, %v2903
        %v2908 = vmul.f32 %v2904, %v2904
        %v2909 = vmul.f32 %v2905, %v2905
        %v2910 = vsel %vm1834, %v2906, 0.0
        %2911 = vadd.xlane.f32.xlu0 %v2910
        %v2912 = vpop.xlane.xlu0 %2911
        %v2913 = vsel %vm1834, %v2907, 0.0
        %2914 = vadd.xlane.f32.xlu0 %v2913
        %v2915 = vpop.xlane.xlu0 %2914
        %v2916 = vsel %vm1834, %v2908, 0.0
        %2917 = vadd.xlane.f32.xlu0 %v2916
        %v2918 = vpop.xlane.xlu0 %2917
        %v2919 = vsel %vm1834, %v2909, 0.0
        %2920 = vadd.xlane.f32.xlu0 %v2919
        %v2921 = vpop.xlane.xlu0 %2920
        %v2922 = vmul.f32 %v2912, %v1853
        %v2923 = vmul.f32 %v2915, %v1853
        %v2924 = vmul.f32 %v2918, %v1853
        %v2925 = vmul.f32 %v2921, %v1853
        %v2926 = vadd.f32 %v2922, 0.001
        %v2927 = vadd.f32 %v2923, 0.001
        %v2928 = vadd.f32 %v2924, 0.001
        %v2929 = vadd.f32 %v2925, 0.001
        %v2930 = vrsqrt.pop %v2926
        %v2931 = vmul.f32 %v2930, %v2926
        %v2932 = vmul.f32 %v2931, %v2930
        %v2933 = vmul.f32 0.5, %v2932
        %v2934 = vsub.f32 1.5, %v2933
        %v2935 = vmul.f32 %v2930, %v2934
        %vm2936 = vweird.f32 %v2926
        %vm2937 = vweird.f32 %v2930
        %vm2938 = vmor %vm2936, %vm2937
        %v2939 = vsel %vm2938, %v2930, %v2935
        %v2940 = vrsqrt.pop %v2927
        %v2941 = vmul.f32 %v2940, %v2927
        %v2942 = vmul.f32 %v2941, %v2940
        %v2943 = vmul.f32 0.5, %v2942
        %v2944 = vsub.f32 1.5, %v2943
        %v2945 = vmul.f32 %v2940, %v2944
        %vm2946 = vweird.f32 %v2927
        %vm2947 = vweird.f32 %v2940
        %vm2948 = vmor %vm2946, %vm2947
        %v2949 = vsel %vm2948, %v2940, %v2945
        %v2950 = vrsqrt.pop %v2928
        %v2951 = vmul.f32 %v2950, %v2928
        %v2952 = vmul.f32 %v2951, %v2950
        %v2953 = vmul.f32 0.5, %v2952
        %v2954 = vsub.f32 1.5, %v2953
        %v2955 = vmul.f32 %v2950, %v2954
        %vm2956 = vweird.f32 %v2928
        %vm2957 = vweird.f32 %v2950
        %vm2958 = vmor %vm2956, %vm2957
        %v2959 = vsel %vm2958, %v2950, %v2955
        %v2960 = vrsqrt.pop %v2929
        %v2961 = vmul.f32 %v2960, %v2929
        %v2962 = vmul.f32 %v2961, %v2960
        %v2963 = vmul.f32 0.5, %v2962
        %v2964 = vsub.f32 1.5, %v2963
        %v2965 = vmul.f32 %v2960, %v2964
        %vm2966 = vweird.f32 %v2929
        %vm2967 = vweird.f32 %v2960
        %vm2968 = vmor %vm2966, %vm2967
        %v2969 = vsel %vm2968, %v2960, %v2965
        %s2970 = scalar_lea.vmem %s25, 64
        %v2971 = vld [vmem:[%s2970] sm:$0xff]
        %v2972 = vld [vmem:[%s2970 + $0x8] sm:$0xff]
        %v2973 = vld [vmem:[%s2970 + $0x10] sm:$0xff]
        %v2974 = vld [vmem:[%s2970 + $0x18] sm:$0xff]
        %v2975 = vmul.f32 %v2971, %v2939
        %v2976 = vmul.f32 %v2972, %v2949
        %v2977 = vmul.f32 %v2973, %v2959
        %v2978 = vmul.f32 %v2974, %v2969
        %2980 = vset.pattern.permute.xlu0 0
        %2981 = vperm.xlu0 %2980, %v2975
        %v2982 = vpop.permute.xlu0 %2981
        %2985 = vset.pattern.permute.xlu0 0
        %2986 = vperm.xlu0 %2985, %v2976
        %v2987 = vpop.permute.xlu0 %2986
        %2990 = vset.pattern.permute.xlu0 0
        %2991 = vperm.xlu0 %2990, %v2977
        %v2992 = vpop.permute.xlu0 %2991
        %2995 = vset.pattern.permute.xlu0 0
        %2996 = vperm.xlu0 %2995, %v2978
        %v2997 = vpop.permute.xlu0 %2996
        %v2999 = vmul.f32 %v2902, %v2982
        %v3000 = vmul.f32 %v2903, %v2987
        %v3001 = vmul.f32 %v2904, %v2992
        %v3002 = vmul.f32 %v2905, %v2997
        %s3003 = scalar_lea.vmem %s27, 64
        %v3004 = vld [vmem:[%s3003] sm:$0xff]
        %v3005 = vld [vmem:[%s3003 + $0x8] sm:$0xff]
        %v3006 = vld [vmem:[%s3003 + $0x10] sm:$0xff]
        %v3007 = vld [vmem:[%s3003 + $0x18] sm:$0xff]
        %3009 = vset.pattern.permute.xlu0 0
        %3010 = vperm.xlu0 %3009, %v3004
        %v3011 = vpop.permute.xlu0 %3010
        %3014 = vset.pattern.permute.xlu0 0
        %3015 = vperm.xlu0 %3014, %v3005
        %v3016 = vpop.permute.xlu0 %3015
        %3019 = vset.pattern.permute.xlu0 0
        %3020 = vperm.xlu0 %3019, %v3006
        %v3021 = vpop.permute.xlu0 %3020
        %3024 = vset.pattern.permute.xlu0 0
        %3025 = vperm.xlu0 %3024, %v3007
        %v3026 = vpop.permute.xlu0 %3025
        %v3028 = vadd.f32 %v2999, %v3011
        %v3029 = vadd.f32 %v3000, %v3016
        %v3030 = vadd.f32 %v3001, %v3021
        %v3031 = vadd.f32 %v3002, %v3026
        %v3032 = vmax.f32 %v3028, 0.0
        %v3033 = vmax.f32 %v3029, 0.0
        %v3034 = vmax.f32 %v3030, 0.0
        %v3035 = vmax.f32 %v3031, 0.0
        %s3036 = scalar_lea.vmem %s21, 64
        %v3037 = vld [vmem:[%s3036] sm:$0xff]
        %v3038 = vld [vmem:[%s3036 + $0x8] sm:$0xff]
        %v3039 = vld [vmem:[%s3036 + $0x10] sm:$0xff]
        %v3040 = vld [vmem:[%s3036 + $0x18] sm:$0xff]
        %s3041 = scalar_lea.vmem %s23, 64
        %v3042 = vld [vmem:[%s3041] sm:$0xff]
        %v3043 = vld [vmem:[%s3041 + $0x8] sm:$0xff]
        %v3044 = vld [vmem:[%s3041 + $0x10] sm:$0xff]
        %v3045 = vld [vmem:[%s3041 + $0x18] sm:$0xff]
        %3047 = vset.pattern.permute.xlu0 0
        %3048 = vperm.xlu0 %3047, %v3042
        %v3049 = vpop.permute.xlu0 %3048
        %3052 = vset.pattern.permute.xlu0 0
        %3053 = vperm.xlu0 %3052, %v3043
        %v3054 = vpop.permute.xlu0 %3053
        %3057 = vset.pattern.permute.xlu0 0
        %3058 = vperm.xlu0 %3057, %v3044
        %v3059 = vpop.permute.xlu0 %3058
        %3062 = vset.pattern.permute.xlu0 0
        %3063 = vperm.xlu0 %3062, %v3045
        %v3064 = vpop.permute.xlu0 %3063
        %v3067 = vsel %vm1061, %v3037, 0
        %v3070 = vsel %vm1061, %v3038, 0
        %v3073 = vsel %vm1061, %v3039, 0
        %v3076 = vsel %vm1061, %v3040, 0
        %3078 = vmatpush.msra.mxu0 0.0
        %3079 = vmatpush.msra.mxu0 0.0
        %3080 = vmatpush.msra.mxu0 0.0
        %3081 = vmatpush.msra.mxu0 0.0
        %3082 = vmatpush.msra.mxu0 0.0
        %3083 = vmatpush.msra.mxu0 0.0
        %3084 = vmatpush.msra.mxu0 0.0
        %3085 = vmatpush.msra.mxu0 0.0
        %3086 = vmatpush.msra.mxu0 0.0
        %3087 = vmatpush.msra.mxu0 0.0
        %3088 = vmatpush.msra.mxu0 0.0
        %3089 = vmatpush.msra.mxu0 0.0
        %3090 = vmatpush.msra.mxu0 %v3035
        %3091 = vmatpush.msra.mxu0 %v3034
        %3092 = vmatpush.msra.mxu0 %v3033
        %3093 = vmatpush.msra.mxu0 %v3032
        %3094 = vmatmul.f32.gmra.mxu0 %v3067
        %v3095 = vpop.f32.mrf.mxu0
        %v3096 = vadd.f32 %v3049, %v3095
        %3097 = vmatmul.f32.gmra.mxu0 %v3070
        %v3098 = vpop.f32.mrf.mxu0
        %v3099 = vadd.f32 %v3054, %v3098
        %3100 = vmatmul.f32.gmra.mxu0 %v3073
        %v3101 = vpop.f32.mrf.mxu0
        %v3102 = vadd.f32 %v3059, %v3101
        %3103 = vmatmul.f32.gmra.mxu0 %v3076
        %v3104 = vpop.f32.mrf.mxu0
        %v3105 = vadd.f32 %v3064, %v3104
        %3106 = vdwg.mxu0
        %s3107 = scalar_lea.vmem %s33, 2
        %v3108 = vld [vmem:[%s3107] sm:$0x1]
        %v3110 = vperm.slane %v3108, 0
        %v3112 = vmul.f32 %v3096, %v3110
        %v3113 = vmul.f32 %v3099, %v3110
        %v3114 = vmul.f32 %v3102, %v3110
        %v3115 = vmul.f32 %v3105, %v3110
        %s3116 = scalar_lea.vmem %s35, 2
        %v3117 = vld [vmem:[%s3116] sm:$0x1]
        %v3119 = vperm.slane %v3117, 0
        %v3121 = vadd.f32 %v3112, %v3119
        %v3122 = vadd.f32 %v3113, %v3119
        %v3123 = vadd.f32 %v3114, %v3119
        %v3124 = vadd.f32 %v3115, %v3119
        %v3125 = vmax.f32 %v3121, 0.0
        %v3126 = vmax.f32 %v3122, 0.0
        %v3127 = vmax.f32 %v3123, 0.0
        %v3128 = vmax.f32 %v3124, 0.0
        %s3129 = scalar_lea.vmem %s29, 16
        %v3130 = vld [vmem:[%s3129] sm:$0xff]
        %v3132 = vsel %vm1834, %v3125, 0
        %v3135 = vsel %vm1834, %v3126, 0
        %v3138 = vsel %vm1834, %v3127, 0
        %v3141 = vsel %vm1834, %v3128, 0
        %3143 = vmatpush.msra.mxu0 0.0
        %3144 = vmatpush.msra.mxu0 0.0
        %3145 = vmatpush.msra.mxu0 0.0
        %3146 = vmatpush.msra.mxu0 0.0
        %3147 = vmatpush.msra.mxu0 0.0
        %3148 = vmatpush.msra.mxu0 0.0
        %3149 = vmatpush.msra.mxu0 0.0
        %3150 = vmatpush.msra.mxu0 0.0
        %3151 = vmatpush.msra.mxu0 0.0
        %3152 = vmatpush.msra.mxu0 0.0
        %3153 = vmatpush.msra.mxu0 0.0
        %3154 = vmatpush.msra.mxu0 0.0
        %3155 = vmatpush.msra.mxu0 0.0
        %3156 = vmatpush.msra.mxu0 0.0
        %3157 = vmatpush.msra.mxu0 0.0
        %3158 = vmatpush.msra.mxu0 %v3130
        %3159 = vmatmul.f32.gmra.mxu0 %v3132
        %v3160 = vpop.f32.mrf.mxu0
        %v3161 = vadd.f32 0.0, %v3160
        %3162 = vmatmul.f32.gmra.mxu0 %v3135
        %v3163 = vpop.f32.mrf.mxu0
        %v3164 = vadd.f32 0.0, %v3163
        %3165 = vmatmul.f32.gmra.mxu0 %v3138
        %v3166 = vpop.f32.mrf.mxu0
        %v3167 = vadd.f32 0.0, %v3166
        %3168 = vmatmul.f32.gmra.mxu0 %v3141
        %v3169 = vpop.f32.mrf.mxu0
        %v3170 = vadd.f32 0.0, %v3169
        %3171 = vdwg.mxu0
        %v3172 = vadd.f32 %v3096, %v3161
        %v3173 = vadd.f32 %v3099, %v3164
        %v3174 = vadd.f32 %v3102, %v3167
        %v3175 = vadd.f32 %v3105, %v3170
        %s3176 = scalar_lea.vmem %s31, 2
        %v3177 = vld [vmem:[%s3176] sm:$0x1]
        %v3179 = vperm.slane %v3177, 0
        %v3181 = vadd.f32 %v3172, %v3179
        %v3182 = vadd.f32 %v3173, %v3179
        %v3183 = vadd.f32 %v3174, %v3179
        %v3184 = vadd.f32 %v3175, %v3179
        %v3185 = vsel %vm1834, %v3181, 0.0
        %3186 = vadd.xlane.f32.xlu0 %v3185
        %v3187 = vpop.xlane.xlu0 %3186
        %v3188 = vsel %vm1834, %v3182, 0.0
        %3189 = vadd.xlane.f32.xlu0 %v3188
        %v3190 = vpop.xlane.xlu0 %3189
        %v3191 = vsel %vm1834, %v3183, 0.0
        %3192 = vadd.xlane.f32.xlu0 %v3191
        %v3193 = vpop.xlane.xlu0 %3192
        %v3194 = vsel %vm1834, %v3184, 0.0
        %3195 = vadd.xlane.f32.xlu0 %v3194
        %v3196 = vpop.xlane.xlu0 %3195
        %v3197 = vmul.f32 %v3187, %v1853
        %v3198 = vmul.f32 %v3190, %v1853
        %v3199 = vmul.f32 %v3193, %v1853
        %v3200 = vmul.f32 %v3196, %v1853
        %v3201 = vsub.f32 %v3181, %v3197
        %v3202 = vsub.f32 %v3182, %v3198
        %v3203 = vsub.f32 %v3183, %v3199
        %v3204 = vsub.f32 %v3184, %v3200
        %v3205 = vmul.f32 %v3201, %v3201
        %v3206 = vmul.f32 %v3202, %v3202
        %v3207 = vmul.f32 %v3203, %v3203
        %v3208 = vmul.f32 %v3204, %v3204
        %v3209 = vsel %vm1834, %v3205, 0.0
        %3210 = vadd.xlane.f32.xlu0 %v3209
        %v3211 = vpop.xlane.xlu0 %3210
        %v3212 = vsel %vm1834, %v3206, 0.0
        %3213 = vadd.xlane.f32.xlu0 %v3212
        %v3214 = vpop.xlane.xlu0 %3213
        %v3215 = vsel %vm1834, %v3207, 0.0
        %3216 = vadd.xlane.f32.xlu0 %v3215
        %v3217 = vpop.xlane.xlu0 %3216
        %v3218 = vsel %vm1834, %v3208, 0.0
        %3219 = vadd.xlane.f32.xlu0 %v3218
        %v3220 = vpop.xlane.xlu0 %3219
        %v3221 = vmul.f32 %v3211, %v1853
        %v3222 = vmul.f32 %v3214, %v1853
        %v3223 = vmul.f32 %v3217, %v1853
        %v3224 = vmul.f32 %v3220, %v1853
        %v3225 = vadd.f32 %v3221, 0.001
        %v3226 = vadd.f32 %v3222, 0.001
        %v3227 = vadd.f32 %v3223, 0.001
        %v3228 = vadd.f32 %v3224, 0.001
        %v3229 = vrsqrt.pop %v3225
        %v3230 = vmul.f32 %v3229, %v3225
        %v3231 = vmul.f32 %v3230, %v3229
        %v3232 = vmul.f32 0.5, %v3231
        %v3233 = vsub.f32 1.5, %v3232
        %v3234 = vmul.f32 %v3229, %v3233
        %vm3235 = vweird.f32 %v3225
        %vm3236 = vweird.f32 %v3229
        %vm3237 = vmor %vm3235, %vm3236
        %v3238 = vsel %vm3237, %v3229, %v3234
        %v3239 = vrsqrt.pop %v3226
        %v3240 = vmul.f32 %v3239, %v3226
        %v3241 = vmul.f32 %v3240, %v3239
        %v3242 = vmul.f32 0.5, %v3241
        %v3243 = vsub.f32 1.5, %v3242
        %v3244 = vmul.f32 %v3239, %v3243
        %vm3245 = vweird.f32 %v3226
        %vm3246 = vweird.f32 %v3239
        %vm3247 = vmor %vm3245, %vm3246
        %v3248 = vsel %vm3247, %v3239, %v3244
        %v3249 = vrsqrt.pop %v3227
        %v3250 = vmul.f32 %v3249, %v3227
        %v3251 = vmul.f32 %v3250, %v3249
        %v3252 = vmul.f32 0.5, %v3251
        %v3253 = vsub.f32 1.5, %v3252
        %v3254 = vmul.f32 %v3249, %v3253
        %vm3255 = vweird.f32 %v3227
        %vm3256 = vweird.f32 %v3249
        %vm3257 = vmor %vm3255, %vm3256
        %v3258 = vsel %vm3257, %v3249, %v3254
        %v3259 = vrsqrt.pop %v3228
        %v3260 = vmul.f32 %v3259, %v3228
        %v3261 = vmul.f32 %v3260, %v3259
        %v3262 = vmul.f32 0.5, %v3261
        %v3263 = vsub.f32 1.5, %v3262
        %v3264 = vmul.f32 %v3259, %v3263
        %vm3265 = vweird.f32 %v3228
        %vm3266 = vweird.f32 %v3259
        %vm3267 = vmor %vm3265, %vm3266
        %v3268 = vsel %vm3267, %v3259, %v3264
        %s3269 = scalar_lea.vmem %s41, 64
        %v3270 = vld [vmem:[%s3269] sm:$0xff]
        %v3271 = vld [vmem:[%s3269 + $0x8] sm:$0xff]
        %v3272 = vld [vmem:[%s3269 + $0x10] sm:$0xff]
        %v3273 = vld [vmem:[%s3269 + $0x18] sm:$0xff]
        %v3274 = vmul.f32 %v3270, %v3238
        %v3275 = vmul.f32 %v3271, %v3248
        %v3276 = vmul.f32 %v3272, %v3258
        %v3277 = vmul.f32 %v3273, %v3268
        %3279 = vset.pattern.permute.xlu0 0
        %3280 = vperm.xlu0 %3279, %v3274
        %v3281 = vpop.permute.xlu0 %3280
        %3284 = vset.pattern.permute.xlu0 0
        %3285 = vperm.xlu0 %3284, %v3275
        %v3286 = vpop.permute.xlu0 %3285
        %3289 = vset.pattern.permute.xlu0 0
        %3290 = vperm.xlu0 %3289, %v3276
        %v3291 = vpop.permute.xlu0 %3290
        %3294 = vset.pattern.permute.xlu0 0
        %3295 = vperm.xlu0 %3294, %v3277
        %v3296 = vpop.permute.xlu0 %3295
        %v3298 = vmul.f32 %v3201, %v3281
        %v3299 = vmul.f32 %v3202, %v3286
        %v3300 = vmul.f32 %v3203, %v3291
        %v3301 = vmul.f32 %v3204, %v3296
        %s3302 = scalar_lea.vmem %s43, 64
        %v3303 = vld [vmem:[%s3302] sm:$0xff]
        %v3304 = vld [vmem:[%s3302 + $0x8] sm:$0xff]
        %v3305 = vld [vmem:[%s3302 + $0x10] sm:$0xff]
        %v3306 = vld [vmem:[%s3302 + $0x18] sm:$0xff]
        %3308 = vset.pattern.permute.xlu0 0
        %3309 = vperm.xlu0 %3308, %v3303
        %v3310 = vpop.permute.xlu0 %3309
        %3313 = vset.pattern.permute.xlu0 0
        %3314 = vperm.xlu0 %3313, %v3304
        %v3315 = vpop.permute.xlu0 %3314
        %3318 = vset.pattern.permute.xlu0 0
        %3319 = vperm.xlu0 %3318, %v3305
        %v3320 = vpop.permute.xlu0 %3319
        %3323 = vset.pattern.permute.xlu0 0
        %3324 = vperm.xlu0 %3323, %v3306
        %v3325 = vpop.permute.xlu0 %3324
        %v3327 = vadd.f32 %v3298, %v3310
        %v3328 = vadd.f32 %v3299, %v3315
        %v3329 = vadd.f32 %v3300, %v3320
        %v3330 = vadd.f32 %v3301, %v3325
        %v3331 = vmax.f32 %v3327, 0.0
        %v3332 = vmax.f32 %v3328, 0.0
        %v3333 = vmax.f32 %v3329, 0.0
        %v3334 = vmax.f32 %v3330, 0.0
        %s3335 = scalar_lea.vmem %s37, 64
        %v3336 = vld [vmem:[%s3335] sm:$0xff]
        %v3337 = vld [vmem:[%s3335 + $0x8] sm:$0xff]
        %v3338 = vld [vmem:[%s3335 + $0x10] sm:$0xff]
        %v3339 = vld [vmem:[%s3335 + $0x18] sm:$0xff]
        %v3341 = vsel %vm1061, %v3336, 0
        %v3344 = vsel %vm1061, %v3337, 0
        %v3347 = vsel %vm1061, %v3338, 0
        %v3350 = vsel %vm1061, %v3339, 0
        %3352 = vmatpush.msra.mxu0 0.0
        %3353 = vmatpush.msra.mxu0 0.0
        %3354 = vmatpush.msra.mxu0 0.0
        %3355 = vmatpush.msra.mxu0 0.0
        %3356 = vmatpush.msra.mxu0 0.0
        %3357 = vmatpush.msra.mxu0 0.0
        %3358 = vmatpush.msra.mxu0 0.0
        %3359 = vmatpush.msra.mxu0 0.0
        %3360 = vmatpush.msra.mxu0 0.0
        %3361 = vmatpush.msra.mxu0 0.0
        %3362 = vmatpush.msra.mxu0 0.0
        %3363 = vmatpush.msra.mxu0 0.0
        %3364 = vmatpush.msra.mxu0 %v3334
        %3365 = vmatpush.msra.mxu0 %v3333
        %3366 = vmatpush.msra.mxu0 %v3332
        %3367 = vmatpush.msra.mxu0 %v3331
        %3368 = vmatmul.f32.gmra.mxu0 %v3341
        %v3369 = vpop.f32.mrf.mxu0
        %v3370 = vadd.f32 0.0, %v3369
        %3371 = vmatmul.f32.gmra.mxu0 %v3344
        %v3372 = vpop.f32.mrf.mxu0
        %v3373 = vadd.f32 0.0, %v3372
        %3374 = vmatmul.f32.gmra.mxu0 %v3347
        %v3375 = vpop.f32.mrf.mxu0
        %v3376 = vadd.f32 0.0, %v3375
        %3377 = vmatmul.f32.gmra.mxu0 %v3350
        %v3378 = vpop.f32.mrf.mxu0
        %v3379 = vadd.f32 0.0, %v3378
        %3380 = vdwg.mxu0
        %v3381 = vadd.f32 %v2882, %v3370
        %v3382 = vadd.f32 %v2883, %v3373
        %v3383 = vadd.f32 %v2884, %v3376
        %v3384 = vadd.f32 %v2885, %v3379
        %s3385 = scalar_lea.vmem %s39, 64
        %v3386 = vld [vmem:[%s3385] sm:$0xff]
        %v3387 = vld [vmem:[%s3385 + $0x8] sm:$0xff]
        %v3388 = vld [vmem:[%s3385 + $0x10] sm:$0xff]
        %v3389 = vld [vmem:[%s3385 + $0x18] sm:$0xff]
        %3391 = vset.pattern.permute.xlu0 0
        %3392 = vperm.xlu0 %3391, %v3386
        %v3393 = vpop.permute.xlu0 %3392
        %3396 = vset.pattern.permute.xlu0 0
        %3397 = vperm.xlu0 %3396, %v3387
        %v3398 = vpop.permute.xlu0 %3397
        %3401 = vset.pattern.permute.xlu0 0
        %3402 = vperm.xlu0 %3401, %v3388
        %v3403 = vpop.permute.xlu0 %3402
        %3406 = vset.pattern.permute.xlu0 0
        %3407 = vperm.xlu0 %3406, %v3389
        %v3408 = vpop.permute.xlu0 %3407
        %v3410 = vadd.f32 %v3381, %v3393
        %v3411 = vadd.f32 %v3382, %v3398
        %v3412 = vadd.f32 %v3383, %v3403
        %v3413 = vadd.f32 %v3384, %v3408
        %v3414 = vld [vmem:[%s49] sm:$0xff]
        %v3415 = vld [vmem:[%s49 + $0x8] sm:$0xff]
        %v3416 = vld [vmem:[%s49 + $0x10] sm:$0xff]
        %v3417 = vld [vmem:[%s49 + $0x18] sm:$0xff]
        %v3418 = vmul.f32 %v3414, %v1671
        %v3419 = vmul.f32 %v3415, %v1681
        %v3420 = vmul.f32 %v3416, %v1691
        %v3421 = vmul.f32 %v3417, %v1701
        %3423 = vset.pattern.permute.xlu0 0
        %3424 = vperm.xlu0 %3423, %v3418
        %v3425 = vpop.permute.xlu0 %3424
        %3428 = vset.pattern.permute.xlu0 0
        %3429 = vperm.xlu0 %3428, %v3419
        %v3430 = vpop.permute.xlu0 %3429
        %3433 = vset.pattern.permute.xlu0 0
        %3434 = vperm.xlu0 %3433, %v3420
        %v3435 = vpop.permute.xlu0 %3434
        %3438 = vset.pattern.permute.xlu0 0
        %3439 = vperm.xlu0 %3438, %v3421
        %v3440 = vpop.permute.xlu0 %3439
        %v3442 = vmul.f32 %v1638, %v3425
        %v3443 = vmul.f32 %v1639, %v3430
        %v3444 = vmul.f32 %v1640, %v3435
        %v3445 = vmul.f32 %v1641, %v3440
        %v3446 = vld [vmem:[%s51] sm:$0xff]
        %v3447 = vld [vmem:[%s51 + $0x8] sm:$0xff]
        %v3448 = vld [vmem:[%s51 + $0x10] sm:$0xff]
        %v3449 = vld [vmem:[%s51 + $0x18] sm:$0xff]
        %3451 = vset.pattern.permute.xlu0 0
        %3452 = vperm.xlu0 %3451, %v3446
        %v3453 = vpop.permute.xlu0 %3452
        %3456 = vset.pattern.permute.xlu0 0
        %3457 = vperm.xlu0 %3456, %v3447
        %v3458 = vpop.permute.xlu0 %3457
        %3461 = vset.pattern.permute.xlu0 0
        %3462 = vperm.xlu0 %3461, %v3448
        %v3463 = vpop.permute.xlu0 %3462
        %3466 = vset.pattern.permute.xlu0 0
        %3467 = vperm.xlu0 %3466, %v3449
        %v3468 = vpop.permute.xlu0 %3467
        %v3470 = vadd.f32 %v3442, %v3453
        %v3471 = vadd.f32 %v3443, %v3458
        %v3472 = vadd.f32 %v3444, %v3463
        %v3473 = vadd.f32 %v3445, %v3468
        %v3474 = vmax.f32 %v3470, 0.0
        %v3475 = vmax.f32 %v3471, 0.0
        %v3476 = vmax.f32 %v3472, 0.0
        %v3477 = vmax.f32 %v3473, 0.0
        %v3478 = vld [vmem:[%s45] sm:$0xff]
        %v3479 = vld [vmem:[%s47] sm:$0xff]
        %3481 = vset.pattern.permute.xlu0 0
        %3482 = vperm.xlu0 %3481, %v3479
        %v3483 = vpop.permute.xlu0 %3482
        %v3486 = vsel %vm1061, %v3478, 0
        %3488 = vmatpush.msra.mxu0 0.0
        %3489 = vmatpush.msra.mxu0 0.0
        %3490 = vmatpush.msra.mxu0 0.0
        %3491 = vmatpush.msra.mxu0 0.0
        %3492 = vmatpush.msra.mxu0 0.0
        %3493 = vmatpush.msra.mxu0 0.0
        %3494 = vmatpush.msra.mxu0 0.0
        %3495 = vmatpush.msra.mxu0 0.0
        %3496 = vmatpush.msra.mxu0 0.0
        %3497 = vmatpush.msra.mxu0 0.0
        %3498 = vmatpush.msra.mxu0 0.0
        %3499 = vmatpush.msra.mxu0 0.0
        %3500 = vmatpush.msra.mxu0 %v3477
        %3501 = vmatpush.msra.mxu0 %v3476
        %3502 = vmatpush.msra.mxu0 %v3475
        %3503 = vmatpush.msra.mxu0 %v3474
        %3504 = vmatmul.f32.gmra.mxu0 %v3486
        %v3505 = vpop.f32.mrf.mxu0
        %v3506 = vadd.f32 %v3483, %v3505
        %3507 = vdwg.mxu0
        %v3508 = vrot.slane %v3506, 4
        %v3509 = vmax.f32 %v3506, %v3508
        %v3510 = vrot.slane %v3509, 2
        %v3511 = vmax.f32 %v3509, %v3510
        %v3512 = vrot.slane %v3511, 1
        %v3513 = vmax.f32 %v3511, %v3512
        %v3514 = vsub.f32 %v3506, %v3513
        %v3515 = vmul.f32 %v3514, 1.442695
        %v3516 = vpow.pop %v3515
        %v3517 = vrot.slane %v3516, 4
        %v3518 = vadd.f32 %v3516, %v3517
        %v3519 = vrot.slane %v3518, 2
        %v3520 = vadd.f32 %v3518, %v3519
        %v3521 = vrot.slane %v3520, 1
        %v3522 = vadd.f32 %v3520, %v3521
        %v3523 = vrcp.pop %v3522
        %v3524 = vmul.f32 %v3516, %v3523
        %v3526 = vsel %vm1834, %v3410, 0
        %v3529 = vsel %vm1834, %v3411, 0
        %v3532 = vsel %vm1834, %v3412, 0
        %v3535 = vsel %vm1834, %v3413, 0
        %3537 = vmatpush.msra.mxu0 0.0
        %3538 = vmatpush.msra.mxu0 0.0
        %3539 = vmatpush.msra.mxu0 0.0
        %3540 = vmatpush.msra.mxu0 0.0
        %3541 = vmatpush.msra.mxu0 0.0
        %3542 = vmatpush.msra.mxu0 0.0
        %3543 = vmatpush.msra.mxu0 0.0
        %3544 = vmatpush.msra.mxu0 0.0
        %3545 = vmatpush.msra.mxu0 0.0
        %3546 = vmatpush.msra.mxu0 0.0
        %3547 = vmatpush.msra.mxu0 0.0
        %3548 = vmatpush.msra.mxu0 0.0
        %3549 = vmatpush.msra.mxu0 0.0
        %3550 = vmatpush.msra.mxu0 0.0
        %3551 = vmatpush.msra.mxu0 0.0
        %3552 = vmatpush.msra.mxu0 %v3524
        %3553 = vmatmul.f32.gmra.mxu0 %v3526
        %v3554 = vpop.f32.mrf.mxu0
        %v3555 = vadd.f32 0.0, %v3554
        %3556 = vmatmul.f32.gmra.mxu0 %v3529
        %v3557 = vpop.f32.mrf.mxu0
        %v3558 = vadd.f32 0.0, %v3557
        %3559 = vmatmul.f32.gmra.mxu0 %v3532
        %v3560 = vpop.f32.mrf.mxu0
        %v3561 = vadd.f32 0.0, %v3560
        %3562 = vmatmul.f32.gmra.mxu0 %v3535
        %v3563 = vpop.f32.mrf.mxu0
        %v3564 = vadd.f32 0.0, %v3563
        %3565 = vdwg.mxu0
        %v3566 = vld [vmem:[%s53] sm:$0xff]
        %v3567 = vld [vmem:[%s53 + $0x8] sm:$0xff]
        %v3568 = vld [vmem:[%s53 + $0x10] sm:$0xff]
        %v3569 = vld [vmem:[%s53 + $0x18] sm:$0xff]
        %v3570 = vld [vmem:[%s55] sm:$0xff]
        %v3571 = vld [vmem:[%s55 + $0x8] sm:$0xff]
        %v3572 = vld [vmem:[%s55 + $0x10] sm:$0xff]
        %v3573 = vld [vmem:[%s55 + $0x18] sm:$0xff]
        %v3575 = vsel %vm1061, %v3570, 0
        %v3578 = vsel %vm1061, %v3571, 0
        %v3581 = vsel %vm1061, %v3572, 0
        %v3584 = vsel %vm1061, %v3573, 0
        %3586 = vmatpush.msra.mxu0 0.0
        %3587 = vmatpush.msra.mxu0 0.0
        %3588 = vmatpush.msra.mxu0 0.0
        %3589 = vmatpush.msra.mxu0 0.0
        %3590 = vmatpush.msra.mxu0 0.0
        %3591 = vmatpush.msra.mxu0 0.0
        %3592 = vmatpush.msra.mxu0 0.0
        %3593 = vmatpush.msra.mxu0 0.0
        %3594 = vmatpush.msra.mxu0 0.0
        %3595 = vmatpush.msra.mxu0 0.0
        %3596 = vmatpush.msra.mxu0 0.0
        %3597 = vmatpush.msra.mxu0 0.0
        %3598 = vmatpush.msra.mxu0 %v3564
        %3599 = vmatpush.msra.mxu0 %v3561
        %3600 = vmatpush.msra.mxu0 %v3558
        %3601 = vmatpush.msra.mxu0 %v3555
        %3602 = vmatmul.f32.gmra.mxu0 %v3575
        %v3603 = vpop.f32.mrf.mxu0
        %v3604 = vadd.f32 0.0, %v3603
        %3605 = vmatmul.f32.gmra.mxu0 %v3578
        %v3606 = vpop.f32.mrf.mxu0
        %v3607 = vadd.f32 0.0, %v3606
        %3608 = vmatmul.f32.gmra.mxu0 %v3581
        %v3609 = vpop.f32.mrf.mxu0
        %v3610 = vadd.f32 0.0, %v3609
        %3611 = vmatmul.f32.gmra.mxu0 %v3584
        %v3612 = vpop.f32.mrf.mxu0
        %v3613 = vadd.f32 0.0, %v3612
        %3614 = vdwg.mxu0
        %v3616 = vsel %vm1061, %v3566, 0
        %v3619 = vsel %vm1061, %v3567, 0
        %v3622 = vsel %vm1061, %v3568, 0
        %v3625 = vsel %vm1061, %v3569, 0
        %3627 = vmatpush.msra.mxu0 0.0
        %3628 = vmatpush.msra.mxu0 0.0
        %3629 = vmatpush.msra.mxu0 0.0
        %3630 = vmatpush.msra.mxu0 0.0
        %3631 = vmatpush.msra.mxu0 0.0
        %3632 = vmatpush.msra.mxu0 0.0
        %3633 = vmatpush.msra.mxu0 0.0
        %3634 = vmatpush.msra.mxu0 0.0
        %3635 = vmatpush.msra.mxu0 0.0
        %3636 = vmatpush.msra.mxu0 0.0
        %3637 = vmatpush.msra.mxu0 0.0
        %3638 = vmatpush.msra.mxu0 0.0
        %3639 = vmatpush.msra.mxu0 %v1625
        %3640 = vmatpush.msra.mxu0 %v1624
        %3641 = vmatpush.msra.mxu0 %v1623
        %3642 = vmatpush.msra.mxu0 %v1622
        %3643 = vmatmul.f32.gmra.mxu0 %v3616
        %v3644 = vpop.f32.mrf.mxu0
        %v3645 = vadd.f32 %v3604, %v3644
        %3646 = vmatmul.f32.gmra.mxu0 %v3619
        %v3647 = vpop.f32.mrf.mxu0
        %v3648 = vadd.f32 %v3607, %v3647
        %3649 = vmatmul.f32.gmra.mxu0 %v3622
        %v3650 = vpop.f32.mrf.mxu0
        %v3651 = vadd.f32 %v3610, %v3650
        %3652 = vmatmul.f32.gmra.mxu0 %v3625
        %v3653 = vpop.f32.mrf.mxu0
        %v3654 = vadd.f32 %v3613, %v3653
        %3655 = vdwg.mxu0
        %v3656 = vld [vmem:[%s57] sm:$0xff]
        %v3657 = vld [vmem:[%s57 + $0x8] sm:$0xff]
        %v3658 = vld [vmem:[%s57 + $0x10] sm:$0xff]
        %v3659 = vld [vmem:[%s57 + $0x18] sm:$0xff]
        %3661 = vset.pattern.permute.xlu0 0
        %3662 = vperm.xlu0 %3661, %v3656
        %v3663 = vpop.permute.xlu0 %3662
        %3666 = vset.pattern.permute.xlu0 0
        %3667 = vperm.xlu0 %3666, %v3657
        %v3668 = vpop.permute.xlu0 %3667
        %3671 = vset.pattern.permute.xlu0 0
        %3672 = vperm.xlu0 %3671, %v3658
        %v3673 = vpop.permute.xlu0 %3672
        %3676 = vset.pattern.permute.xlu0 0
        %3677 = vperm.xlu0 %3676, %v3659
        %v3678 = vpop.permute.xlu0 %3677
        %v3680 = vadd.f32 %v3645, %v3663
        %v3681 = vadd.f32 %v3648, %v3668
        %v3682 = vadd.f32 %v3651, %v3673
        %v3683 = vadd.f32 %v3654, %v3678
        %v3684 = vld [vmem:[%s59] sm:$0xff]
        %v3685 = vld [vmem:[%s59 + $0x8] sm:$0xff]
        %v3686 = vld [vmem:[%s59 + $0x10] sm:$0xff]
        %v3687 = vld [vmem:[%s59 + $0x18] sm:$0xff]
        %v3689 = vsel %vm1061, %v3684, 0
        %v3692 = vsel %vm1061, %v3685, 0
        %v3695 = vsel %vm1061, %v3686, 0
        %v3698 = vsel %vm1061, %v3687, 0
        %3700 = vmatpush.msra.mxu0 0.0
        %3701 = vmatpush.msra.mxu0 0.0
        %3702 = vmatpush.msra.mxu0 0.0
        %3703 = vmatpush.msra.mxu0 0.0
        %3704 = vmatpush.msra.mxu0 0.0
        %3705 = vmatpush.msra.mxu0 0.0
        %3706 = vmatpush.msra.mxu0 0.0
        %3707 = vmatpush.msra.mxu0 0.0
        %3708 = vmatpush.msra.mxu0 0.0
        %3709 = vmatpush.msra.mxu0 0.0
        %3710 = vmatpush.msra.mxu0 0.0
        %3711 = vmatpush.msra.mxu0 0.0
        %3712 = vmatpush.msra.mxu0 %v3683
        %3713 = vmatpush.msra.mxu0 %v3682
        %3714 = vmatpush.msra.mxu0 %v3681
        %3715 = vmatpush.msra.mxu0 %v3680
        %3716 = vmatmul.f32.gmra.mxu0 %v3689
        %v3717 = vpop.f32.mrf.mxu0
        %v3718 = vadd.f32 0.0, %v3717
        %3719 = vmatmul.f32.gmra.mxu0 %v3692
        %v3720 = vpop.f32.mrf.mxu0
        %v3721 = vadd.f32 0.0, %v3720
        %3722 = vmatmul.f32.gmra.mxu0 %v3695
        %v3723 = vpop.f32.mrf.mxu0
        %v3724 = vadd.f32 0.0, %v3723
        %3725 = vmatmul.f32.gmra.mxu0 %v3698
        %v3726 = vpop.f32.mrf.mxu0
        %v3727 = vadd.f32 0.0, %v3726
        %3728 = vdwg.mxu0
        %v3729 = vld [vmem:[%s61] sm:$0xff]
        %v3730 = vld [vmem:[%s61 + $0x8] sm:$0xff]
        %v3731 = vld [vmem:[%s61 + $0x10] sm:$0xff]
        %v3732 = vld [vmem:[%s61 + $0x18] sm:$0xff]
        %v3733 = vld [vmem:[%s63] sm:$0xff]
        %v3734 = vld [vmem:[%s63 + $0x8] sm:$0xff]
        %v3735 = vld [vmem:[%s63 + $0x10] sm:$0xff]
        %v3736 = vld [vmem:[%s63 + $0x18] sm:$0xff]
        %3737 = vadd.xlane.f32.xlu0 %v3718
        %v3738 = vpop.xlane.xlu0 %3737
        %3739 = vadd.xlane.f32.xlu0 %v3721
        %v3740 = vpop.xlane.xlu0 %3739
        %3741 = vadd.xlane.f32.xlu0 %v3724
        %v3742 = vpop.xlane.xlu0 %3741
        %3743 = vadd.xlane.f32.xlu0 %v3727
        %v3744 = vpop.xlane.xlu0 %3743
        %v3745 = vmul.f32 %v3738, %v1125
        %v3746 = vmul.f32 %v3740, %v1125
        %v3747 = vmul.f32 %v3742, %v1125
        %v3748 = vmul.f32 %v3744, %v1125
        %v3749 = vsub.f32 %v3718, %v3745
        %v3750 = vsub.f32 %v3721, %v3746
        %v3751 = vsub.f32 %v3724, %v3747
        %v3752 = vsub.f32 %v3727, %v3748
        %v3753 = vmul.f32 %v3749, %v3749
        %v3754 = vmul.f32 %v3750, %v3750
        %v3755 = vmul.f32 %v3751, %v3751
        %v3756 = vmul.f32 %v3752, %v3752
        %3757 = vadd.xlane.f32.xlu0 %v3753
        %v3758 = vpop.xlane.xlu0 %3757
        %3759 = vadd.xlane.f32.xlu0 %v3754
        %v3760 = vpop.xlane.xlu0 %3759
        %3761 = vadd.xlane.f32.xlu0 %v3755
        %v3762 = vpop.xlane.xlu0 %3761
        %3763 = vadd.xlane.f32.xlu0 %v3756
        %v3764 = vpop.xlane.xlu0 %3763
        %v3765 = vmul.f32 %v3758, 0.007874016
        %v3766 = vmul.f32 %v3760, 0.007874016
        %v3767 = vmul.f32 %v3762, 0.007874016
        %v3768 = vmul.f32 %v3764, 0.007874016
        %v3769 = vadd.f32 %v3765, 0.001
        %v3770 = vadd.f32 %v3766, 0.001
        %v3771 = vadd.f32 %v3767, 0.001
        %v3772 = vadd.f32 %v3768, 0.001
        %v3773 = vrsqrt.pop %v3769
        %v3774 = vmul.f32 %v3773, %v3769
        %v3775 = vmul.f32 %v3774, %v3773
        %v3776 = vmul.f32 0.5, %v3775
        %v3777 = vsub.f32 1.5, %v3776
        %v3778 = vmul.f32 %v3773, %v3777
        %vm3779 = vweird.f32 %v3769
        %vm3780 = vweird.f32 %v3773
        %vm3781 = vmor %vm3779, %vm3780
        %v3782 = vsel %vm3781, %v3773, %v3778
        %v3783 = vrsqrt.pop %v3770
        %v3784 = vmul.f32 %v3783, %v3770
        %v3785 = vmul.f32 %v3784, %v3783
        %v3786 = vmul.f32 0.5, %v3785
        %v3787 = vsub.f32 1.5, %v3786
        %v3788 = vmul.f32 %v3783, %v3787
        %vm3789 = vweird.f32 %v3770
        %vm3790 = vweird.f32 %v3783
        %vm3791 = vmor %vm3789, %vm3790
        %v3792 = vsel %vm3791, %v3783, %v3788
        %v3793 = vrsqrt.pop %v3771
        %v3794 = vmul.f32 %v3793, %v3771
        %v3795 = vmul.f32 %v3794, %v3793
        %v3796 = vmul.f32 0.5, %v3795
        %v3797 = vsub.f32 1.5, %v3796
        %v3798 = vmul.f32 %v3793, %v3797
        %vm3799 = vweird.f32 %v3771
        %vm3800 = vweird.f32 %v3793
        %vm3801 = vmor %vm3799, %vm3800
        %v3802 = vsel %vm3801, %v3793, %v3798
        %v3803 = vrsqrt.pop %v3772
        %v3804 = vmul.f32 %v3803, %v3772
        %v3805 = vmul.f32 %v3804, %v3803
        %v3806 = vmul.f32 0.5, %v3805
        %v3807 = vsub.f32 1.5, %v3806
        %v3808 = vmul.f32 %v3803, %v3807
        %vm3809 = vweird.f32 %v3772
        %vm3810 = vweird.f32 %v3803
        %vm3811 = vmor %vm3809, %vm3810
        %v3812 = vsel %vm3811, %v3803, %v3808
        %v3813 = vmul.f32 %v3729, %v3782
        %v3814 = vmul.f32 %v3730, %v3792
        %v3815 = vmul.f32 %v3731, %v3802
        %v3816 = vmul.f32 %v3732, %v3812
        %3818 = vset.pattern.permute.xlu0 0
        %3819 = vperm.xlu0 %3818, %v3813
        %v3820 = vpop.permute.xlu0 %3819
        %3823 = vset.pattern.permute.xlu0 0
        %3824 = vperm.xlu0 %3823, %v3814
        %v3825 = vpop.permute.xlu0 %3824
        %3828 = vset.pattern.permute.xlu0 0
        %3829 = vperm.xlu0 %3828, %v3815
        %v3830 = vpop.permute.xlu0 %3829
        %3833 = vset.pattern.permute.xlu0 0
        %3834 = vperm.xlu0 %3833, %v3816
        %v3835 = vpop.permute.xlu0 %3834
        %v3837 = vmul.f32 %v3749, %v3820
        %v3838 = vmul.f32 %v3750, %v3825
        %v3839 = vmul.f32 %v3751, %v3830
        %v3840 = vmul.f32 %v3752, %v3835
        %3842 = vset.pattern.permute.xlu0 0
        %3843 = vperm.xlu0 %3842, %v3733
        %v3844 = vpop.permute.xlu0 %3843
        %3847 = vset.pattern.permute.xlu0 0
        %3848 = vperm.xlu0 %3847, %v3734
        %v3849 = vpop.permute.xlu0 %3848
        %3852 = vset.pattern.permute.xlu0 0
        %3853 = vperm.xlu0 %3852, %v3735
        %v3854 = vpop.permute.xlu0 %3853
        %3857 = vset.pattern.permute.xlu0 0
        %3858 = vperm.xlu0 %3857, %v3736
        %v3859 = vpop.permute.xlu0 %3858
        %v3861 = vadd.f32 %v3837, %v3844
        %v3862 = vadd.f32 %v3838, %v3849
        %v3863 = vadd.f32 %v3839, %v3854
        %v3864 = vadd.f32 %v3840, %v3859
        %v3865 = vmax.f32 %v3861, 0.0
        %v3866 = vmax.f32 %v3862, 0.0
        %v3867 = vmax.f32 %v3863, 0.0
        %v3868 = vmax.f32 %v3864, 0.0
        %s3869 = scalar_lea.vmem %s59, 32
        %v3870 = vld [vmem:[%s3869] sm:$0xff]
        %v3871 = vld [vmem:[%s3869 + $0x8] sm:$0xff]
        %v3872 = vld [vmem:[%s3869 + $0x10] sm:$0xff]
        %v3873 = vld [vmem:[%s3869 + $0x18] sm:$0xff]
        %v3875 = vsel %vm1061, %v3870, 0
        %v3878 = vsel %vm1061, %v3871, 0
        %v3881 = vsel %vm1061, %v3872, 0
        %v3884 = vsel %vm1061, %v3873, 0
        %3886 = vmatpush.msra.mxu0 0.0
        %3887 = vmatpush.msra.mxu0 0.0
        %3888 = vmatpush.msra.mxu0 0.0
        %3889 = vmatpush.msra.mxu0 0.0
        %3890 = vmatpush.msra.mxu0 0.0
        %3891 = vmatpush.msra.mxu0 0.0
        %3892 = vmatpush.msra.mxu0 0.0
        %3893 = vmatpush.msra.mxu0 0.0
        %3894 = vmatpush.msra.mxu0 0.0
        %3895 = vmatpush.msra.mxu0 0.0
        %3896 = vmatpush.msra.mxu0 0.0
        %3897 = vmatpush.msra.mxu0 0.0
        %3898 = vmatpush.msra.mxu0 %v3868
        %3899 = vmatpush.msra.mxu0 %v3867
        %3900 = vmatpush.msra.mxu0 %v3866
        %3901 = vmatpush.msra.mxu0 %v3865
        %3902 = vmatmul.f32.gmra.mxu0 %v3875
        %v3903 = vpop.f32.mrf.mxu0
        %v3904 = vadd.f32 0.0, %v3903
        %3905 = vmatmul.f32.gmra.mxu0 %v3878
        %v3906 = vpop.f32.mrf.mxu0
        %v3907 = vadd.f32 0.0, %v3906
        %3908 = vmatmul.f32.gmra.mxu0 %v3881
        %v3909 = vpop.f32.mrf.mxu0
        %v3910 = vadd.f32 0.0, %v3909
        %3911 = vmatmul.f32.gmra.mxu0 %v3884
        %v3912 = vpop.f32.mrf.mxu0
        %v3913 = vadd.f32 0.0, %v3912
        %3914 = vdwg.mxu0
        %s3915 = scalar_lea.vmem %s61, 32
        %v3916 = vld [vmem:[%s3915] sm:$0xff]
        %v3917 = vld [vmem:[%s3915 + $0x8] sm:$0xff]
        %v3918 = vld [vmem:[%s3915 + $0x10] sm:$0xff]
        %v3919 = vld [vmem:[%s3915 + $0x18] sm:$0xff]
        %s3920 = scalar_lea.vmem %s63, 32
        %v3921 = vld [vmem:[%s3920] sm:$0xff]
        %v3922 = vld [vmem:[%s3920 + $0x8] sm:$0xff]
        %v3923 = vld [vmem:[%s3920 + $0x10] sm:$0xff]
        %v3924 = vld [vmem:[%s3920 + $0x18] sm:$0xff]
        %3925 = vadd.xlane.f32.xlu0 %v3904
        %v3926 = vpop.xlane.xlu0 %3925
        %3927 = vadd.xlane.f32.xlu0 %v3907
        %v3928 = vpop.xlane.xlu0 %3927
        %3929 = vadd.xlane.f32.xlu0 %v3910
        %v3930 = vpop.xlane.xlu0 %3929
        %3931 = vadd.xlane.f32.xlu0 %v3913
        %v3932 = vpop.xlane.xlu0 %3931
        %v3933 = vmul.f32 %v3926, %v1125
        %v3934 = vmul.f32 %v3928, %v1125
        %v3935 = vmul.f32 %v3930, %v1125
        %v3936 = vmul.f32 %v3932, %v1125
        %v3937 = vsub.f32 %v3904, %v3933
        %v3938 = vsub.f32 %v3907, %v3934
        %v3939 = vsub.f32 %v3910, %v3935
        %v3940 = vsub.f32 %v3913, %v3936
        %v3941 = vmul.f32 %v3937, %v3937
        %v3942 = vmul.f32 %v3938, %v3938
        %v3943 = vmul.f32 %v3939, %v3939
        %v3944 = vmul.f32 %v3940, %v3940
        %3945 = vadd.xlane.f32.xlu0 %v3941
        %v3946 = vpop.xlane.xlu0 %3945
        %3947 = vadd.xlane.f32.xlu0 %v3942
        %v3948 = vpop.xlane.xlu0 %3947
        %3949 = vadd.xlane.f32.xlu0 %v3943
        %v3950 = vpop.xlane.xlu0 %3949
        %3951 = vadd.xlane.f32.xlu0 %v3944
        %v3952 = vpop.xlane.xlu0 %3951
        %v3953 = vmul.f32 %v3946, 0.007874016
        %v3954 = vmul.f32 %v3948, 0.007874016
        %v3955 = vmul.f32 %v3950, 0.007874016
        %v3956 = vmul.f32 %v3952, 0.007874016
        %v3957 = vadd.f32 %v3953, 0.001
        %v3958 = vadd.f32 %v3954, 0.001
        %v3959 = vadd.f32 %v3955, 0.001
        %v3960 = vadd.f32 %v3956, 0.001
        %v3961 = vrsqrt.pop %v3957
        %v3962 = vmul.f32 %v3961, %v3957
        %v3963 = vmul.f32 %v3962, %v3961
        %v3964 = vmul.f32 0.5, %v3963
        %v3965 = vsub.f32 1.5, %v3964
        %v3966 = vmul.f32 %v3961, %v3965
        %vm3967 = vweird.f32 %v3957
        %vm3968 = vweird.f32 %v3961
        %vm3969 = vmor %vm3967, %vm3968
        %v3970 = vsel %vm3969, %v3961, %v3966
        %v3971 = vrsqrt.pop %v3958
        %v3972 = vmul.f32 %v3971, %v3958
        %v3973 = vmul.f32 %v3972, %v3971
        %v3974 = vmul.f32 0.5, %v3973
        %v3975 = vsub.f32 1.5, %v3974
        %v3976 = vmul.f32 %v3971, %v3975
        %vm3977 = vweird.f32 %v3958
        %vm3978 = vweird.f32 %v3971
        %vm3979 = vmor %vm3977, %vm3978
        %v3980 = vsel %vm3979, %v3971, %v3976
        %v3981 = vrsqrt.pop %v3959
        %v3982 = vmul.f32 %v3981, %v3959
        %v3983 = vmul.f32 %v3982, %v3981
        %v3984 = vmul.f32 0.5, %v3983
        %v3985 = vsub.f32 1.5, %v3984
        %v3986 = vmul.f32 %v3981, %v3985
        %vm3987 = vweird.f32 %v3959
        %vm3988 = vweird.f32 %v3981
        %vm3989 = vmor %vm3987, %vm3988
        %v3990 = vsel %vm3989, %v3981, %v3986
        %v3991 = vrsqrt.pop %v3960
        %v3992 = vmul.f32 %v3991, %v3960
        %v3993 = vmul.f32 %v3992, %v3991
        %v3994 = vmul.f32 0.5, %v3993
        %v3995 = vsub.f32 1.5, %v3994
        %v3996 = vmul.f32 %v3991, %v3995
        %vm3997 = vweird.f32 %v3960
        %vm3998 = vweird.f32 %v3991
        %vm3999 = vmor %vm3997, %vm3998
        %v4000 = vsel %vm3999, %v3991, %v3996
        %v4001 = vmul.f32 %v3916, %v3970
        %v4002 = vmul.f32 %v3917, %v3980
        %v4003 = vmul.f32 %v3918, %v3990
        %v4004 = vmul.f32 %v3919, %v4000
        %4006 = vset.pattern.permute.xlu0 0
        %4007 = vperm.xlu0 %4006, %v4001
        %v4008 = vpop.permute.xlu0 %4007
        %4011 = vset.pattern.permute.xlu0 0
        %4012 = vperm.xlu0 %4011, %v4002
        %v4013 = vpop.permute.xlu0 %4012
        %4016 = vset.pattern.permute.xlu0 0
        %4017 = vperm.xlu0 %4016, %v4003
        %v4018 = vpop.permute.xlu0 %4017
        %4021 = vset.pattern.permute.xlu0 0
        %4022 = vperm.xlu0 %4021, %v4004
        %v4023 = vpop.permute.xlu0 %4022
        %v4025 = vmul.f32 %v3937, %v4008
        %v4026 = vmul.f32 %v3938, %v4013
        %v4027 = vmul.f32 %v3939, %v4018
        %v4028 = vmul.f32 %v3940, %v4023
        %4030 = vset.pattern.permute.xlu0 0
        %4031 = vperm.xlu0 %4030, %v3921
        %v4032 = vpop.permute.xlu0 %4031
        %4035 = vset.pattern.permute.xlu0 0
        %4036 = vperm.xlu0 %4035, %v3922
        %v4037 = vpop.permute.xlu0 %4036
        %4040 = vset.pattern.permute.xlu0 0
        %4041 = vperm.xlu0 %4040, %v3923
        %v4042 = vpop.permute.xlu0 %4041
        %4045 = vset.pattern.permute.xlu0 0
        %4046 = vperm.xlu0 %4045, %v3924
        %v4047 = vpop.permute.xlu0 %4046
        %v4049 = vadd.f32 %v4025, %v4032
        %v4050 = vadd.f32 %v4026, %v4037
        %v4051 = vadd.f32 %v4027, %v4042
        %v4052 = vadd.f32 %v4028, %v4047
        %v4053 = vmax.f32 %v4049, 0.0
        %v4054 = vmax.f32 %v4050, 0.0
        %v4055 = vmax.f32 %v4051, 0.0
        %v4056 = vmax.f32 %v4052, 0.0
        %4057 = vst [vmem:[%s977] sm:$0xff] %v4053
        %4058 = vst [vmem:[%s977 + $0x8] sm:$0xff] %v4054
        %4059 = vst [vmem:[%s977 + $0x10] sm:$0xff] %v4055
        %4060 = vst [vmem:[%s977 + $0x18] sm:$0xff] %v4056
        %s4061 = sand.u32 %s764, 1
        %s4062 = scalar_lea.sflag [#allocation3], %s4061
        %s4063 = sand.u32 %s764, 1
        %s4064 = smul.addr %s4063, 32
        %s4065 = scalar_lea.vmem [#allocation2], %s4064
        // Predicated region
        $region149: #{oanet_forward.1} parent=147 // pred_check
          %p4066 = pneg %p774
        $region150: #{oanet_forward.1} parent=147 // pred_check_branch
          %4068 = sbr.rel (%p4066) target = $region152
        $region151: #{oanet_forward.1} parent=147 // pred_region
          %4070 = vsyncadd %s4062, 0
          %s4071 = smul.addr %s79, 4
          %s4072 = smul.addr %s4071, 8
          %s4073 = scalar_lea.hbm %s65, %s4072
          %s4074 = sshll.u32 %s4065, 4
          %s4075 = int_to_ptr.vmem [resolvable:$true] %s4074
          %s4076 = sshll.u32 %s4073, 4
          %s4077 = int_to_ptr.hbm [resolvable:$true] %s4076
          %4082 = dma.vmem_to_hbm [thread:$0]  %s4075, 512, %s4077, %s4062, 128, 128, 8
        $region152: #{oanet_forward.1} parent=147 // pred_fallthru
          _
      $region148: #{oanet_forward.1} parent=5 // pred_fallthru
        _
      %p4083 = scmp.le.s32.totalorder 2, %s74
      // Predicated region
      $region153: #{oanet_forward.1} parent=5 // pred_check
        %p4084 = pneg %p4083
      $region154: #{oanet_forward.1} parent=5 // pred_check_branch
        %4086 = sbr.rel (%p4084) target = $region156
      $region155: #{oanet_forward.1} parent=5 // pred_region
        %s4087 = ssub.s32 %s74, 2
        // Predicated region
        $region157: #{oanet_forward.1} parent=155 // pred_check
          %p4088 = pneg %p780
        $region158: #{oanet_forward.1} parent=155 // pred_check_branch
          %4090 = sbr.rel (%p4088) target = $region160
        $region159: #{oanet_forward.1} parent=155 // pred_region
          %s4091 = sand.u32 %s765, 1
          %s4092 = scalar_lea.sflag [#allocation3], %s4091
          %s4093 = sand.u32 %s765, 1
          %s4094 = smul.addr %s4093, 32
          %s4095 = scalar_lea.vmem [#allocation2], %s4094
          %4097 = dma.done %s4092, 512
        $region160: #{oanet_forward.1} parent=155 // pred_fallthru
          _
      $region156: #{oanet_forward.1} parent=5 // pred_fallthru
        _
    $region6: #{oanet_forward.1} parent=1 // loop_footer
      %s78 = sadd.s32 1, %s74
    $region7: #{oanet_forward.1} parent=1 // loop_footer_branch
      %73 = sbr.rel target = $region3
    $region8: #{oanet_forward.1} parent=1 // loop_exit
      _
    %4098 = vsyncpa [#allocation3], 1
    %s4099 = scalar_lea.sflag [#allocation3], 1
    %4100 = vsyncpa %s4099, 1

</llo_original>
